<compile_context>
chip_gen: v5e
topology: v5e:2x2
jax: 0.10.0
libtpu: 0.0.40
codegen_flags: <defaults>
</compile_context>

<pallas_src>
import functools

import jax
import jax.numpy as jnp
from jax import lax
from jax.experimental import pallas as pl
from jax.experimental.pallas import tpu as pltpu


def _refiner_kernel(xc_ref, ra_ref,
                    w1_ref, b1_ref, w2_ref, b2_ref, w3_ref, b3_ref,
                    wp_ref, bp_ref,
                    out_ref, pad_ref,
                    *, H, W, C, TR, PADW):
    t_id = pl.program_id(1)
    R1, R2, R3 = TR + 6, TR + 4, TR + 2

    # Zero only the left/right padding strips (8 aligned columns each); the
    # interior is fully rewritten every layer. Done every grid step so the
    # kernel stays correct under megacore ("parallel") scheduling.
    zstrip = jnp.zeros((R1, PADW, C), jnp.bfloat16)
    pad_ref[:, 0:PADW, :] = zstrip
    pad_ref[:, PADW + W:PADW + W + PADW, :] = zstrip

    def store_slab(acc, rows, off):
        # acc: (rows*W, C) f32 slab covering image rows [t*TR-off, t*TR-off+rows).
        # Cast to bf16, write into the sublane-aligned interior, and zero halo
        # rows outside the image (they are the next conv's "same" padding).
        pad_ref[0:rows, PADW:PADW + W, :] = (
            acc.reshape(rows, W, C).astype(jnp.bfloat16))

        @pl.when(t_id == 0)
        def _():
            pad_ref[0:off, PADW:PADW + W, :] = jnp.zeros(
                (off, W, C), jnp.bfloat16)

        @pl.when(t_id == pl.num_programs(1) - 1)
        def _():
            pad_ref[rows - off:rows, PADW:PADW + W, :] = jnp.zeros(
                (off, W, C), jnp.bfloat16)

    # ---- Layer 1: 4 -> C. Single K=36 MXU matmul over wrapper-side im2col.
    a1 = jnp.dot(xc_ref[0, 0], w1_ref[...],
                 preferred_element_type=jnp.float32)
    a1 = jnp.maximum(a1 + b1_ref[...], 0.0)
    store_slab(a1, R1, 3)

    # ---- Layers 2 & 3: C -> C. Per dy, the 3 dx taps are concatenated along
    # the lane (contraction) axis -> 3 dots of K = 3*C per conv.
    def conv3x3(rows, w_ref, b_ref):
        acc = None
        for dy in range(3):
            taps = [pad_ref[dy:dy + rows, PADW - 1 + dx:PADW - 1 + dx + W, :]
                    for dx in range(3)]
            slab = jnp.concatenate(taps, axis=-1).reshape(rows * W, 3 * C)
            d = jnp.dot(slab, w_ref[dy], preferred_element_type=jnp.float32)
            acc = d if acc is None else acc + d
        return jnp.maximum(acc + b_ref[...], 0.0)

    store_slab(conv3x3(R2, w2_ref, b2_ref), R2, 2)
    store_slab(conv3x3(R3, w3_ref, b3_ref), R3, 1)

    # ---- Prediction conv C -> 1 on the VPU: weighted accumulate over the 9
    # taps, one lane reduction, then sigmoid via the EUP reciprocal.
    acc4 = None
    for dy in range(3):
        for dx in range(3):
            piece = pad_ref[dy:dy + TR,
                            PADW - 1 + dx:PADW - 1 + dx + W, :].astype(jnp.float32)
            term = piece * wp_ref[dy * 3 + dx]          # (TR, W, C) * (1, C)
            acc4 = term if acc4 is None else acc4 + term
    raw_refine = jnp.sum(acc4, axis=-1) + bp_ref[...]   # (TR, W) + (1, 1)
    z = ra_ref[0] + raw_refine
    out_ref[0] = pl.reciprocal(1.0 + jnp.exp(-z), approx=True)


@functools.partial(jax.jit, static_argnames=("row_tile",))
def plain_refiner_pallas(x_nhwc, raw_alpha_nhwc, params, *, row_tile=None):
    """x_nhwc: (N, H, W, 4), raw_alpha_nhwc: (N, H, W, 1) -> (N, H, W, 1)."""
    N, H, W, cin = x_nhwc.shape
    assert cin == 4
    (w1, b1), (w2, b2), (w3, b3), (wp, bp) = params
    C = w1.shape[-1]

    if row_tile is None:
        # NOTE: on v7x (64 MiB VMEM) prefer roughly half the row tile that
        # v5e/v6e would use at large H, W, C.
        row_tile = next((d for d in (64, 32, 16, 8) if H % d == 0), H)
    TR = int(row_tile)
    assert H % TR == 0, "row_tile must divide H"
    assert TR % 8 == 0 or TR == H, "row_tile should be a multiple of 8"
    T = H // TR
    R1 = TR + 6
    PADW = 8  # 8-wide W padding keeps interior scratch writes sublane-aligned
    cdt = jnp.bfloat16

    # ---- Wrapper-side glue (plain XLA) --------------------------------------
    # Layer-1 im2col: 36 = 9*4 features per pixel -> one K=36 matmul in-kernel.
    xpad = jnp.pad(x_nhwc, ((0, 0), (1, 1), (1, 1), (0, 0)))
    cols = [xpad[:, dy:dy + H, dx:dx + W, :]
            for dy in range(3) for dx in range(3)]
    xcols = jnp.concatenate(cols, axis=-1).astype(cdt)         # (N, H, W, 36)
    # 3-row zero halo + per-tile halo duplication so each grid step reads a
    # plain non-overlapping block (rows flattened -> reshape-free kernel load).
    xcols = jnp.pad(xcols, ((0, 0), (3, 3), (0, 0), (0, 0)))   # (N, H+6, W, 36)
    x_tiles = jnp.stack([xcols[:, t * TR:t * TR + R1] for t in range(T)],
                        axis=1)                                # (N, T, R1, W, 36)
    x_tiles = x_tiles.reshape(N, T, R1 * W, 9 * 4)

    ra = raw_alpha_nhwc.reshape(N, H, W).astype(jnp.float32)   # lane-dense

    # Weights -> fused-contraction layouts (bf16 for the MXU layers).
    w1f = w1.reshape(9 * 4, C).astype(cdt)                     # (36, C)
    w2f = w2.reshape(3, 3 * C, C).astype(cdt)                  # per-dy (3C, C)
    w3f = w3.reshape(3, 3 * C, C).astype(cdt)
    wpf = wp.reshape(9, 1, C).astype(jnp.float32)              # VPU path
    b1r = b1.reshape(1, C).astype(jnp.float32)
    b2r = b2.reshape(1, C).astype(jnp.float32)
    b3r = b3.reshape(1, C).astype(jnp.float32)
    bpr = bp.reshape(1, 1).astype(jnp.float32)

    full = lambda a: pl.BlockSpec(a.shape, lambda n, t: (0,) * a.ndim)
    kernel = functools.partial(_refiner_kernel, H=H, W=W, C=C, TR=TR, PADW=PADW)

    out = pl.pallas_call(
        kernel,
        out_shape=jax.ShapeDtypeStruct((N, H, W), jnp.float32),
        grid_spec=pltpu.PrefetchScalarGridSpec(
            num_scalar_prefetch=0,
            grid=(N, T),
            in_specs=[
                pl.BlockSpec((1, 1, R1 * W, 9 * 4), lambda n, t: (n, t, 0, 0)),
                pl.BlockSpec((1, TR, W), lambda n, t: (n, t, 0)),
                full(w1f), full(b1r),
                full(w2f), full(b2r),
                full(w3f), full(b3r),
                full(wpf), full(bpr),
            ],
            out_specs=pl.BlockSpec((1, TR, W), lambda n, t: (n, t, 0)),
            scratch_shapes=[
                pltpu.VMEM((R1, W + 2 * PADW, C), jnp.bfloat16)],
        ),
        compiler_params=pltpu.CompilerParams(
            dimension_semantics=("parallel", "parallel"),
            vmem_limit_bytes=32 * 1024 * 1024),
    )(x_tiles, ra, w1f, b1r, w2f, b2r, w3f, b3r, wpf, bpr)

    return out.reshape(N, H, W, 1)


def _xavier_conv(key, kh, kw, cin, cout):
    fan_in = kh * kw * cin
    fan_out = kh * kw * cout
    limit = jnp.sqrt(6.0 / (fan_in + fan_out))
    w = jax.random.uniform(key, (kh, kw, cin, cout), jnp.float32,
                           minval=-limit, maxval=limit)  # HWIO
    b = jnp.zeros((cout,), jnp.float32)
    return w, b


def _reference_forward(x_nhwc, raw_alpha_nhwc, params):
    """Pure-JAX f32 reference (lax.conv), same NHWC/HWIO layout."""
    dn = ("NHWC", "HWIO", "NHWC")
    (w1, b1), (w2, b2), (w3, b3), (wp, bp) = params

    def conv(x, w, b):
        return lax.conv_general_dilated(x, w, (1, 1), "SAME",
                                        dimension_numbers=dn) + b

    out = jax.nn.relu(conv(x_nhwc, w1, b1))
    out = jax.nn.relu(conv(out, w2, b2))
    out = jax.nn.relu(conv(out, w3, b3))
    raw_refine = conv(out, wp, bp)
    return jax.nn.sigmoid(raw_alpha_nhwc + raw_refine)


if __name__ == "__main__":
    N, H, W = 2, 16, 16
    IN_CH = 4          # image RGB + trimap/alpha
    CONV_CH = 32       # conv_channels (small demo; module default is 64)

    key = jax.random.PRNGKey(0)
    k_x, k_a, k1, k2, k3, k4 = jax.random.split(key, 6)

    # Module-spec layouts: x is NCHW (N, 4, H, W), raw_alpha is (N, 1, H, W).
    x_nchw = jax.random.normal(k_x, (N, IN_CH, H, W), jnp.float32)
    ra_nchw = jax.random.normal(k_a, (N, 1, H, W), jnp.float32)
    x_nhwc = jnp.transpose(x_nchw, (0, 2, 3, 1))
    ra_nhwc = jnp.transpose(ra_nchw, (0, 2, 3, 1))

    params = (
        _xavier_conv(k1, 3, 3, IN_CH, CONV_CH),    # refine_conv1
        _xavier_conv(k2, 3, 3, CONV_CH, CONV_CH),  # refine_conv2
        _xavier_conv(k3, 3, 3, CONV_CH, CONV_CH),  # refine_conv3
        _xavier_conv(k4, 3, 3, CONV_CH, 1),        # refine_pred
    )

    # row_tile=8 -> 2 row tiles per image: exercises halo masking on both
    # boundary tiles as well as the (N, T) parallel grid.
    pred = plain_refiner_pallas(x_nhwc, ra_nhwc, params, row_tile=8)
    pred = jax.block_until_ready(pred)

    ref = _reference_forward(x_nhwc, ra_nhwc, params)
    assert pred.shape == (N, H, W, 1)
    err = float(jnp.max(jnp.abs(pred - ref)))
    # bf16 activations/weights + approx reciprocal vs f32 reference.
    assert err < 2e-2, f"mismatch vs reference: max abs err {err}"

    print("KERNEL_OK")
</pallas_src>

<mosaic_0001>
module attributes {stable_mosaic.version = 11 : i64} {
  func.func @_refiner_kernel(%arg0: i32, %arg1: i32, %arg2: memref<1x1x224x36xbf16, #tpu.memory_space<vmem>>, %arg3: memref<1x8x16xf32, #tpu.memory_space<vmem>>, %arg4: memref<36x32xbf16, #tpu.memory_space<vmem>>, %arg5: memref<1x32xf32, #tpu.memory_space<vmem>>, %arg6: memref<3x96x32xbf16, #tpu.memory_space<vmem>>, %arg7: memref<1x32xf32, #tpu.memory_space<vmem>>, %arg8: memref<3x96x32xbf16, #tpu.memory_space<vmem>>, %arg9: memref<1x32xf32, #tpu.memory_space<vmem>>, %arg10: memref<9x1x32xf32, #tpu.memory_space<vmem>>, %arg11: memref<1x1xf32, #tpu.memory_space<vmem>>, %arg12: memref<1x8x16xf32, #tpu.memory_space<vmem>>, %arg13: memref<14x32x32xbf16, #tpu.memory_space<vmem>>) attributes {dimension_semantics = [#tpu.dimension_semantics<parallel>, #tpu.dimension_semantics<parallel>], iteration_bounds = array<i64: 2, 2>, scalar_prefetch = 0 : i64, scratch_operands = 1 : i64, tpu.core_type = #tpu.core_type<tc>, window_params = [{transform_indices = @transform_0, window_bounds = array<i64: 1, 1, 224, 36>}, {transform_indices = @transform_1, window_bounds = array<i64: 1, 8, 16>}, {pipeline_mode = #tpu.pipeline_mode<synchronous>, transform_indices = @transform_2, window_bounds = array<i64: 36, 32>}, {pipeline_mode = #tpu.pipeline_mode<synchronous>, transform_indices = @transform_3, window_bounds = array<i64: 1, 32>}, {pipeline_mode = #tpu.pipeline_mode<synchronous>, transform_indices = @transform_4, window_bounds = array<i64: 3, 96, 32>}, {pipeline_mode = #tpu.pipeline_mode<synchronous>, transform_indices = @transform_5, window_bounds = array<i64: 1, 32>}, {pipeline_mode = #tpu.pipeline_mode<synchronous>, transform_indices = @transform_6, window_bounds = array<i64: 3, 96, 32>}, {pipeline_mode = #tpu.pipeline_mode<synchronous>, transform_indices = @transform_7, window_bounds = array<i64: 1, 32>}, {pipeline_mode = #tpu.pipeline_mode<synchronous>, transform_indices = @transform_8, window_bounds = array<i64: 9, 1, 32>}, {pipeline_mode = #tpu.pipeline_mode<synchronous>, transform_indices = @transform_9, window_bounds = array<i64: 1, 1>}, {transform_indices = @transform_10, window_bounds = array<i64: 1, 8, 16>}]} {
    %cst = arith.constant 0.000000e+00 : bf16
    %0 = vector.broadcast %cst : bf16 to vector<14x8x32xbf16>
    %c0 = arith.constant 0 : index
    %c0_0 = arith.constant 0 : index
    %c0_1 = arith.constant 0 : index
    %1 = vector.load %arg13[%c0, %c0_0, %c0_1] : memref<14x32x32xbf16, #tpu.memory_space<vmem>>, vector<14x8x32xbf16>
    tpu.vector_store %arg13[%c0, %c0_0, %c0_1], %0 {strides = array<i32>} : memref<14x32x32xbf16, #tpu.memory_space<vmem>>, vector<14x8x32xbf16>,
    %c0_2 = arith.constant 0 : index
    %c24 = arith.constant 24 : index
    %c0_3 = arith.constant 0 : index
    %2 = vector.load %arg13[%c0_2, %c24, %c0_3] : memref<14x32x32xbf16, #tpu.memory_space<vmem>>, vector<14x8x32xbf16>
    tpu.vector_store %arg13[%c0_2, %c24, %c0_3], %0 {strides = array<i32>} : memref<14x32x32xbf16, #tpu.memory_space<vmem>>, vector<14x8x32xbf16>,
    %c0_4 = arith.constant 0 : index
    %c0_5 = arith.constant 0 : index
    %c0_6 = arith.constant 0 : index
    %c0_7 = arith.constant 0 : index
    %3 = vector.load %arg2[%c0_4, %c0_5, %c0_6, %c0_7] : memref<1x1x224x36xbf16, #tpu.memory_space<vmem>>, vector<1x1x224x36xbf16>
    %4 = vector.shape_cast %3 : vector<1x1x224x36xbf16> to vector<224x36xbf16>
    %c0_8 = arith.constant 0 : index
    %c0_9 = arith.constant 0 : index
    %5 = vector.load %arg4[%c0_8, %c0_9] : memref<36x32xbf16, #tpu.memory_space<vmem>>, vector<36x32xbf16>
    %cst_10 = arith.constant dense<0.000000e+00> : vector<224x32xf32>
    %6 = tpu.matmul %4, %5, %cst_10 {dimension_numbers = #tpu.dot_dimension_numbers<[1], [0], [0], [1], [0, 0, 1, 1], [], []>} : vector<224x36xbf16>, vector<36x32xbf16>, vector<224x32xf32> -> vector<224x32xf32>
    %c0_11 = arith.constant 0 : index
    %c0_12 = arith.constant 0 : index
    %7 = vector.load %arg5[%c0_11, %c0_12] : memref<1x32xf32, #tpu.memory_space<vmem>>, vector<1x32xf32>
    %8 = vector.broadcast %7 : vector<1x32xf32> to vector<224x32xf32>
    %9 = arith.addf %6, %8 : vector<224x32xf32>
    %cst_13 = arith.constant 0.000000e+00 : f32
    %10 = vector.broadcast %cst_13 : f32 to vector<224x32xf32>
    %11 = arith.maximumf %9, %10 : vector<224x32xf32>
    %12 = vector.shape_cast %11 : vector<224x32xf32> to vector<14x16x32xf32>
    %13 = arith.truncf %12 : vector<14x16x32xf32> to vector<14x16x32xbf16>
    %c0_14 = arith.constant 0 : index
    %c8 = arith.constant 8 : index
    %c0_15 = arith.constant 0 : index
    %14 = vector.load %arg13[%c0_14, %c8, %c0_15] : memref<14x32x32xbf16, #tpu.memory_space<vmem>>, vector<14x16x32xbf16>
    tpu.vector_store %arg13[%c0_14, %c8, %c0_15], %13 {strides = array<i32>} : memref<14x32x32xbf16, #tpu.memory_space<vmem>>, vector<14x16x32xbf16>,
    %c0_i32 = arith.constant 0 : i32
    %15 = arith.cmpi eq, %arg1, %c0_i32 : i32
    %16 = arith.extui %15 : i1 to i32
    %c0_i32_16 = arith.constant 0 : i32
    %17 = arith.cmpi ne, %16, %c0_i32_16 : i32
    scf.if %17 {
      %cst_173 = arith.constant 0.000000e+00 : bf16
      %188 = vector.broadcast %cst_173 : bf16 to vector<3x16x32xbf16>
      %c0_174 = arith.constant 0 : index
      %c8_175 = arith.constant 8 : index
      %c0_176 = arith.constant 0 : index
      %189 = vector.load %arg13[%c0_174, %c8_175, %c0_176] : memref<14x32x32xbf16, #tpu.memory_space<vmem>>, vector<3x16x32xbf16>
      tpu.vector_store %arg13[%c0_174, %c8_175, %c0_176], %188 {strides = array<i32>} : memref<14x32x32xbf16, #tpu.memory_space<vmem>>, vector<3x16x32xbf16>,
    } else {
    }
    %c1_i32 = arith.constant 1 : i32
    %18 = arith.cmpi eq, %arg1, %c1_i32 : i32
    %19 = arith.extui %18 : i1 to i32
    %c0_i32_17 = arith.constant 0 : i32
    %20 = arith.cmpi ne, %19, %c0_i32_17 : i32
    scf.if %20 {
      %cst_173 = arith.constant 0.000000e+00 : bf16
      %188 = vector.broadcast %cst_173 : bf16 to vector<3x16x32xbf16>
      %c11 = arith.constant 11 : index
      %c8_174 = arith.constant 8 : index
      %c0_175 = arith.constant 0 : index
      %189 = vector.load %arg13[%c11, %c8_174, %c0_175] : memref<14x32x32xbf16, #tpu.memory_space<vmem>>, vector<3x16x32xbf16>
      tpu.vector_store %arg13[%c11, %c8_174, %c0_175], %188 {strides = array<i32>} : memref<14x32x32xbf16, #tpu.memory_space<vmem>>, vector<3x16x32xbf16>,
    } else {
    }
    %c0_18 = arith.constant 0 : index
    %c7 = arith.constant 7 : index
    %c0_19 = arith.constant 0 : index
    %21 = vector.load %arg13[%c0_18, %c7, %c0_19] : memref<14x32x32xbf16, #tpu.memory_space<vmem>>, vector<12x16x32xbf16>
    %c0_20 = arith.constant 0 : index
    %c8_21 = arith.constant 8 : index
    %c0_22 = arith.constant 0 : index
    %22 = vector.load %arg13[%c0_20, %c8_21, %c0_22] : memref<14x32x32xbf16, #tpu.memory_space<vmem>>, vector<12x16x32xbf16>
    %c0_23 = arith.constant 0 : index
    %c9 = arith.constant 9 : index
    %c0_24 = arith.constant 0 : index
    %23 = vector.load %arg13[%c0_23, %c9, %c0_24] : memref<14x32x32xbf16, #tpu.memory_space<vmem>>, vector<12x16x32xbf16>
    %24 = tpu.concatenate %21, %22, %23 in 2 : vector<12x16x32xbf16>, vector<12x16x32xbf16>, vector<12x16x32xbf16> -> vector<12x16x96xbf16>
    %25 = vector.shape_cast %24 : vector<12x16x96xbf16> to vector<192x96xbf16>
    %c0_25 = arith.constant 0 : index
    %c0_26 = arith.constant 0 : index
    %c0_27 = arith.constant 0 : index
    %26 = vector.load %arg6[%c0_25, %c0_26, %c0_27] : memref<3x96x32xbf16, #tpu.memory_space<vmem>>, vector<1x96x32xbf16>
    %27 = vector.shape_cast %26 : vector<1x96x32xbf16> to vector<96x32xbf16>
    %cst_28 = arith.constant dense<0.000000e+00> : vector<192x32xf32>
    %28 = tpu.matmul %25, %27, %cst_28 {dimension_numbers = #tpu.dot_dimension_numbers<[1], [0], [0], [1], [0, 0, 1, 1], [], []>} : vector<192x96xbf16>, vector<96x32xbf16>, vector<192x32xf32> -> vector<192x32xf32>
    %c1 = arith.constant 1 : index
    %c7_29 = arith.constant 7 : index
    %c0_30 = arith.constant 0 : index
    %29 = vector.load %arg13[%c1, %c7_29, %c0_30] : memref<14x32x32xbf16, #tpu.memory_space<vmem>>, vector<12x16x32xbf16>
    %c1_31 = arith.constant 1 : index
    %c8_32 = arith.constant 8 : index
    %c0_33 = arith.constant 0 : index
    %30 = vector.load %arg13[%c1_31, %c8_32, %c0_33] : memref<14x32x32xbf16, #tpu.memory_space<vmem>>, vector<12x16x32xbf16>
    %c1_34 = arith.constant 1 : index
    %c9_35 = arith.constant 9 : index
    %c0_36 = arith.constant 0 : index
    %31 = vector.load %arg13[%c1_34, %c9_35, %c0_36] : memref<14x32x32xbf16, #tpu.memory_space<vmem>>, vector<12x16x32xbf16>
    %32 = tpu.concatenate %29, %30, %31 in 2 : vector<12x16x32xbf16>, vector<12x16x32xbf16>, vector<12x16x32xbf16> -> vector<12x16x96xbf16>
    %33 = vector.shape_cast %32 : vector<12x16x96xbf16> to vector<192x96xbf16>
    %c1_37 = arith.constant 1 : index
    %c0_38 = arith.constant 0 : index
    %c0_39 = arith.constant 0 : index
    %34 = vector.load %arg6[%c1_37, %c0_38, %c0_39] : memref<3x96x32xbf16, #tpu.memory_space<vmem>>, vector<1x96x32xbf16>
    %35 = vector.shape_cast %34 : vector<1x96x32xbf16> to vector<96x32xbf16>
    %cst_40 = arith.constant dense<0.000000e+00> : vector<192x32xf32>
    %36 = tpu.matmul %33, %35, %cst_40 {dimension_numbers = #tpu.dot_dimension_numbers<[1], [0], [0], [1], [0, 0, 1, 1], [], []>} : vector<192x96xbf16>, vector<96x32xbf16>, vector<192x32xf32> -> vector<192x32xf32>
    %37 = arith.addf %28, %36 : vector<192x32xf32>
    %c2 = arith.constant 2 : index
    %c7_41 = arith.constant 7 : index
    %c0_42 = arith.constant 0 : index
    %38 = vector.load %arg13[%c2, %c7_41, %c0_42] : memref<14x32x32xbf16, #tpu.memory_space<vmem>>, vector<12x16x32xbf16>
    %c2_43 = arith.constant 2 : index
    %c8_44 = arith.constant 8 : index
    %c0_45 = arith.constant 0 : index
    %39 = vector.load %arg13[%c2_43, %c8_44, %c0_45] : memref<14x32x32xbf16, #tpu.memory_space<vmem>>, vector<12x16x32xbf16>
    %c2_46 = arith.constant 2 : index
    %c9_47 = arith.constant 9 : index
    %c0_48 = arith.constant 0 : index
    %40 = vector.load %arg13[%c2_46, %c9_47, %c0_48] : memref<14x32x32xbf16, #tpu.memory_space<vmem>>, vector<12x16x32xbf16>
    %41 = tpu.concatenate %38, %39, %40 in 2 : vector<12x16x32xbf16>, vector<12x16x32xbf16>, vector<12x16x32xbf16> -> vector<12x16x96xbf16>
    %42 = vector.shape_cast %41 : vector<12x16x96xbf16> to vector<192x96xbf16>
    %c2_49 = arith.constant 2 : index
    %c0_50 = arith.constant 0 : index
    %c0_51 = arith.constant 0 : index
    %43 = vector.load %arg6[%c2_49, %c0_50, %c0_51] : memref<3x96x32xbf16, #tpu.memory_space<vmem>>, vector<1x96x32xbf16>
    %44 = vector.shape_cast %43 : vector<1x96x32xbf16> to vector<96x32xbf16>
    %cst_52 = arith.constant dense<0.000000e+00> : vector<192x32xf32>
    %45 = tpu.matmul %42, %44, %cst_52 {dimension_numbers = #tpu.dot_dimension_numbers<[1], [0], [0], [1], [0, 0, 1, 1], [], []>} : vector<192x96xbf16>, vector<96x32xbf16>, vector<192x32xf32> -> vector<192x32xf32>
    %46 = arith.addf %37, %45 : vector<192x32xf32>
    %c0_53 = arith.constant 0 : index
    %c0_54 = arith.constant 0 : index
    %47 = vector.load %arg7[%c0_53, %c0_54] : memref<1x32xf32, #tpu.memory_space<vmem>>, vector<1x32xf32>
    %48 = vector.broadcast %47 : vector<1x32xf32> to vector<192x32xf32>
    %49 = arith.addf %46, %48 : vector<192x32xf32>
    %cst_55 = arith.constant 0.000000e+00 : f32
    %50 = vector.broadcast %cst_55 : f32 to vector<192x32xf32>
    %51 = arith.maximumf %49, %50 : vector<192x32xf32>
    %52 = vector.shape_cast %51 : vector<192x32xf32> to vector<12x16x32xf32>
    %53 = arith.truncf %52 : vector<12x16x32xf32> to vector<12x16x32xbf16>
    %c0_56 = arith.constant 0 : index
    %c8_57 = arith.constant 8 : index
    %c0_58 = arith.constant 0 : index
    %54 = vector.load %arg13[%c0_56, %c8_57, %c0_58] : memref<14x32x32xbf16, #tpu.memory_space<vmem>>, vector<12x16x32xbf16>
    tpu.vector_store %arg13[%c0_56, %c8_57, %c0_58], %53 {strides = array<i32>} : memref<14x32x32xbf16, #tpu.memory_space<vmem>>, vector<12x16x32xbf16>,
    %c0_i32_59 = arith.constant 0 : i32
    %55 = arith.cmpi eq, %arg1, %c0_i32_59 : i32
    %56 = arith.extui %55 : i1 to i32
    %c0_i32_60 = arith.constant 0 : i32
    %57 = arith.cmpi ne, %56, %c0_i32_60 : i32
    scf.if %57 {
      %cst_173 = arith.constant 0.000000e+00 : bf16
      %188 = vector.broadcast %cst_173 : bf16 to vector<2x16x32xbf16>
      %c0_174 = arith.constant 0 : index
      %c8_175 = arith.constant 8 : index
      %c0_176 = arith.constant 0 : index
      %189 = vector.load %arg13[%c0_174, %c8_175, %c0_176] : memref<14x32x32xbf16, #tpu.memory_space<vmem>>, vector<2x16x32xbf16>
      tpu.vector_store %arg13[%c0_174, %c8_175, %c0_176], %188 {strides = array<i32>} : memref<14x32x32xbf16, #tpu.memory_space<vmem>>, vector<2x16x32xbf16>,
    } else {
    }
    %c1_i32_61 = arith.constant 1 : i32
    %58 = arith.cmpi eq, %arg1, %c1_i32_61 : i32
    %59 = arith.extui %58 : i1 to i32
    %c0_i32_62 = arith.constant 0 : i32
    %60 = arith.cmpi ne, %59, %c0_i32_62 : i32
    scf.if %60 {
      %cst_173 = arith.constant 0.000000e+00 : bf16
      %188 = vector.broadcast %cst_173 : bf16 to vector<2x16x32xbf16>
      %c10 = arith.constant 10 : index
      %c8_174 = arith.constant 8 : index
      %c0_175 = arith.constant 0 : index
      %189 = vector.load %arg13[%c10, %c8_174, %c0_175] : memref<14x32x32xbf16, #tpu.memory_space<vmem>>, vector<2x16x32xbf16>
      tpu.vector_store %arg13[%c10, %c8_174, %c0_175], %188 {strides = array<i32>} : memref<14x32x32xbf16, #tpu.memory_space<vmem>>, vector<2x16x32xbf16>,
    } else {
    }
    %c0_63 = arith.constant 0 : index
    %c7_64 = arith.constant 7 : index
    %c0_65 = arith.constant 0 : index
    %61 = vector.load %arg13[%c0_63, %c7_64, %c0_65] : memref<14x32x32xbf16, #tpu.memory_space<vmem>>, vector<10x16x32xbf16>
    %c0_66 = arith.constant 0 : index
    %c8_67 = arith.constant 8 : index
    %c0_68 = arith.constant 0 : index
    %62 = vector.load %arg13[%c0_66, %c8_67, %c0_68] : memref<14x32x32xbf16, #tpu.memory_space<vmem>>, vector<10x16x32xbf16>
    %c0_69 = arith.constant 0 : index
    %c9_70 = arith.constant 9 : index
    %c0_71 = arith.constant 0 : index
    %63 = vector.load %arg13[%c0_69, %c9_70, %c0_71] : memref<14x32x32xbf16, #tpu.memory_space<vmem>>, vector<10x16x32xbf16>
    %64 = tpu.concatenate %61, %62, %63 in 2 : vector<10x16x32xbf16>, vector<10x16x32xbf16>, vector<10x16x32xbf16> -> vector<10x16x96xbf16>
    %65 = vector.shape_cast %64 : vector<10x16x96xbf16> to vector<160x96xbf16>
    %c0_72 = arith.constant 0 : index
    %c0_73 = arith.constant 0 : index
    %c0_74 = arith.constant 0 : index
    %66 = vector.load %arg8[%c0_72, %c0_73, %c0_74] : memref<3x96x32xbf16, #tpu.memory_space<vmem>>, vector<1x96x32xbf16>
    %67 = vector.shape_cast %66 : vector<1x96x32xbf16> to vector<96x32xbf16>
    %cst_75 = arith.constant dense<0.000000e+00> : vector<160x32xf32>
    %68 = tpu.matmul %65, %67, %cst_75 {dimension_numbers = #tpu.dot_dimension_numbers<[1], [0], [0], [1], [0, 0, 1, 1], [], []>} : vector<160x96xbf16>, vector<96x32xbf16>, vector<160x32xf32> -> vector<160x32xf32>
    %c1_76 = arith.constant 1 : index
    %c7_77 = arith.constant 7 : index
    %c0_78 = arith.constant 0 : index
    %69 = vector.load %arg13[%c1_76, %c7_77, %c0_78] : memref<14x32x32xbf16, #tpu.memory_space<vmem>>, vector<10x16x32xbf16>
    %c1_79 = arith.constant 1 : index
    %c8_80 = arith.constant 8 : index
    %c0_81 = arith.constant 0 : index
    %70 = vector.load %arg13[%c1_79, %c8_80, %c0_81] : memref<14x32x32xbf16, #tpu.memory_space<vmem>>, vector<10x16x32xbf16>
    %c1_82 = arith.constant 1 : index
    %c9_83 = arith.constant 9 : index
    %c0_84 = arith.constant 0 : index
    %71 = vector.load %arg13[%c1_82, %c9_83, %c0_84] : memref<14x32x32xbf16, #tpu.memory_space<vmem>>, vector<10x16x32xbf16>
    %72 = tpu.concatenate %69, %70, %71 in 2 : vector<10x16x32xbf16>, vector<10x16x32xbf16>, vector<10x16x32xbf16> -> vector<10x16x96xbf16>
    %73 = vector.shape_cast %72 : vector<10x16x96xbf16> to vector<160x96xbf16>
    %c1_85 = arith.constant 1 : index
    %c0_86 = arith.constant 0 : index
    %c0_87 = arith.constant 0 : index
    %74 = vector.load %arg8[%c1_85, %c0_86, %c0_87] : memref<3x96x32xbf16, #tpu.memory_space<vmem>>, vector<1x96x32xbf16>
    %75 = vector.shape_cast %74 : vector<1x96x32xbf16> to vector<96x32xbf16>
    %cst_88 = arith.constant dense<0.000000e+00> : vector<160x32xf32>
    %76 = tpu.matmul %73, %75, %cst_88 {dimension_numbers = #tpu.dot_dimension_numbers<[1], [0], [0], [1], [0, 0, 1, 1], [], []>} : vector<160x96xbf16>, vector<96x32xbf16>, vector<160x32xf32> -> vector<160x32xf32>
    %77 = arith.addf %68, %76 : vector<160x32xf32>
    %c2_89 = arith.constant 2 : index
    %c7_90 = arith.constant 7 : index
    %c0_91 = arith.constant 0 : index
    %78 = vector.load %arg13[%c2_89, %c7_90, %c0_91] : memref<14x32x32xbf16, #tpu.memory_space<vmem>>, vector<10x16x32xbf16>
    %c2_92 = arith.constant 2 : index
    %c8_93 = arith.constant 8 : index
    %c0_94 = arith.constant 0 : index
    %79 = vector.load %arg13[%c2_92, %c8_93, %c0_94] : memref<14x32x32xbf16, #tpu.memory_space<vmem>>, vector<10x16x32xbf16>
    %c2_95 = arith.constant 2 : index
    %c9_96 = arith.constant 9 : index
    %c0_97 = arith.constant 0 : index
    %80 = vector.load %arg13[%c2_95, %c9_96, %c0_97] : memref<14x32x32xbf16, #tpu.memory_space<vmem>>, vector<10x16x32xbf16>
    %81 = tpu.concatenate %78, %79, %80 in 2 : vector<10x16x32xbf16>, vector<10x16x32xbf16>, vector<10x16x32xbf16> -> vector<10x16x96xbf16>
    %82 = vector.shape_cast %81 : vector<10x16x96xbf16> to vector<160x96xbf16>
    %c2_98 = arith.constant 2 : index
    %c0_99 = arith.constant 0 : index
    %c0_100 = arith.constant 0 : index
    %83 = vector.load %arg8[%c2_98, %c0_99, %c0_100] : memref<3x96x32xbf16, #tpu.memory_space<vmem>>, vector<1x96x32xbf16>
    %84 = vector.shape_cast %83 : vector<1x96x32xbf16> to vector<96x32xbf16>
    %cst_101 = arith.constant dense<0.000000e+00> : vector<160x32xf32>
    %85 = tpu.matmul %82, %84, %cst_101 {dimension_numbers = #tpu.dot_dimension_numbers<[1], [0], [0], [1], [0, 0, 1, 1], [], []>} : vector<160x96xbf16>, vector<96x32xbf16>, vector<160x32xf32> -> vector<160x32xf32>
    %86 = arith.addf %77, %85 : vector<160x32xf32>
    %c0_102 = arith.constant 0 : index
    %c0_103 = arith.constant 0 : index
    %87 = vector.load %arg9[%c0_102, %c0_103] : memref<1x32xf32, #tpu.memory_space<vmem>>, vector<1x32xf32>
    %88 = vector.broadcast %87 : vector<1x32xf32> to vector<160x32xf32>
    %89 = arith.addf %86, %88 : vector<160x32xf32>
    %cst_104 = arith.constant 0.000000e+00 : f32
    %90 = vector.broadcast %cst_104 : f32 to vector<160x32xf32>
    %91 = arith.maximumf %89, %90 : vector<160x32xf32>
    %92 = vector.shape_cast %91 : vector<160x32xf32> to vector<10x16x32xf32>
    %93 = arith.truncf %92 : vector<10x16x32xf32> to vector<10x16x32xbf16>
    %c0_105 = arith.constant 0 : index
    %c8_106 = arith.constant 8 : index
    %c0_107 = arith.constant 0 : index
    %94 = vector.load %arg13[%c0_105, %c8_106, %c0_107] : memref<14x32x32xbf16, #tpu.memory_space<vmem>>, vector<10x16x32xbf16>
    tpu.vector_store %arg13[%c0_105, %c8_106, %c0_107], %93 {strides = array<i32>} : memref<14x32x32xbf16, #tpu.memory_space<vmem>>, vector<10x16x32xbf16>,
    %c0_i32_108 = arith.constant 0 : i32
    %95 = arith.cmpi eq, %arg1, %c0_i32_108 : i32
    %96 = arith.extui %95 : i1 to i32
    %c0_i32_109 = arith.constant 0 : i32
    %97 = arith.cmpi ne, %96, %c0_i32_109 : i32
    scf.if %97 {
      %cst_173 = arith.constant 0.000000e+00 : bf16
      %188 = vector.broadcast %cst_173 : bf16 to vector<1x16x32xbf16>
      %c0_174 = arith.constant 0 : index
      %c8_175 = arith.constant 8 : index
      %c0_176 = arith.constant 0 : index
      %189 = vector.load %arg13[%c0_174, %c8_175, %c0_176] : memref<14x32x32xbf16, #tpu.memory_space<vmem>>, vector<1x16x32xbf16>
      tpu.vector_store %arg13[%c0_174, %c8_175, %c0_176], %188 {strides = array<i32>} : memref<14x32x32xbf16, #tpu.memory_space<vmem>>, vector<1x16x32xbf16>,
    } else {
    }
    %c1_i32_110 = arith.constant 1 : i32
    %98 = arith.cmpi eq, %arg1, %c1_i32_110 : i32
    %99 = arith.extui %98 : i1 to i32
    %c0_i32_111 = arith.constant 0 : i32
    %100 = arith.cmpi ne, %99, %c0_i32_111 : i32
    scf.if %100 {
      %cst_173 = arith.constant 0.000000e+00 : bf16
      %188 = vector.broadcast %cst_173 : bf16 to vector<1x16x32xbf16>
      %c9_174 = arith.constant 9 : index
      %c8_175 = arith.constant 8 : index
      %c0_176 = arith.constant 0 : index
      %189 = vector.load %arg13[%c9_174, %c8_175, %c0_176] : memref<14x32x32xbf16, #tpu.memory_space<vmem>>, vector<1x16x32xbf16>
      tpu.vector_store %arg13[%c9_174, %c8_175, %c0_176], %188 {strides = array<i32>} : memref<14x32x32xbf16, #tpu.memory_space<vmem>>, vector<1x16x32xbf16>,
    } else {
    }
    %c0_112 = arith.constant 0 : index
    %c7_113 = arith.constant 7 : index
    %c0_114 = arith.constant 0 : index
    %101 = vector.load %arg13[%c0_112, %c7_113, %c0_114] : memref<14x32x32xbf16, #tpu.memory_space<vmem>>, vector<8x16x32xbf16>
    %102 = arith.extf %101 : vector<8x16x32xbf16> to vector<8x16x32xf32>
    %c0_115 = arith.constant 0 : index
    %c0_116 = arith.constant 0 : index
    %c0_117 = arith.constant 0 : index
    %103 = vector.load %arg10[%c0_115, %c0_116, %c0_117] : memref<9x1x32xf32, #tpu.memory_space<vmem>>, vector<1x1x32xf32>
    %104 = vector.shape_cast %103 : vector<1x1x32xf32> to vector<1x32xf32>
    %105 = vector.shape_cast %104 : vector<1x32xf32> to vector<1x1x32xf32>
    %106 = vector.broadcast %105 : vector<1x1x32xf32> to vector<8x16x32xf32>
    %107 = arith.mulf %102, %106 : vector<8x16x32xf32>
    %c0_118 = arith.constant 0 : index
    %c8_119 = arith.constant 8 : index
    %c0_120 = arith.constant 0 : index
    %108 = vector.load %arg13[%c0_118, %c8_119, %c0_120] : memref<14x32x32xbf16, #tpu.memory_space<vmem>>, vector<8x16x32xbf16>
    %109 = arith.extf %108 : vector<8x16x32xbf16> to vector<8x16x32xf32>
    %c1_121 = arith.constant 1 : index
    %c0_122 = arith.constant 0 : index
    %c0_123 = arith.constant 0 : index
    %110 = vector.load %arg10[%c1_121, %c0_122, %c0_123] : memref<9x1x32xf32, #tpu.memory_space<vmem>>, vector<1x1x32xf32>
    %111 = vector.shape_cast %110 : vector<1x1x32xf32> to vector<1x32xf32>
    %112 = vector.shape_cast %111 : vector<1x32xf32> to vector<1x1x32xf32>
    %113 = vector.broadcast %112 : vector<1x1x32xf32> to vector<8x16x32xf32>
    %114 = arith.mulf %109, %113 : vector<8x16x32xf32>
    %115 = arith.addf %107, %114 : vector<8x16x32xf32>
    %c0_124 = arith.constant 0 : index
    %c9_125 = arith.constant 9 : index
    %c0_126 = arith.constant 0 : index
    %116 = vector.load %arg13[%c0_124, %c9_125, %c0_126] : memref<14x32x32xbf16, #tpu.memory_space<vmem>>, vector<8x16x32xbf16>
    %117 = arith.extf %116 : vector<8x16x32xbf16> to vector<8x16x32xf32>
    %c2_127 = arith.constant 2 : index
    %c0_128 = arith.constant 0 : index
    %c0_129 = arith.constant 0 : index
    %118 = vector.load %arg10[%c2_127, %c0_128, %c0_129] : memref<9x1x32xf32, #tpu.memory_space<vmem>>, vector<1x1x32xf32>
    %119 = vector.shape_cast %118 : vector<1x1x32xf32> to vector<1x32xf32>
    %120 = vector.shape_cast %119 : vector<1x32xf32> to vector<1x1x32xf32>
    %121 = vector.broadcast %120 : vector<1x1x32xf32> to vector<8x16x32xf32>
    %122 = arith.mulf %117, %121 : vector<8x16x32xf32>
    %123 = arith.addf %115, %122 : vector<8x16x32xf32>
    %c1_130 = arith.constant 1 : index
    %c7_131 = arith.constant 7 : index
    %c0_132 = arith.constant 0 : index
    %124 = vector.load %arg13[%c1_130, %c7_131, %c0_132] : memref<14x32x32xbf16, #tpu.memory_space<vmem>>, vector<8x16x32xbf16>
    %125 = arith.extf %124 : vector<8x16x32xbf16> to vector<8x16x32xf32>
    %c3 = arith.constant 3 : index
    %c0_133 = arith.constant 0 : index
    %c0_134 = arith.constant 0 : index
    %126 = vector.load %arg10[%c3, %c0_133, %c0_134] : memref<9x1x32xf32, #tpu.memory_space<vmem>>, vector<1x1x32xf32>
    %127 = vector.shape_cast %126 : vector<1x1x32xf32> to vector<1x32xf32>
    %128 = vector.shape_cast %127 : vector<1x32xf32> to vector<1x1x32xf32>
    %129 = vector.broadcast %128 : vector<1x1x32xf32> to vector<8x16x32xf32>
    %130 = arith.mulf %125, %129 : vector<8x16x32xf32>
    %131 = arith.addf %123, %130 : vector<8x16x32xf32>
    %c1_135 = arith.constant 1 : index
    %c8_136 = arith.constant 8 : index
    %c0_137 = arith.constant 0 : index
    %132 = vector.load %arg13[%c1_135, %c8_136, %c0_137] : memref<14x32x32xbf16, #tpu.memory_space<vmem>>, vector<8x16x32xbf16>
    %133 = arith.extf %132 : vector<8x16x32xbf16> to vector<8x16x32xf32>
    %c4 = arith.constant 4 : index
    %c0_138 = arith.constant 0 : index
    %c0_139 = arith.constant 0 : index
    %134 = vector.load %arg10[%c4, %c0_138, %c0_139] : memref<9x1x32xf32, #tpu.memory_space<vmem>>, vector<1x1x32xf32>
    %135 = vector.shape_cast %134 : vector<1x1x32xf32> to vector<1x32xf32>
    %136 = vector.shape_cast %135 : vector<1x32xf32> to vector<1x1x32xf32>
    %137 = vector.broadcast %136 : vector<1x1x32xf32> to vector<8x16x32xf32>
    %138 = arith.mulf %133, %137 : vector<8x16x32xf32>
    %139 = arith.addf %131, %138 : vector<8x16x32xf32>
    %c1_140 = arith.constant 1 : index
    %c9_141 = arith.constant 9 : index
    %c0_142 = arith.constant 0 : index
    %140 = vector.load %arg13[%c1_140, %c9_141, %c0_142] : memref<14x32x32xbf16, #tpu.memory_space<vmem>>, vector<8x16x32xbf16>
    %141 = arith.extf %140 : vector<8x16x32xbf16> to vector<8x16x32xf32>
    %c5 = arith.constant 5 : index
    %c0_143 = arith.constant 0 : index
    %c0_144 = arith.constant 0 : index
    %142 = vector.load %arg10[%c5, %c0_143, %c0_144] : memref<9x1x32xf32, #tpu.memory_space<vmem>>, vector<1x1x32xf32>
    %143 = vector.shape_cast %142 : vector<1x1x32xf32> to vector<1x32xf32>
    %144 = vector.shape_cast %143 : vector<1x32xf32> to vector<1x1x32xf32>
    %145 = vector.broadcast %144 : vector<1x1x32xf32> to vector<8x16x32xf32>
    %146 = arith.mulf %141, %145 : vector<8x16x32xf32>
    %147 = arith.addf %139, %146 : vector<8x16x32xf32>
    %c2_145 = arith.constant 2 : index
    %c7_146 = arith.constant 7 : index
    %c0_147 = arith.constant 0 : index
    %148 = vector.load %arg13[%c2_145, %c7_146, %c0_147] : memref<14x32x32xbf16, #tpu.memory_space<vmem>>, vector<8x16x32xbf16>
    %149 = arith.extf %148 : vector<8x16x32xbf16> to vector<8x16x32xf32>
    %c6 = arith.constant 6 : index
    %c0_148 = arith.constant 0 : index
    %c0_149 = arith.constant 0 : index
    %150 = vector.load %arg10[%c6, %c0_148, %c0_149] : memref<9x1x32xf32, #tpu.memory_space<vmem>>, vector<1x1x32xf32>
    %151 = vector.shape_cast %150 : vector<1x1x32xf32> to vector<1x32xf32>
    %152 = vector.shape_cast %151 : vector<1x32xf32> to vector<1x1x32xf32>
    %153 = vector.broadcast %152 : vector<1x1x32xf32> to vector<8x16x32xf32>
    %154 = arith.mulf %149, %153 : vector<8x16x32xf32>
    %155 = arith.addf %147, %154 : vector<8x16x32xf32>
    %c2_150 = arith.constant 2 : index
    %c8_151 = arith.constant 8 : index
    %c0_152 = arith.constant 0 : index
    %156 = vector.load %arg13[%c2_150, %c8_151, %c0_152] : memref<14x32x32xbf16, #tpu.memory_space<vmem>>, vector<8x16x32xbf16>
    %157 = arith.extf %156 : vector<8x16x32xbf16> to vector<8x16x32xf32>
    %c7_153 = arith.constant 7 : index
    %c0_154 = arith.constant 0 : index
    %c0_155 = arith.constant 0 : index
    %158 = vector.load %arg10[%c7_153, %c0_154, %c0_155] : memref<9x1x32xf32, #tpu.memory_space<vmem>>, vector<1x1x32xf32>
    %159 = vector.shape_cast %158 : vector<1x1x32xf32> to vector<1x32xf32>
    %160 = vector.shape_cast %159 : vector<1x32xf32> to vector<1x1x32xf32>
    %161 = vector.broadcast %160 : vector<1x1x32xf32> to vector<8x16x32xf32>
    %162 = arith.mulf %157, %161 : vector<8x16x32xf32>
    %163 = arith.addf %155, %162 : vector<8x16x32xf32>
    %c2_156 = arith.constant 2 : index
    %c9_157 = arith.constant 9 : index
    %c0_158 = arith.constant 0 : index
    %164 = vector.load %arg13[%c2_156, %c9_157, %c0_158] : memref<14x32x32xbf16, #tpu.memory_space<vmem>>, vector<8x16x32xbf16>
    %165 = arith.extf %164 : vector<8x16x32xbf16> to vector<8x16x32xf32>
    %c8_159 = arith.constant 8 : index
    %c0_160 = arith.constant 0 : index
    %c0_161 = arith.constant 0 : index
    %166 = vector.load %arg10[%c8_159, %c0_160, %c0_161] : memref<9x1x32xf32, #tpu.memory_space<vmem>>, vector<1x1x32xf32>
    %167 = vector.shape_cast %166 : vector<1x1x32xf32> to vector<1x32xf32>
    %168 = vector.shape_cast %167 : vector<1x32xf32> to vector<1x1x32xf32>
    %169 = vector.broadcast %168 : vector<1x1x32xf32> to vector<8x16x32xf32>
    %170 = arith.mulf %165, %169 : vector<8x16x32xf32>
    %171 = arith.addf %163, %170 : vector<8x16x32xf32>
    %cst_162 = arith.constant dense<0.000000e+00> : vector<8x16xf32>
    %172 = vector.multi_reduction <add>, %171, %cst_162 [2] : vector<8x16x32xf32> to vector<8x16xf32>
    %c0_163 = arith.constant 0 : index
    %c0_164 = arith.constant 0 : index
    %173 = vector.load %arg11[%c0_163, %c0_164] : memref<1x1xf32, #tpu.memory_space<vmem>>, vector<1x1xf32>
    %174 = vector.broadcast %173 : vector<1x1xf32> to vector<8x16xf32>
    %175 = arith.addf %172, %174 : vector<8x16xf32>
    %c0_165 = arith.constant 0 : index
    %c0_166 = arith.constant 0 : index
    %c0_167 = arith.constant 0 : index
    %176 = vector.load %arg3[%c0_165, %c0_166, %c0_167] : memref<1x8x16xf32, #tpu.memory_space<vmem>>, vector<1x8x16xf32>
    %177 = vector.shape_cast %176 : vector<1x8x16xf32> to vector<8x16xf32>
    %178 = arith.addf %177, %175 : vector<8x16xf32>
    %cst_168 = arith.constant 0.000000e+00 : f32
    %179 = vector.broadcast %cst_168 : f32 to vector<8x16xf32>
    %180 = arith.subf %179, %178 : vector<8x16xf32>
    %181 = math.exp %180 : vector<8x16xf32>
    %cst_169 = arith.constant 1.000000e+00 : f32
    %182 = vector.broadcast %cst_169 : f32 to vector<8x16xf32>
    %183 = arith.addf %182, %181 : vector<8x16xf32>
    %184 = tpu.reciprocal %183 {approx = true} : vector<8x16xf32> -> vector<8x16xf32>
    %c0_170 = arith.constant 0 : index
    %c0_171 = arith.constant 0 : index
    %c0_172 = arith.constant 0 : index
    %185 = vector.load %arg12[%c0_170, %c0_171, %c0_172] : memref<1x8x16xf32, #tpu.memory_space<vmem>>, vector<1x8x16xf32>
    %186 = vector.shape_cast %185 : vector<1x8x16xf32> to vector<8x16xf32>
    %187 = vector.shape_cast %184 : vector<8x16xf32> to vector<1x8x16xf32>
    tpu.vector_store %arg12[%c0_170, %c0_171, %c0_172], %187 {strides = array<i32>} : memref<1x8x16xf32, #tpu.memory_space<vmem>>, vector<1x8x16xf32>,
    return
  }
  func.func @transform_0(%arg0: i32, %arg1: i32) -> (i32, i32, i32, i32) {
    %c0_i32 = arith.constant 0 : i32
    %c0_i32_0 = arith.constant 0 : i32
    %c0_i32_1 = arith.constant 0 : i32
    return %arg0, %arg1, %c0_i32, %c0_i32_0 : i32, i32, i32, i32
  }
  func.func @transform_1(%arg0: i32, %arg1: i32) -> (i32, i32, i32) {
    %c0_i32 = arith.constant 0 : i32
    %c0_i32_0 = arith.constant 0 : i32
    return %arg0, %arg1, %c0_i32 : i32, i32, i32
  }
  func.func @transform_2(%arg0: i32, %arg1: i32) -> (i32, i32) {
    %c0_i32 = arith.constant 0 : i32
    %c0_i32_0 = arith.constant 0 : i32
    %c0_i32_1 = arith.constant 0 : i32
    return %c0_i32, %c0_i32_0 : i32, i32
  }
  func.func @transform_3(%arg0: i32, %arg1: i32) -> (i32, i32) {
    %c0_i32 = arith.constant 0 : i32
    %c0_i32_0 = arith.constant 0 : i32
    %c0_i32_1 = arith.constant 0 : i32
    return %c0_i32, %c0_i32_0 : i32, i32
  }
  func.func @transform_4(%arg0: i32, %arg1: i32) -> (i32, i32, i32) {
    %c0_i32 = arith.constant 0 : i32
    %c0_i32_0 = arith.constant 0 : i32
    %c0_i32_1 = arith.constant 0 : i32
    %c0_i32_2 = arith.constant 0 : i32
    return %c0_i32, %c0_i32_0, %c0_i32_1 : i32, i32, i32
  }
  func.func @transform_5(%arg0: i32, %arg1: i32) -> (i32, i32) {
    %c0_i32 = arith.constant 0 : i32
    %c0_i32_0 = arith.constant 0 : i32
    %c0_i32_1 = arith.constant 0 : i32
    return %c0_i32, %c0_i32_0 : i32, i32
  }
  func.func @transform_6(%arg0: i32, %arg1: i32) -> (i32, i32, i32) {
    %c0_i32 = arith.constant 0 : i32
    %c0_i32_0 = arith.constant 0 : i32
    %c0_i32_1 = arith.constant 0 : i32
    %c0_i32_2 = arith.constant 0 : i32
    return %c0_i32, %c0_i32_0, %c0_i32_1 : i32, i32, i32
  }
  func.func @transform_7(%arg0: i32, %arg1: i32) -> (i32, i32) {
    %c0_i32 = arith.constant 0 : i32
    %c0_i32_0 = arith.constant 0 : i32
    %c0_i32_1 = arith.constant 0 : i32
    return %c0_i32, %c0_i32_0 : i32, i32
  }
  func.func @transform_8(%arg0: i32, %arg1: i32) -> (i32, i32, i32) {
    %c0_i32 = arith.constant 0 : i32
    %c0_i32_0 = arith.constant 0 : i32
    %c0_i32_1 = arith.constant 0 : i32
    %c0_i32_2 = arith.constant 0 : i32
    return %c0_i32, %c0_i32_0, %c0_i32_1 : i32, i32, i32
  }
  func.func @transform_9(%arg0: i32, %arg1: i32) -> (i32, i32) {
    %c0_i32 = arith.constant 0 : i32
    %c0_i32_0 = arith.constant 0 : i32
    %c0_i32_1 = arith.constant 0 : i32
    return %c0_i32, %c0_i32_0 : i32, i32
  }
  func.func @transform_10(%arg0: i32, %arg1: i32) -> (i32, i32, i32) {
    %c0_i32 = arith.constant 0 : i32
    %c0_i32_0 = arith.constant 0 : i32
    return %arg0, %arg1, %c0_i32 : i32, i32, i32
  }
}

</mosaic_0001>

<llo_original>
// kernel: plain_refiner_pallas.1
$region0: #{plain_refiner_pallas.1}
  #allocation0 [shape = 'u32[]', space=smem, size = 0x4, offset = 0x4, fixed_abs, tag = 'smem constant byte address 0x4 - core index']
  #allocation1 [shape = 'u32[72,128]{1,0:T(1,128)}', space=vmem, size = 0x9000, scoped, tag = 'internal scratch']
  #allocation2 [shape = 'bf16[14,32,32]{2,1,0:T(8,128)(2,1)}', space=vmem, size = 0x1c000, scoped, tag = 'scratch operand']
  #allocation3 [shape = 'f32[1,1]{1,0:T(1,128)S(1)}', space=vmem, size = 0x200, scoped, tag = 'scoped memory for plain_refiner_pallas.1']
  %s0 = inlined_call_operand.vmem [shape: bf16[2,2,224,36], index: 0, kind: input, shape index: {}]
  %s1 = inlined_call_operand.vmem [shape: f32[2,16,16], index: 1, kind: input, shape index: {}]
  %s2 = inlined_call_operand.vmem [shape: bf16[36,32], index: 2, kind: input, shape index: {}]
  %s3 = inlined_call_operand.vmem [shape: f32[1,32], index: 3, kind: input, shape index: {}]
  %s4 = inlined_call_operand.vmem [shape: bf16[3,96,32], index: 4, kind: input, shape index: {}]
  %s5 = inlined_call_operand.vmem [shape: f32[1,32], index: 5, kind: input, shape index: {}]
  %s6 = inlined_call_operand.vmem [shape: bf16[3,96,32], index: 6, kind: input, shape index: {}]
  %s7 = inlined_call_operand.vmem [shape: f32[1,32], index: 7, kind: input, shape index: {}]
  %s8 = inlined_call_operand.vmem [shape: f32[9,1,32], index: 8, kind: input, shape index: {}]
  %s9 = inlined_call_operand.<no memory space> [shape: f32[1,1], index: 9, kind: input, shape index: {}]
  %s10 = inlined_call_operand.hbm [shape: f32[2,16,16], index: 10, kind: output, shape index: {}]
  %s11 = sld [smem:[#allocation0]]
  $region97: #{plain_refiner_pallas.1} parent=0
    _
  %s13 = ssub.s32 1, %s11
  %s14 = scalar_select 0, %s13, %s11
  %v15 = vstv %s9
  %16 = vst [vmem:[#allocation3] sm:$0x1] %v15
  $region1: #{plain_refiner_pallas.1} parent=0
    #allocation4 [shape = 'u8[8192]{0}', space=vmem, size = 0x2000, scoped, tag = 'output window, operand 0']
    #allocation5 [shape = 's32[2]{0}', space=sflag, size = 0x8, scoped, tag = 'scoped memory for plain_refiner_pallas.1']
    %17 = vsyncpa [#allocation5], 0
    %s18 = scalar_lea.sflag [#allocation5], 1
    %19 = vsyncpa %s18, 0
    loop: start=0, step=1, limit=6
    $region2: #{plain_refiner_pallas.1} parent=1 // loop_pre_header
      _
    $region3: #{plain_refiner_pallas.1} parent=1 // loop_header
      %s21 = sphi 0, %s25
      %p22 = scmp.ge.s32.totalorder %s21, 6
      %s28 = sphi 0, %s40
      %s29 = sphi 0, %s36
      %s30 = sphi 0, %s28
      %s31 = sphi 0, %s29
      %s32 = sphi 0, %s30
      %s33 = sphi 0, %s31
      %s45 = sphi 0, %s47
      %s48 = sphi 0, %s45
      %s49 = sphi 0, %s48
      %s65 = sphi 0, %s49
      %s73 = sphi 0, %s75
      %s76 = sphi 0, %s73
      %s77 = sphi 0, %s76
      %s93 = sphi 0, %s77
      %s97 = sphi 0, %s97
      %s99 = sphi 0, %s97
      %s100 = sphi 0, %s99
      %s114 = sphi 0, %s100
      %s118 = sphi 0, %s118
      %s120 = sphi 0, %s118
      %s121 = sphi 0, %s120
      %s135 = sphi 0, %s121
      %s139 = sphi 0, %s139
      %s141 = sphi 0, %s139
      %s142 = sphi 0, %s141
      %s156 = sphi 0, %s142
      %s160 = sphi 0, %s160
      %s162 = sphi 0, %s160
      %s163 = sphi 0, %s162
      %s177 = sphi 0, %s163
      %s181 = sphi 0, %s181
      %s183 = sphi 0, %s181
      %s184 = sphi 0, %s183
      %s198 = sphi 0, %s184
      %s202 = sphi 0, %s202
      %s204 = sphi 0, %s202
      %s205 = sphi 0, %s204
      %s219 = sphi 0, %s205
      %s223 = sphi 0, %s223
      %s225 = sphi 0, %s223
      %s226 = sphi 0, %s225
      %s240 = sphi 0, %s226
      %s244 = sphi 0, %s244
      %s246 = sphi 0, %s244
      %s247 = sphi 0, %s246
      %s261 = sphi 0, %s247
      %s269 = sphi 0, %s271
      %s272 = sphi 0, %s269
      %s273 = sphi 0, %s272
      %s289 = sphi 0, %s273
    $region4: #{plain_refiner_pallas.1} parent=1 // loop_header_branch
      %24 = sbr.rel (%p22) target = $region8
    $region5: #{plain_refiner_pallas.1} parent=1 // loop_body
      %s26 = ssub.s32 %s21, 1
      %s27 = ssub.s32 %s21, 2
      %s34 = sadd.s32 1, %s29
      %p35 = scmp.ge.s32.totalorder %s34, 2
      %s36 = scalar_select %p35, 0, %s34
      %s37 = sadd.s32 1, %s28
      %s38 = scalar_select %p35, %s37, %s28
      %p39 = scmp.ge.s32.totalorder %s38, 2
      %s40 = scalar_select %p39, 0, %s38
      %s41 = ssub.s32 %s28, %s40
      %s42 = ssub.s32 %s29, %s36
      %s43 = sor.u32 %s41, %s42
      %p44 = scmp.eq.s32.totalorder %s43, 0
      %s46 = sadd.s32 %s45, 1
      %s47 = scalar_select %p44, %s45, %s46
      %p50 = pneg %p44
      %p51 = scmp.eq.s32.totalorder %s21, 3
      %p52 = por %p50, %p51
      %p53 = scmp.ne.s32.totalorder %s45, %s48
      %p54 = scmp.eq.s32.totalorder %s21, 0
      %p55 = por %p53, %p54
      %p56 = scmp.ne.s32.totalorder %s45, %s48
      %p57 = scmp.eq.s32.totalorder %s26, 3
      %p58 = por %p56, %p57
      %p59 = scmp.ne.s32.totalorder %s48, %s49
      %p60 = scmp.eq.s32.totalorder %s26, 0
      %p61 = por %p59, %p60
      %p62 = scmp.ne.s32.totalorder %s48, %s49
      %p63 = scmp.eq.s32.totalorder %s27, 3
      %p64 = por %p62, %p63
      %p66 = scmp.ne.s32.totalorder %s49, %s65
      %p67 = scmp.eq.s32.totalorder %s27, 0
      %p68 = por %p66, %p67
      %s69 = ssub.s32 %s28, %s40
      %s70 = ssub.s32 %s29, %s36
      %s71 = sor.u32 %s69, %s70
      %p72 = scmp.eq.s32.totalorder %s71, 0
      %s74 = sadd.s32 %s73, 1
      %s75 = scalar_select %p72, %s73, %s74
      %p78 = pneg %p72
      %p79 = scmp.eq.s32.totalorder %s21, 3
      %p80 = por %p78, %p79
      %p81 = scmp.ne.s32.totalorder %s73, %s76
      %p82 = scmp.eq.s32.totalorder %s21, 0
      %p83 = por %p81, %p82
      %p84 = scmp.ne.s32.totalorder %s73, %s76
      %p85 = scmp.eq.s32.totalorder %s26, 3
      %p86 = por %p84, %p85
      %p87 = scmp.ne.s32.totalorder %s76, %s77
      %p88 = scmp.eq.s32.totalorder %s26, 0
      %p89 = por %p87, %p88
      %p90 = scmp.ne.s32.totalorder %s76, %s77
      %p91 = scmp.eq.s32.totalorder %s27, 3
      %p92 = por %p90, %p91
      %p94 = scmp.ne.s32.totalorder %s77, %s93
      %p95 = scmp.eq.s32.totalorder %s27, 0
      %p96 = por %p94, %p95
      %s98 = sadd.s32 %s97, 1
      %p101 = scmp.eq.s32.totalorder %s21, 3
      %p102 = scmp.ne.s32.totalorder %s97, %s99
      %p103 = scmp.eq.s32.totalorder %s21, 0
      %p104 = por %p102, %p103
      %p105 = scmp.ne.s32.totalorder %s97, %s99
      %p106 = scmp.eq.s32.totalorder %s26, 3
      %p107 = por %p105, %p106
      %p108 = scmp.ne.s32.totalorder %s99, %s100
      %p109 = scmp.eq.s32.totalorder %s26, 0
      %p110 = por %p108, %p109
      %p111 = scmp.ne.s32.totalorder %s99, %s100
      %p112 = scmp.eq.s32.totalorder %s27, 3
      %p113 = por %p111, %p112
      %p115 = scmp.ne.s32.totalorder %s100, %s114
      %p116 = scmp.eq.s32.totalorder %s27, 0
      %p117 = por %p115, %p116
      %s119 = sadd.s32 %s118, 1
      %p122 = scmp.eq.s32.totalorder %s21, 3
      %p123 = scmp.ne.s32.totalorder %s118, %s120
      %p124 = scmp.eq.s32.totalorder %s21, 0
      %p125 = por %p123, %p124
      %p126 = scmp.ne.s32.totalorder %s118, %s120
      %p127 = scmp.eq.s32.totalorder %s26, 3
      %p128 = por %p126, %p127
      %p129 = scmp.ne.s32.totalorder %s120, %s121
      %p130 = scmp.eq.s32.totalorder %s26, 0
      %p131 = por %p129, %p130
      %p132 = scmp.ne.s32.totalorder %s120, %s121
      %p133 = scmp.eq.s32.totalorder %s27, 3
      %p134 = por %p132, %p133
      %p136 = scmp.ne.s32.totalorder %s121, %s135
      %p137 = scmp.eq.s32.totalorder %s27, 0
      %p138 = por %p136, %p137
      %s140 = sadd.s32 %s139, 1
      %p143 = scmp.eq.s32.totalorder %s21, 3
      %p144 = scmp.ne.s32.totalorder %s139, %s141
      %p145 = scmp.eq.s32.totalorder %s21, 0
      %p146 = por %p144, %p145
      %p147 = scmp.ne.s32.totalorder %s139, %s141
      %p148 = scmp.eq.s32.totalorder %s26, 3
      %p149 = por %p147, %p148
      %p150 = scmp.ne.s32.totalorder %s141, %s142
      %p151 = scmp.eq.s32.totalorder %s26, 0
      %p152 = por %p150, %p151
      %p153 = scmp.ne.s32.totalorder %s141, %s142
      %p154 = scmp.eq.s32.totalorder %s27, 3
      %p155 = por %p153, %p154
      %p157 = scmp.ne.s32.totalorder %s142, %s156
      %p158 = scmp.eq.s32.totalorder %s27, 0
      %p159 = por %p157, %p158
      %s161 = sadd.s32 %s160, 1
      %p164 = scmp.eq.s32.totalorder %s21, 3
      %p165 = scmp.ne.s32.totalorder %s160, %s162
      %p166 = scmp.eq.s32.totalorder %s21, 0
      %p167 = por %p165, %p166
      %p168 = scmp.ne.s32.totalorder %s160, %s162
      %p169 = scmp.eq.s32.totalorder %s26, 3
      %p170 = por %p168, %p169
      %p171 = scmp.ne.s32.totalorder %s162, %s163
      %p172 = scmp.eq.s32.totalorder %s26, 0
      %p173 = por %p171, %p172
      %p174 = scmp.ne.s32.totalorder %s162, %s163
      %p175 = scmp.eq.s32.totalorder %s27, 3
      %p176 = por %p174, %p175
      %p178 = scmp.ne.s32.totalorder %s163, %s177
      %p179 = scmp.eq.s32.totalorder %s27, 0
      %p180 = por %p178, %p179
      %s182 = sadd.s32 %s181, 1
      %p185 = scmp.eq.s32.totalorder %s21, 3
      %p186 = scmp.ne.s32.totalorder %s181, %s183
      %p187 = scmp.eq.s32.totalorder %s21, 0
      %p188 = por %p186, %p187
      %p189 = scmp.ne.s32.totalorder %s181, %s183
      %p190 = scmp.eq.s32.totalorder %s26, 3
      %p191 = por %p189, %p190
      %p192 = scmp.ne.s32.totalorder %s183, %s184
      %p193 = scmp.eq.s32.totalorder %s26, 0
      %p194 = por %p192, %p193
      %p195 = scmp.ne.s32.totalorder %s183, %s184
      %p196 = scmp.eq.s32.totalorder %s27, 3
      %p197 = por %p195, %p196
      %p199 = scmp.ne.s32.totalorder %s184, %s198
      %p200 = scmp.eq.s32.totalorder %s27, 0
      %p201 = por %p199, %p200
      %s203 = sadd.s32 %s202, 1
      %p206 = scmp.eq.s32.totalorder %s21, 3
      %p207 = scmp.ne.s32.totalorder %s202, %s204
      %p208 = scmp.eq.s32.totalorder %s21, 0
      %p209 = por %p207, %p208
      %p210 = scmp.ne.s32.totalorder %s202, %s204
      %p211 = scmp.eq.s32.totalorder %s26, 3
      %p212 = por %p210, %p211
      %p213 = scmp.ne.s32.totalorder %s204, %s205
      %p214 = scmp.eq.s32.totalorder %s26, 0
      %p215 = por %p213, %p214
      %p216 = scmp.ne.s32.totalorder %s204, %s205
      %p217 = scmp.eq.s32.totalorder %s27, 3
      %p218 = por %p216, %p217
      %p220 = scmp.ne.s32.totalorder %s205, %s219
      %p221 = scmp.eq.s32.totalorder %s27, 0
      %p222 = por %p220, %p221
      %s224 = sadd.s32 %s223, 1
      %p227 = scmp.eq.s32.totalorder %s21, 3
      %p228 = scmp.ne.s32.totalorder %s223, %s225
      %p229 = scmp.eq.s32.totalorder %s21, 0
      %p230 = por %p228, %p229
      %p231 = scmp.ne.s32.totalorder %s223, %s225
      %p232 = scmp.eq.s32.totalorder %s26, 3
      %p233 = por %p231, %p232
      %p234 = scmp.ne.s32.totalorder %s225, %s226
      %p235 = scmp.eq.s32.totalorder %s26, 0
      %p236 = por %p234, %p235
      %p237 = scmp.ne.s32.totalorder %s225, %s226
      %p238 = scmp.eq.s32.totalorder %s27, 3
      %p239 = por %p237, %p238
      %p241 = scmp.ne.s32.totalorder %s226, %s240
      %p242 = scmp.eq.s32.totalorder %s27, 0
      %p243 = por %p241, %p242
      %s245 = sadd.s32 %s244, 1
      %p248 = scmp.eq.s32.totalorder %s21, 3
      %p249 = scmp.ne.s32.totalorder %s244, %s246
      %p250 = scmp.eq.s32.totalorder %s21, 0
      %p251 = por %p249, %p250
      %p252 = scmp.ne.s32.totalorder %s244, %s246
      %p253 = scmp.eq.s32.totalorder %s26, 3
      %p254 = por %p252, %p253
      %p255 = scmp.ne.s32.totalorder %s246, %s247
      %p256 = scmp.eq.s32.totalorder %s26, 0
      %p257 = por %p255, %p256
      %p258 = scmp.ne.s32.totalorder %s246, %s247
      %p259 = scmp.eq.s32.totalorder %s27, 3
      %p260 = por %p258, %p259
      %p262 = scmp.ne.s32.totalorder %s247, %s261
      %p263 = scmp.eq.s32.totalorder %s27, 0
      %p264 = por %p262, %p263
      %s265 = ssub.s32 %s28, %s40
      %s266 = ssub.s32 %s29, %s36
      %s267 = sor.u32 %s265, %s266
      %p268 = scmp.eq.s32.totalorder %s267, 0
      %s270 = sadd.s32 %s269, 1
      %s271 = scalar_select %p268, %s269, %s270
      %p274 = pneg %p268
      %p275 = scmp.eq.s32.totalorder %s21, 3
      %p276 = por %p274, %p275
      %p277 = scmp.ne.s32.totalorder %s269, %s272
      %p278 = scmp.eq.s32.totalorder %s21, 0
      %p279 = por %p277, %p278
      %p280 = scmp.ne.s32.totalorder %s269, %s272
      %p281 = scmp.eq.s32.totalorder %s26, 3
      %p282 = por %p280, %p281
      %p283 = scmp.ne.s32.totalorder %s272, %s273
      %p284 = scmp.eq.s32.totalorder %s26, 0
      %p285 = por %p283, %p284
      %p286 = scmp.ne.s32.totalorder %s272, %s273
      %p287 = scmp.eq.s32.totalorder %s27, 3
      %p288 = por %p286, %p287
      %p290 = scmp.ne.s32.totalorder %s273, %s289
      %p291 = scmp.eq.s32.totalorder %s27, 0
      %p292 = por %p290, %p291
      %p293 = scmp.le.s32.totalorder 1, %s21
      %p294 = scmp.lt.s32.totalorder %s21, 5
      %p295 = pnand %p293, %p294
      %p296 = pneg %p295
      // Predicated region
      $region9: #{plain_refiner_pallas.1} parent=5 // pred_check
        _
      $region10: #{plain_refiner_pallas.1} parent=5 // pred_check_branch
        %298 = sbr.rel (%p295) target = $region12
      $region11: #{plain_refiner_pallas.1} parent=5 // pred_region
        %s299 = ssub.s32 %s21, 1
        // Predicated region
        $region13: #{plain_refiner_pallas.1} parent=11 // pred_check
          %p300 = pneg %p110
        $region14: #{plain_refiner_pallas.1} parent=11 // pred_check_branch
          %302 = sbr.rel (%p300) target = $region16
        $region15: #{plain_refiner_pallas.1} parent=11 // pred_region
          _
        $region16: #{plain_refiner_pallas.1} parent=11 // pred_fallthru
          _
        // Predicated region
        $region17: #{plain_refiner_pallas.1} parent=11 // pred_check
          %p303 = pneg %p131
        $region18: #{plain_refiner_pallas.1} parent=11 // pred_check_branch
          %305 = sbr.rel (%p303) target = $region20
        $region19: #{plain_refiner_pallas.1} parent=11 // pred_region
          _
        $region20: #{plain_refiner_pallas.1} parent=11 // pred_fallthru
          _
        // Predicated region
        $region21: #{plain_refiner_pallas.1} parent=11 // pred_check
          %p306 = pneg %p152
        $region22: #{plain_refiner_pallas.1} parent=11 // pred_check_branch
          %308 = sbr.rel (%p306) target = $region24
        $region23: #{plain_refiner_pallas.1} parent=11 // pred_region
          _
        $region24: #{plain_refiner_pallas.1} parent=11 // pred_fallthru
          _
        // Predicated region
        $region25: #{plain_refiner_pallas.1} parent=11 // pred_check
          %p309 = pneg %p173
        $region26: #{plain_refiner_pallas.1} parent=11 // pred_check_branch
          %311 = sbr.rel (%p309) target = $region28
        $region27: #{plain_refiner_pallas.1} parent=11 // pred_region
          _
        $region28: #{plain_refiner_pallas.1} parent=11 // pred_fallthru
          _
        // Predicated region
        $region29: #{plain_refiner_pallas.1} parent=11 // pred_check
          %p312 = pneg %p194
        $region30: #{plain_refiner_pallas.1} parent=11 // pred_check_branch
          %314 = sbr.rel (%p312) target = $region32
        $region31: #{plain_refiner_pallas.1} parent=11 // pred_region
          _
        $region32: #{plain_refiner_pallas.1} parent=11 // pred_fallthru
          _
        // Predicated region
        $region33: #{plain_refiner_pallas.1} parent=11 // pred_check
          %p315 = pneg %p215
        $region34: #{plain_refiner_pallas.1} parent=11 // pred_check_branch
          %317 = sbr.rel (%p315) target = $region36
        $region35: #{plain_refiner_pallas.1} parent=11 // pred_region
          _
        $region36: #{plain_refiner_pallas.1} parent=11 // pred_fallthru
          _
        // Predicated region
        $region37: #{plain_refiner_pallas.1} parent=11 // pred_check
          %p318 = pneg %p236
        $region38: #{plain_refiner_pallas.1} parent=11 // pred_check_branch
          %320 = sbr.rel (%p318) target = $region40
        $region39: #{plain_refiner_pallas.1} parent=11 // pred_region
          _
        $region40: #{plain_refiner_pallas.1} parent=11 // pred_fallthru
          _
        // Predicated region
        $region41: #{plain_refiner_pallas.1} parent=11 // pred_check
          %p321 = pneg %p257
        $region42: #{plain_refiner_pallas.1} parent=11 // pred_check_branch
          %323 = sbr.rel (%p321) target = $region44
        $region43: #{plain_refiner_pallas.1} parent=11 // pred_region
          _
        $region44: #{plain_refiner_pallas.1} parent=11 // pred_fallthru
          _
      $region12: #{plain_refiner_pallas.1} parent=5 // pred_fallthru
        _
      %p324 = scmp.lt.s32.totalorder %s21, 4
      // Predicated region
      $region45: #{plain_refiner_pallas.1} parent=5 // pred_check
        %p325 = pneg %p324
      $region46: #{plain_refiner_pallas.1} parent=5 // pred_check_branch
        %327 = sbr.rel (%p325) target = $region48
      $region47: #{plain_refiner_pallas.1} parent=5 // pred_region
        // Predicated region
        $region49: #{plain_refiner_pallas.1} parent=47 // pred_check
          %p328 = pneg %p55
        $region50: #{plain_refiner_pallas.1} parent=47 // pred_check_branch
          %330 = sbr.rel (%p328) target = $region52
        $region51: #{plain_refiner_pallas.1} parent=47 // pred_region
          %p331 = scmp.lt.s32.totalorder %s28, 1
          %s332 = scalar_select %p331, %s28, 1
          %p333 = scmp.lt.s32.totalorder %s29, 1
          %s334 = scalar_select %p333, %s29, 1
          %s335 = smul.addr %s334, 28
          %s336 = smul.addr %s332, 56
          %s337 = sadd.s32 %s335, %s336
          %s338 = smul.addr %s337, 4
          %s339 = scalar_lea.vmem %s0, %s338
        $region52: #{plain_refiner_pallas.1} parent=47 // pred_fallthru
          _
        // Predicated region
        $region53: #{plain_refiner_pallas.1} parent=47 // pred_check
          %p340 = pneg %p83
        $region54: #{plain_refiner_pallas.1} parent=47 // pred_check_branch
          %342 = sbr.rel (%p340) target = $region56
        $region55: #{plain_refiner_pallas.1} parent=47 // pred_region
          %p343 = scmp.lt.s32.totalorder %s28, 1
          %s344 = scalar_select %p343, %s28, 1
          %p345 = scmp.lt.s32.totalorder %s29, 1
          %s346 = scalar_select %p345, %s29, 1
          %s347 = smul.addr %s344, 2
          %s348 = sadd.s32 %s346, %s347
          %s349 = smul.addr %s348, 8
          %s350 = scalar_lea.vmem %s1, %s349
        $region56: #{plain_refiner_pallas.1} parent=47 // pred_fallthru
          _
      $region48: #{plain_refiner_pallas.1} parent=5 // pred_fallthru
        _
      %p351 = scmp.le.s32.totalorder 1, %s21
      %p352 = scmp.lt.s32.totalorder %s21, 5
      %p353 = pnand %p351, %p352
      %p354 = pneg %p353
      // Predicated region
      $region57: #{plain_refiner_pallas.1} parent=5 // pred_check
        _
      $region58: #{plain_refiner_pallas.1} parent=5 // pred_check_branch
        %356 = sbr.rel (%p353) target = $region60
      $region59: #{plain_refiner_pallas.1} parent=5 // pred_region
        %s357 = ssub.s32 %s21, 1
        %p358 = scmp.lt.s32.totalorder %s30, 1
        %s359 = scalar_select %p358, %s30, 1
        %p360 = scmp.lt.s32.totalorder %s31, 1
        %s361 = scalar_select %p360, %s31, 1
        %s362 = smul.addr %s361, 28
        %s363 = smul.addr %s359, 56
        %s364 = sadd.s32 %s362, %s363
        %s365 = smul.addr %s364, 4
        %s366 = scalar_lea.vmem %s0, %s365
        %p367 = pneg %p61
        %p368 = pneg %p58
        %p369 = scmp.lt.s32.totalorder %s30, 1
        %s370 = scalar_select %p369, %s30, 1
        %p371 = scmp.lt.s32.totalorder %s31, 1
        %s372 = scalar_select %p371, %s31, 1
        %s373 = smul.addr %s370, 2
        %s374 = sadd.s32 %s372, %s373
        %s375 = smul.addr %s374, 8
        %s376 = scalar_lea.vmem %s1, %s375
        %p377 = pneg %p89
        %p378 = pneg %p86
        %p379 = pneg %p110
        %p380 = pneg %p107
        %p381 = pneg %p131
        %p382 = pneg %p128
        %p383 = pneg %p152
        %p384 = pneg %p149
        %p385 = pneg %p173
        %p386 = pneg %p170
        %p387 = pneg %p194
        %p388 = pneg %p191
        %p389 = pneg %p215
        %p390 = pneg %p212
        %p391 = pneg %p236
        %p392 = pneg %p233
        %p393 = pneg %p257
        %p394 = pneg %p254
        %p395 = pneg %p285
        %p396 = pneg %p282
        %s397 = sand.u32 %s272, 1
        %s398 = scalar_lea.sflag [#allocation5], %s397
        %s399 = sand.u32 %s272, 1
        %s400 = smul.addr %s399, 8
        %s401 = scalar_lea.vmem [#allocation4], %s400
        %p402 = scmp.lt.s32.totalorder %s30, 1
        %s403 = scalar_select %p402, %s30, 1
        %p404 = scmp.lt.s32.totalorder %s31, 1
        %s405 = scalar_select %p404, %s31, 1
        %s406 = smul.addr %s405, 28
        %s407 = smul.addr %s403, 56
        %s408 = sadd.s32 %s406, %s407
        %s409 = smul.addr %s408, 4
        %s410 = scalar_lea.vmem %s0, %s409
        %p411 = scmp.lt.s32.totalorder %s30, 1
        %s412 = scalar_select %p411, %s30, 1
        %p413 = scmp.lt.s32.totalorder %s31, 1
        %s414 = scalar_select %p413, %s31, 1
        %s415 = smul.addr %s412, 2
        %s416 = sadd.s32 %s414, %s415
        %s417 = smul.addr %s416, 8
        %s418 = scalar_lea.vmem %s1, %s417
        %vm420 = vcmask 257024
        %421 = vst.msk [vmem:[#allocation2] sm:$0xf] %vm420, 0
        %422 = vst.msk [vmem:[#allocation2 + $0x10] sm:$0xf] %vm420, 0
        %423 = vst.msk [vmem:[#allocation2 + $0x20] sm:$0xf] %vm420, 0
        %424 = vst.msk [vmem:[#allocation2 + $0x30] sm:$0xf] %vm420, 0
        %425 = vst.msk [vmem:[#allocation2 + $0x40] sm:$0xf] %vm420, 0
        %426 = vst.msk [vmem:[#allocation2 + $0x50] sm:$0xf] %vm420, 0
        %427 = vst.msk [vmem:[#allocation2 + $0x60] sm:$0xf] %vm420, 0
        %428 = vst.msk [vmem:[#allocation2 + $0x70] sm:$0xf] %vm420, 0
        %429 = vst.msk [vmem:[#allocation2 + $0x80] sm:$0xf] %vm420, 0
        %430 = vst.msk [vmem:[#allocation2 + $0x90] sm:$0xf] %vm420, 0
        %431 = vst.msk [vmem:[#allocation2 + $0xa0] sm:$0xf] %vm420, 0
        %432 = vst.msk [vmem:[#allocation2 + $0xb0] sm:$0xf] %vm420, 0
        %433 = vst.msk [vmem:[#allocation2 + $0xc0] sm:$0xf] %vm420, 0
        %434 = vst.msk [vmem:[#allocation2 + $0xd0] sm:$0xf] %vm420, 0
        %435 = vst.msk [vmem:[#allocation2 + $0xc] sm:$0xf] %vm420, 0
        %436 = vst.msk [vmem:[#allocation2 + $0x1c] sm:$0xf] %vm420, 0
        %437 = vst.msk [vmem:[#allocation2 + $0x2c] sm:$0xf] %vm420, 0
        %438 = vst.msk [vmem:[#allocation2 + $0x3c] sm:$0xf] %vm420, 0
        %439 = vst.msk [vmem:[#allocation2 + $0x4c] sm:$0xf] %vm420, 0
        %440 = vst.msk [vmem:[#allocation2 + $0x5c] sm:$0xf] %vm420, 0
        %441 = vst.msk [vmem:[#allocation2 + $0x6c] sm:$0xf] %vm420, 0
        %442 = vst.msk [vmem:[#allocation2 + $0x7c] sm:$0xf] %vm420, 0
        %443 = vst.msk [vmem:[#allocation2 + $0x8c] sm:$0xf] %vm420, 0
        %444 = vst.msk [vmem:[#allocation2 + $0x9c] sm:$0xf] %vm420, 0
        %445 = vst.msk [vmem:[#allocation2 + $0xac] sm:$0xf] %vm420, 0
        %446 = vst.msk [vmem:[#allocation2 + $0xbc] sm:$0xf] %vm420, 0
        %447 = vst.msk [vmem:[#allocation2 + $0xcc] sm:$0xf] %vm420, 0
        %448 = vst.msk [vmem:[#allocation2 + $0xdc] sm:$0xf] %vm420, 0
        %v449 = vld [vmem:[%s410] sm:$0xf]
        %v450 = vld [vmem:[%s410 + $0x4] sm:$0xf]
        %v451 = vld [vmem:[%s410 + $0x8] sm:$0xf]
        %v452 = vld [vmem:[%s410 + $0xc] sm:$0xf]
        %v453 = vld [vmem:[%s410 + $0x10] sm:$0xf]
        %v454 = vld [vmem:[%s410 + $0x14] sm:$0xf]
        %v455 = vld [vmem:[%s410 + $0x18] sm:$0xf]
        %v456 = vld [vmem:[%s410 + $0x1c] sm:$0xf]
        %v457 = vld [vmem:[%s410 + $0x20] sm:$0xf]
        %v458 = vld [vmem:[%s410 + $0x24] sm:$0xf]
        %v459 = vld [vmem:[%s410 + $0x28] sm:$0xf]
        %v460 = vld [vmem:[%s410 + $0x2c] sm:$0xf]
        %v461 = vld [vmem:[%s410 + $0x30] sm:$0xf]
        %v462 = vld [vmem:[%s410 + $0x34] sm:$0xf]
        %v463 = vld [vmem:[%s410 + $0x38] sm:$0xf]
        %v464 = vld [vmem:[%s410 + $0x3c] sm:$0xf]
        %v465 = vld [vmem:[%s410 + $0x40] sm:$0xf]
        %v466 = vld [vmem:[%s410 + $0x44] sm:$0xf]
        %v467 = vld [vmem:[%s410 + $0x48] sm:$0xf]
        %v468 = vld [vmem:[%s410 + $0x4c] sm:$0xf]
        %v469 = vld [vmem:[%s410 + $0x50] sm:$0xf]
        %v470 = vld [vmem:[%s410 + $0x54] sm:$0xf]
        %v471 = vld [vmem:[%s410 + $0x58] sm:$0xf]
        %v472 = vld [vmem:[%s410 + $0x5c] sm:$0xf]
        %v473 = vld [vmem:[%s410 + $0x60] sm:$0xf]
        %v474 = vld [vmem:[%s410 + $0x64] sm:$0xf]
        %v475 = vld [vmem:[%s410 + $0x68] sm:$0xf]
        %v476 = vld [vmem:[%s410 + $0x6c] sm:$0xf]
        %v477 = vld [vmem:[%s2] sm:$0xf]
        %v478 = vld [vmem:[%s2 + $0x4] sm:$0xf]
        %v479 = vld [vmem:[%s2 + $0x8] sm:$0xf]
        %v480 = vld [vmem:[%s2 + $0xc] sm:$0xf]
        %v481 = vld [vmem:[%s2 + $0x10] sm:$0x3]
        %v482 = vld [vmem:[%s3] sm:$0x1]
        %v484 = vperm.slane %v482, 0
        %v514 = vunpack.c.l.b16 %v449
        %v515 = vunpack.c.l.b16 %v450
        %v516 = vunpack.c.l.b16 %v451
        %v517 = vunpack.c.l.b16 %v452
        %v518 = vunpack.c.l.b16 %v453
        %v519 = vunpack.c.l.b16 %v454
        %v520 = vunpack.c.l.b16 %v455
        %v521 = vunpack.c.l.b16 %v456
        %v522 = vunpack.c.l.b16 %v457
        %v523 = vunpack.c.l.b16 %v458
        %v524 = vunpack.c.l.b16 %v459
        %v525 = vunpack.c.l.b16 %v460
        %v526 = vunpack.c.l.b16 %v461
        %v527 = vunpack.c.l.b16 %v462
        %v528 = vunpack.c.l.b16 %v463
        %v529 = vunpack.c.l.b16 %v464
        %v530 = vunpack.c.l.b16 %v465
        %v531 = vunpack.c.l.b16 %v466
        %v532 = vunpack.c.l.b16 %v467
        %v533 = vunpack.c.l.b16 %v468
        %v534 = vunpack.c.l.b16 %v469
        %v535 = vunpack.c.l.b16 %v470
        %v536 = vunpack.c.l.b16 %v471
        %v537 = vunpack.c.l.b16 %v472
        %v538 = vunpack.c.l.b16 %v473
        %v539 = vunpack.c.l.b16 %v474
        %v540 = vunpack.c.l.b16 %v475
        %v541 = vunpack.c.l.b16 %v476
        %v542 = vpack.c.b16 %v515, %v514
        %v543 = vpack.c.b16 %v517, %v516
        %v544 = vpack.c.b16 %v519, %v518
        %v545 = vpack.c.b16 %v521, %v520
        %v546 = vpack.c.b16 %v523, %v522
        %v547 = vpack.c.b16 %v525, %v524
        %v548 = vpack.c.b16 %v527, %v526
        %v549 = vpack.c.b16 %v529, %v528
        %v550 = vpack.c.b16 %v531, %v530
        %v551 = vpack.c.b16 %v533, %v532
        %v552 = vpack.c.b16 %v535, %v534
        %v553 = vpack.c.b16 %v537, %v536
        %v554 = vpack.c.b16 %v539, %v538
        %v555 = vpack.c.b16 %v541, %v540
        %v561 = vunpack.c.l.b16 %v477
        %v562 = vunpack.c.l.b16 %v478
        %v563 = vunpack.c.l.b16 %v479
        %v564 = vunpack.c.l.b16 %v480
        %v565 = vunpack.c.l.b16 %v481
        %v566 = vpack.c.b16 %v562, %v561
        %v567 = vpack.c.b16 %v564, %v563
        %v568 = vpack.c.b16 %v565, %v565
        %vm571 = vcmask 293888
        %v573 = vsel %vm571, %v542, 0
        %v576 = vsel %vm571, %v543, 0
        %v579 = vsel %vm571, %v544, 0
        %v582 = vsel %vm571, %v545, 0
        %v585 = vsel %vm571, %v546, 0
        %v588 = vsel %vm571, %v547, 0
        %v591 = vsel %vm571, %v548, 0
        %v594 = vsel %vm571, %v549, 0
        %v597 = vsel %vm571, %v550, 0
        %v600 = vsel %vm571, %v551, 0
        %v603 = vsel %vm571, %v552, 0
        %v606 = vsel %vm571, %v553, 0
        %v609 = vsel %vm571, %v554, 0
        %v612 = vsel %vm571, %v555, 0
        %vm614 = vcmask 1041408
        %v616 = vsel %vm614, %v568, 0
        %618 = vmatpush.bf16.msra.mxu0 0
        %619 = vmatpush.bf16.msra.mxu0 0
        %620 = vmatpush.bf16.msra.mxu0 0
        %621 = vmatpush.bf16.msra.mxu0 0
        %622 = vmatpush.bf16.msra.mxu0 0
        %623 = vmatpush.bf16.msra.mxu0 %v616
        %624 = vmatpush.bf16.msra.mxu0 %v567
        %625 = vmatpush.bf16.msra.mxu0 %v566
        %626 = vmatmul.bf16.gmra.mxu0 %v573
        %v627 = vpop.f32.mrf.mxu0
        %v628 = vadd.f32 %v484, %v627
        %v629 = vpop.f32.mrf.mxu0
        %v630 = vadd.f32 %v484, %v629
        %631 = vmatmul.bf16.gmra.mxu0 %v576
        %v632 = vpop.f32.mrf.mxu0
        %v633 = vadd.f32 %v484, %v632
        %v634 = vpop.f32.mrf.mxu0
        %v635 = vadd.f32 %v484, %v634
        %636 = vmatmul.bf16.gmra.mxu0 %v579
        %v637 = vpop.f32.mrf.mxu0
        %v638 = vadd.f32 %v484, %v637
        %v639 = vpop.f32.mrf.mxu0
        %v640 = vadd.f32 %v484, %v639
        %641 = vmatmul.bf16.gmra.mxu0 %v582
        %v642 = vpop.f32.mrf.mxu0
        %v643 = vadd.f32 %v484, %v642
        %v644 = vpop.f32.mrf.mxu0
        %v645 = vadd.f32 %v484, %v644
        %646 = vmatmul.bf16.gmra.mxu0 %v585
        %v647 = vpop.f32.mrf.mxu0
        %v648 = vadd.f32 %v484, %v647
        %v649 = vpop.f32.mrf.mxu0
        %v650 = vadd.f32 %v484, %v649
        %651 = vmatmul.bf16.gmra.mxu0 %v588
        %v652 = vpop.f32.mrf.mxu0
        %v653 = vadd.f32 %v484, %v652
        %v654 = vpop.f32.mrf.mxu0
        %v655 = vadd.f32 %v484, %v654
        %656 = vmatmul.bf16.gmra.mxu0 %v591
        %v657 = vpop.f32.mrf.mxu0
        %v658 = vadd.f32 %v484, %v657
        %v659 = vpop.f32.mrf.mxu0
        %v660 = vadd.f32 %v484, %v659
        %661 = vmatmul.bf16.gmra.mxu0 %v594
        %v662 = vpop.f32.mrf.mxu0
        %v663 = vadd.f32 %v484, %v662
        %v664 = vpop.f32.mrf.mxu0
        %v665 = vadd.f32 %v484, %v664
        %666 = vmatmul.bf16.gmra.mxu0 %v597
        %v667 = vpop.f32.mrf.mxu0
        %v668 = vadd.f32 %v484, %v667
        %v669 = vpop.f32.mrf.mxu0
        %v670 = vadd.f32 %v484, %v669
        %671 = vmatmul.bf16.gmra.mxu0 %v600
        %v672 = vpop.f32.mrf.mxu0
        %v673 = vadd.f32 %v484, %v672
        %v674 = vpop.f32.mrf.mxu0
        %v675 = vadd.f32 %v484, %v674
        %676 = vmatmul.bf16.gmra.mxu0 %v603
        %v677 = vpop.f32.mrf.mxu0
        %v678 = vadd.f32 %v484, %v677
        %v679 = vpop.f32.mrf.mxu0
        %v680 = vadd.f32 %v484, %v679
        %681 = vmatmul.bf16.gmra.mxu0 %v606
        %v682 = vpop.f32.mrf.mxu0
        %v683 = vadd.f32 %v484, %v682
        %v684 = vpop.f32.mrf.mxu0
        %v685 = vadd.f32 %v484, %v684
        %686 = vmatmul.bf16.gmra.mxu0 %v609
        %v687 = vpop.f32.mrf.mxu0
        %v688 = vadd.f32 %v484, %v687
        %v689 = vpop.f32.mrf.mxu0
        %v690 = vadd.f32 %v484, %v689
        %691 = vmatmul.bf16.gmra.mxu0 %v612
        %v692 = vpop.f32.mrf.mxu0
        %v693 = vadd.f32 %v484, %v692
        %v694 = vpop.f32.mrf.mxu0
        %v695 = vadd.f32 %v484, %v694
        %696 = vdwg.mxu0
        %v697 = vmax.f32 %v628, 0.0
        %v698 = vmax.f32 %v630, 0.0
        %v699 = vmax.f32 %v633, 0.0
        %v700 = vmax.f32 %v635, 0.0
        %v701 = vmax.f32 %v638, 0.0
        %v702 = vmax.f32 %v640, 0.0
        %v703 = vmax.f32 %v643, 0.0
        %v704 = vmax.f32 %v645, 0.0
        %v705 = vmax.f32 %v648, 0.0
        %v706 = vmax.f32 %v650, 0.0
        %v707 = vmax.f32 %v653, 0.0
        %v708 = vmax.f32 %v655, 0.0
        %v709 = vmax.f32 %v658, 0.0
        %v710 = vmax.f32 %v660, 0.0
        %v711 = vmax.f32 %v663, 0.0
        %v712 = vmax.f32 %v665, 0.0
        %v713 = vmax.f32 %v668, 0.0
        %v714 = vmax.f32 %v670, 0.0
        %v715 = vmax.f32 %v673, 0.0
        %v716 = vmax.f32 %v675, 0.0
        %v717 = vmax.f32 %v678, 0.0
        %v718 = vmax.f32 %v680, 0.0
        %v719 = vmax.f32 %v683, 0.0
        %v720 = vmax.f32 %v685, 0.0
        %v721 = vmax.f32 %v688, 0.0
        %v722 = vmax.f32 %v690, 0.0
        %v723 = vmax.f32 %v693, 0.0
        %v724 = vmax.f32 %v695, 0.0
        %v725 = vpack.c.bf16 %v697, %v697
        %v726 = vpack.c.bf16 %v698, %v698
        %v727 = vpack.c.bf16 %v699, %v699
        %v728 = vpack.c.bf16 %v700, %v700
        %v729 = vpack.c.bf16 %v701, %v701
        %v730 = vpack.c.bf16 %v702, %v702
        %v731 = vpack.c.bf16 %v703, %v703
        %v732 = vpack.c.bf16 %v704, %v704
        %v733 = vpack.c.bf16 %v705, %v705
        %v734 = vpack.c.bf16 %v706, %v706
        %v735 = vpack.c.bf16 %v707, %v707
        %v736 = vpack.c.bf16 %v708, %v708
        %v737 = vpack.c.bf16 %v709, %v709
        %v738 = vpack.c.bf16 %v710, %v710
        %v739 = vpack.c.bf16 %v711, %v711
        %v740 = vpack.c.bf16 %v712, %v712
        %v741 = vpack.c.bf16 %v713, %v713
        %v742 = vpack.c.bf16 %v714, %v714
        %v743 = vpack.c.bf16 %v715, %v715
        %v744 = vpack.c.bf16 %v716, %v716
        %v745 = vpack.c.bf16 %v717, %v717
        %v746 = vpack.c.bf16 %v718, %v718
        %v747 = vpack.c.bf16 %v719, %v719
        %v748 = vpack.c.bf16 %v720, %v720
        %v749 = vpack.c.bf16 %v721, %v721
        %v750 = vpack.c.bf16 %v722, %v722
        %v751 = vpack.c.bf16 %v723, %v723
        %v752 = vpack.c.bf16 %v724, %v724
        %753 = vst.msk [vmem:[#allocation2 + $0x4] sm:$0xf] %vm420, %v725
        %754 = vst.msk [vmem:[#allocation2 + $0x8] sm:$0xf] %vm420, %v726
        %755 = vst.msk [vmem:[#allocation2 + $0x14] sm:$0xf] %vm420, %v727
        %756 = vst.msk [vmem:[#allocation2 + $0x18] sm:$0xf] %vm420, %v728
        %757 = vst.msk [vmem:[#allocation2 + $0x24] sm:$0xf] %vm420, %v729
        %758 = vst.msk [vmem:[#allocation2 + $0x28] sm:$0xf] %vm420, %v730
        %759 = vst.msk [vmem:[#allocation2 + $0x34] sm:$0xf] %vm420, %v731
        %760 = vst.msk [vmem:[#allocation2 + $0x38] sm:$0xf] %vm420, %v732
        %761 = vst.msk [vmem:[#allocation2 + $0x44] sm:$0xf] %vm420, %v733
        %762 = vst.msk [vmem:[#allocation2 + $0x48] sm:$0xf] %vm420, %v734
        %763 = vst.msk [vmem:[#allocation2 + $0x54] sm:$0xf] %vm420, %v735
        %764 = vst.msk [vmem:[#allocation2 + $0x58] sm:$0xf] %vm420, %v736
        %765 = vst.msk [vmem:[#allocation2 + $0x64] sm:$0xf] %vm420, %v737
        %766 = vst.msk [vmem:[#allocation2 + $0x68] sm:$0xf] %vm420, %v738
        %767 = vst.msk [vmem:[#allocation2 + $0x74] sm:$0xf] %vm420, %v739
        %768 = vst.msk [vmem:[#allocation2 + $0x78] sm:$0xf] %vm420, %v740
        %769 = vst.msk [vmem:[#allocation2 + $0x84] sm:$0xf] %vm420, %v741
        %770 = vst.msk [vmem:[#allocation2 + $0x88] sm:$0xf] %vm420, %v742
        %771 = vst.msk [vmem:[#allocation2 + $0x94] sm:$0xf] %vm420, %v743
        %772 = vst.msk [vmem:[#allocation2 + $0x98] sm:$0xf] %vm420, %v744
        %773 = vst.msk [vmem:[#allocation2 + $0xa4] sm:$0xf] %vm420, %v745
        %774 = vst.msk [vmem:[#allocation2 + $0xa8] sm:$0xf] %vm420, %v746
        %775 = vst.msk [vmem:[#allocation2 + $0xb4] sm:$0xf] %vm420, %v747
        %776 = vst.msk [vmem:[#allocation2 + $0xb8] sm:$0xf] %vm420, %v748
        %777 = vst.msk [vmem:[#allocation2 + $0xc4] sm:$0xf] %vm420, %v749
        %778 = vst.msk [vmem:[#allocation2 + $0xc8] sm:$0xf] %vm420, %v750
        %779 = vst.msk [vmem:[#allocation2 + $0xd4] sm:$0xf] %vm420, %v751
        %780 = vst.msk [vmem:[#allocation2 + $0xd8] sm:$0xf] %vm420, %v752
        %p781 = scmp.eq.s32.totalorder %s31, 0
        // Predicated region
        $region61: #{plain_refiner_pallas.1} parent=59 // pred_check
          %p782 = pneg %p781
        $region62: #{plain_refiner_pallas.1} parent=59 // pred_check_branch
          %784 = sbr.rel (%p782) target = $region64
        $region63: #{plain_refiner_pallas.1} parent=59 // pred_region
          %785 = vst.msk [vmem:[#allocation2 + $0x4] sm:$0xf] %vm420, 0
          %786 = vst.msk [vmem:[#allocation2 + $0x8] sm:$0xf] %vm420, 0
          %787 = vst.msk [vmem:[#allocation2 + $0x14] sm:$0xf] %vm420, 0
          %788 = vst.msk [vmem:[#allocation2 + $0x18] sm:$0xf] %vm420, 0
          %789 = vst.msk [vmem:[#allocation2 + $0x24] sm:$0xf] %vm420, 0
          %790 = vst.msk [vmem:[#allocation2 + $0x28] sm:$0xf] %vm420, 0
        $region64: #{plain_refiner_pallas.1} parent=59 // pred_fallthru
          _
        %p791 = scmp.eq.s32.totalorder %s31, 1
        // Predicated region
        $region65: #{plain_refiner_pallas.1} parent=59 // pred_check
          %p792 = pneg %p791
        $region66: #{plain_refiner_pallas.1} parent=59 // pred_check_branch
          %794 = sbr.rel (%p792) target = $region68
        $region67: #{plain_refiner_pallas.1} parent=59 // pred_region
          %s795 = scalar_lea.vmem [#allocation2], 176
          %796 = vst.msk [vmem:[%s795 + $0x4] sm:$0xf] %vm420, 0
          %797 = vst.msk [vmem:[%s795 + $0x8] sm:$0xf] %vm420, 0
          %798 = vst.msk [vmem:[%s795 + $0x14] sm:$0xf] %vm420, 0
          %799 = vst.msk [vmem:[%s795 + $0x18] sm:$0xf] %vm420, 0
          %800 = vst.msk [vmem:[%s795 + $0x24] sm:$0xf] %vm420, 0
          %801 = vst.msk [vmem:[%s795 + $0x28] sm:$0xf] %vm420, 0
        $region68: #{plain_refiner_pallas.1} parent=59 // pred_fallthru
          _
        %v802 = vld [vmem:[#allocation2] sm:$0x8]
        %v803 = vld [vmem:[#allocation2 + $0x4] sm:$0xf]
        %v804 = vld [vmem:[#allocation2 + $0x8] sm:$0xf]
        %v805 = vld [vmem:[#allocation2 + $0x10] sm:$0x8]
        %v806 = vld [vmem:[#allocation2 + $0x14] sm:$0xf]
        %v807 = vld [vmem:[#allocation2 + $0x18] sm:$0xf]
        %v808 = vld [vmem:[#allocation2 + $0x20] sm:$0x8]
        %v809 = vld [vmem:[#allocation2 + $0x24] sm:$0xf]
        %v810 = vld [vmem:[#allocation2 + $0x28] sm:$0xf]
        %v811 = vld [vmem:[#allocation2 + $0x30] sm:$0x8]
        %v812 = vld [vmem:[#allocation2 + $0x34] sm:$0xf]
        %v813 = vld [vmem:[#allocation2 + $0x38] sm:$0xf]
        %v814 = vld [vmem:[#allocation2 + $0x40] sm:$0x8]
        %v815 = vld [vmem:[#allocation2 + $0x44] sm:$0xf]
        %v816 = vld [vmem:[#allocation2 + $0x48] sm:$0xf]
        %v817 = vld [vmem:[#allocation2 + $0x50] sm:$0x8]
        %v818 = vld [vmem:[#allocation2 + $0x54] sm:$0xf]
        %v819 = vld [vmem:[#allocation2 + $0x58] sm:$0xf]
        %v820 = vld [vmem:[#allocation2 + $0x60] sm:$0x8]
        %v821 = vld [vmem:[#allocation2 + $0x64] sm:$0xf]
        %v822 = vld [vmem:[#allocation2 + $0x68] sm:$0xf]
        %v823 = vld [vmem:[#allocation2 + $0x70] sm:$0x8]
        %v824 = vld [vmem:[#allocation2 + $0x74] sm:$0xf]
        %v825 = vld [vmem:[#allocation2 + $0x78] sm:$0xf]
        %v826 = vld [vmem:[#allocation2 + $0x80] sm:$0x8]
        %v827 = vld [vmem:[#allocation2 + $0x84] sm:$0xf]
        %v828 = vld [vmem:[#allocation2 + $0x88] sm:$0xf]
        %v829 = vld [vmem:[#allocation2 + $0x90] sm:$0x8]
        %v830 = vld [vmem:[#allocation2 + $0x94] sm:$0xf]
        %v831 = vld [vmem:[#allocation2 + $0x98] sm:$0xf]
        %v832 = vld [vmem:[#allocation2 + $0xa0] sm:$0x8]
        %v833 = vld [vmem:[#allocation2 + $0xa4] sm:$0xf]
        %v834 = vld [vmem:[#allocation2 + $0xa8] sm:$0xf]
        %v835 = vld [vmem:[#allocation2 + $0xb0] sm:$0x8]
        %v836 = vld [vmem:[#allocation2 + $0xb4] sm:$0xf]
        %v837 = vld [vmem:[#allocation2 + $0xb8] sm:$0xf]
        %v838 = vld [vmem:[#allocation2 + $0xc] sm:$0x1]
        %v839 = vld [vmem:[#allocation2 + $0x1c] sm:$0x1]
        %v840 = vld [vmem:[#allocation2 + $0x2c] sm:$0x1]
        %v841 = vld [vmem:[#allocation2 + $0x3c] sm:$0x1]
        %v842 = vld [vmem:[#allocation2 + $0x4c] sm:$0x1]
        %v843 = vld [vmem:[#allocation2 + $0x5c] sm:$0x1]
        %v844 = vld [vmem:[#allocation2 + $0x6c] sm:$0x1]
        %v845 = vld [vmem:[#allocation2 + $0x7c] sm:$0x1]
        %v846 = vld [vmem:[#allocation2 + $0x8c] sm:$0x1]
        %v847 = vld [vmem:[#allocation2 + $0x9c] sm:$0x1]
        %v848 = vld [vmem:[#allocation2 + $0xac] sm:$0x1]
        %v849 = vld [vmem:[#allocation2 + $0xbc] sm:$0x1]
        %v886 = vunpack.c.l.b16 %v802
        %v887 = vunpack.c.l.b16 %v803
        %v888 = vunpack.c.l.b16 %v804
        %v889 = vunpack.c.l.b16 %v805
        %v890 = vunpack.c.l.b16 %v806
        %v891 = vunpack.c.l.b16 %v807
        %v892 = vunpack.c.l.b16 %v808
        %v893 = vunpack.c.l.b16 %v809
        %v894 = vunpack.c.l.b16 %v810
        %v895 = vunpack.c.l.b16 %v811
        %v896 = vunpack.c.l.b16 %v812
        %v897 = vunpack.c.l.b16 %v813
        %v898 = vunpack.c.l.b16 %v814
        %v899 = vunpack.c.l.b16 %v815
        %v900 = vunpack.c.l.b16 %v816
        %v901 = vunpack.c.l.b16 %v817
        %v902 = vunpack.c.l.b16 %v818
        %v903 = vunpack.c.l.b16 %v819
        %v904 = vunpack.c.l.b16 %v820
        %v905 = vunpack.c.l.b16 %v821
        %v906 = vunpack.c.l.b16 %v822
        %v907 = vunpack.c.l.b16 %v823
        %v908 = vunpack.c.l.b16 %v824
        %v909 = vunpack.c.l.b16 %v825
        %v910 = vunpack.c.l.b16 %v826
        %v911 = vunpack.c.l.b16 %v827
        %v912 = vunpack.c.l.b16 %v828
        %v913 = vunpack.c.l.b16 %v829
        %v914 = vunpack.c.l.b16 %v830
        %v915 = vunpack.c.l.b16 %v831
        %v916 = vunpack.c.l.b16 %v832
        %v917 = vunpack.c.l.b16 %v833
        %v918 = vunpack.c.l.b16 %v834
        %v919 = vunpack.c.l.b16 %v835
        %v920 = vunpack.c.l.b16 %v836
        %v921 = vunpack.c.l.b16 %v837
        %v922 = vpack.c.b16 %v887, %v886
        %v923 = vpack.c.b16 %v888, %v888
        %v924 = vpack.c.b16 %v890, %v889
        %v925 = vpack.c.b16 %v891, %v891
        %v926 = vpack.c.b16 %v893, %v892
        %v927 = vpack.c.b16 %v894, %v894
        %v928 = vpack.c.b16 %v896, %v895
        %v929 = vpack.c.b16 %v897, %v897
        %v930 = vpack.c.b16 %v899, %v898
        %v931 = vpack.c.b16 %v900, %v900
        %v932 = vpack.c.b16 %v902, %v901
        %v933 = vpack.c.b16 %v903, %v903
        %v934 = vpack.c.b16 %v905, %v904
        %v935 = vpack.c.b16 %v906, %v906
        %v936 = vpack.c.b16 %v908, %v907
        %v937 = vpack.c.b16 %v909, %v909
        %v938 = vpack.c.b16 %v911, %v910
        %v939 = vpack.c.b16 %v912, %v912
        %v940 = vpack.c.b16 %v914, %v913
        %v941 = vpack.c.b16 %v915, %v915
        %v942 = vpack.c.b16 %v917, %v916
        %v943 = vpack.c.b16 %v918, %v918
        %v944 = vpack.c.b16 %v920, %v919
        %v945 = vpack.c.b16 %v921, %v921
        %v946 = vpack.c.b16 %v888, %v887
        %v947 = vpack.c.b16 %v891, %v890
        %v948 = vpack.c.b16 %v894, %v893
        %v949 = vpack.c.b16 %v897, %v896
        %v950 = vpack.c.b16 %v900, %v899
        %v951 = vpack.c.b16 %v903, %v902
        %v952 = vpack.c.b16 %v906, %v905
        %v953 = vpack.c.b16 %v909, %v908
        %v954 = vpack.c.b16 %v912, %v911
        %v955 = vpack.c.b16 %v915, %v914
        %v956 = vpack.c.b16 %v918, %v917
        %v957 = vpack.c.b16 %v921, %v920
        %v959 = vshrl.u32 %v946, 16
        %v961 = vrot.slane %v959, 4
        %v962 = vshll.u32 %v946, 16
        %v964 = vrot.slane %v962, 5
        %v965 = vor.u32 %v961, %v964
        %v967 = vshrl.u32 %v947, 16
        %v969 = vrot.slane %v967, 4
        %v970 = vshll.u32 %v947, 16
        %v972 = vrot.slane %v970, 5
        %v973 = vor.u32 %v969, %v972
        %v975 = vshrl.u32 %v948, 16
        %v977 = vrot.slane %v975, 4
        %v978 = vshll.u32 %v948, 16
        %v980 = vrot.slane %v978, 5
        %v981 = vor.u32 %v977, %v980
        %v983 = vshrl.u32 %v949, 16
        %v985 = vrot.slane %v983, 4
        %v986 = vshll.u32 %v949, 16
        %v988 = vrot.slane %v986, 5
        %v989 = vor.u32 %v985, %v988
        %v991 = vshrl.u32 %v950, 16
        %v993 = vrot.slane %v991, 4
        %v994 = vshll.u32 %v950, 16
        %v996 = vrot.slane %v994, 5
        %v997 = vor.u32 %v993, %v996
        %v999 = vshrl.u32 %v951, 16
        %v1001 = vrot.slane %v999, 4
        %v1002 = vshll.u32 %v951, 16
        %v1004 = vrot.slane %v1002, 5
        %v1005 = vor.u32 %v1001, %v1004
        %v1007 = vshrl.u32 %v952, 16
        %v1009 = vrot.slane %v1007, 4
        %v1010 = vshll.u32 %v952, 16
        %v1012 = vrot.slane %v1010, 5
        %v1013 = vor.u32 %v1009, %v1012
        %v1015 = vshrl.u32 %v953, 16
        %v1017 = vrot.slane %v1015, 4
        %v1018 = vshll.u32 %v953, 16
        %v1020 = vrot.slane %v1018, 5
        %v1021 = vor.u32 %v1017, %v1020
        %v1023 = vshrl.u32 %v954, 16
        %v1025 = vrot.slane %v1023, 4
        %v1026 = vshll.u32 %v954, 16
        %v1028 = vrot.slane %v1026, 5
        %v1029 = vor.u32 %v1025, %v1028
        %v1031 = vshrl.u32 %v955, 16
        %v1033 = vrot.slane %v1031, 4
        %v1034 = vshll.u32 %v955, 16
        %v1036 = vrot.slane %v1034, 5
        %v1037 = vor.u32 %v1033, %v1036
        %v1039 = vshrl.u32 %v956, 16
        %v1041 = vrot.slane %v1039, 4
        %v1042 = vshll.u32 %v956, 16
        %v1044 = vrot.slane %v1042, 5
        %v1045 = vor.u32 %v1041, %v1044
        %v1047 = vshrl.u32 %v957, 16
        %v1049 = vrot.slane %v1047, 4
        %v1050 = vshll.u32 %v957, 16
        %v1052 = vrot.slane %v1050, 5
        %v1053 = vor.u32 %v1049, %v1052
        %1054 = vrot.lane.b32.xlu0 %v965, 32
        %v1055 = vpop.permute.xlu0 %1054
        %1056 = vrot.lane.b32.xlu0 %v973, 32
        %v1057 = vpop.permute.xlu0 %1056
        %1058 = vrot.lane.b32.xlu0 %v981, 32
        %v1059 = vpop.permute.xlu0 %1058
        %1060 = vrot.lane.b32.xlu0 %v989, 32
        %v1061 = vpop.permute.xlu0 %1060
        %1062 = vrot.lane.b32.xlu0 %v997, 32
        %v1063 = vpop.permute.xlu0 %1062
        %1064 = vrot.lane.b32.xlu0 %v1005, 32
        %v1065 = vpop.permute.xlu0 %1064
        %1066 = vrot.lane.b32.xlu0 %v1013, 32
        %v1067 = vpop.permute.xlu0 %1066
        %1068 = vrot.lane.b32.xlu0 %v1021, 32
        %v1069 = vpop.permute.xlu0 %1068
        %1070 = vrot.lane.b32.xlu0 %v1029, 32
        %v1071 = vpop.permute.xlu0 %1070
        %1072 = vrot.lane.b32.xlu0 %v1037, 32
        %v1073 = vpop.permute.xlu0 %1072
        %1074 = vrot.lane.b32.xlu0 %v1045, 32
        %v1075 = vpop.permute.xlu0 %1074
        %1076 = vrot.lane.b32.xlu0 %v1053, 32
        %v1077 = vpop.permute.xlu0 %1076
        %v1090 = vunpack.c.l.b16 %v838
        %v1091 = vunpack.c.l.b16 %v839
        %v1092 = vunpack.c.l.b16 %v840
        %v1093 = vunpack.c.l.b16 %v841
        %v1094 = vunpack.c.l.b16 %v842
        %v1095 = vunpack.c.l.b16 %v843
        %v1096 = vunpack.c.l.b16 %v844
        %v1097 = vunpack.c.l.b16 %v845
        %v1098 = vunpack.c.l.b16 %v846
        %v1099 = vunpack.c.l.b16 %v847
        %v1100 = vunpack.c.l.b16 %v848
        %v1101 = vunpack.c.l.b16 %v849
        %v1102 = vpack.c.b16 %v1090, %v1090
        %v1103 = vpack.c.b16 %v1091, %v1091
        %v1104 = vpack.c.b16 %v1092, %v1092
        %v1105 = vpack.c.b16 %v1093, %v1093
        %v1106 = vpack.c.b16 %v1094, %v1094
        %v1107 = vpack.c.b16 %v1095, %v1095
        %v1108 = vpack.c.b16 %v1096, %v1096
        %v1109 = vpack.c.b16 %v1097, %v1097
        %v1110 = vpack.c.b16 %v1098, %v1098
        %v1111 = vpack.c.b16 %v1099, %v1099
        %v1112 = vpack.c.b16 %v1100, %v1100
        %v1113 = vpack.c.b16 %v1101, %v1101
        %vm1114 = vcmask 1042432
        %v1115 = vrot.slane %v946, 5
        %v1116 = vrot.slane %v1102, 5
        %v1117 = vsel %vm1114, %v1115, %v1116
        %v1118 = vrot.slane %v947, 5
        %v1119 = vrot.slane %v1103, 5
        %v1120 = vsel %vm1114, %v1118, %v1119
        %v1121 = vrot.slane %v948, 5
        %v1122 = vrot.slane %v1104, 5
        %v1123 = vsel %vm1114, %v1121, %v1122
        %v1124 = vrot.slane %v949, 5
        %v1125 = vrot.slane %v1105, 5
        %v1126 = vsel %vm1114, %v1124, %v1125
        %v1127 = vrot.slane %v950, 5
        %v1128 = vrot.slane %v1106, 5
        %v1129 = vsel %vm1114, %v1127, %v1128
        %v1130 = vrot.slane %v951, 5
        %v1131 = vrot.slane %v1107, 5
        %v1132 = vsel %vm1114, %v1130, %v1131
        %v1133 = vrot.slane %v952, 5
        %v1134 = vrot.slane %v1108, 5
        %v1135 = vsel %vm1114, %v1133, %v1134
        %v1136 = vrot.slane %v953, 5
        %v1137 = vrot.slane %v1109, 5
        %v1138 = vsel %vm1114, %v1136, %v1137
        %v1139 = vrot.slane %v954, 5
        %v1140 = vrot.slane %v1110, 5
        %v1141 = vsel %vm1114, %v1139, %v1140
        %v1142 = vrot.slane %v955, 5
        %v1143 = vrot.slane %v1111, 5
        %v1144 = vsel %vm1114, %v1142, %v1143
        %v1145 = vrot.slane %v956, 5
        %v1146 = vrot.slane %v1112, 5
        %v1147 = vsel %vm1114, %v1145, %v1146
        %v1148 = vrot.slane %v957, 5
        %v1149 = vrot.slane %v1113, 5
        %v1150 = vsel %vm1114, %v1148, %v1149
        %1151 = vrot.lane.b32.xlu0 %v1115, 64
        %v1152 = vpop.permute.xlu0 %1151
        %1153 = vrot.lane.b32.xlu0 %v1117, 64
        %v1154 = vpop.permute.xlu0 %1153
        %1155 = vrot.lane.b32.xlu0 %v1118, 64
        %v1156 = vpop.permute.xlu0 %1155
        %1157 = vrot.lane.b32.xlu0 %v1120, 64
        %v1158 = vpop.permute.xlu0 %1157
        %1159 = vrot.lane.b32.xlu0 %v1121, 64
        %v1160 = vpop.permute.xlu0 %1159
        %1161 = vrot.lane.b32.xlu0 %v1123, 64
        %v1162 = vpop.permute.xlu0 %1161
        %1163 = vrot.lane.b32.xlu0 %v1124, 64
        %v1164 = vpop.permute.xlu0 %1163
        %1165 = vrot.lane.b32.xlu0 %v1126, 64
        %v1166 = vpop.permute.xlu0 %1165
        %1167 = vrot.lane.b32.xlu0 %v1127, 64
        %v1168 = vpop.permute.xlu0 %1167
        %1169 = vrot.lane.b32.xlu0 %v1129, 64
        %v1170 = vpop.permute.xlu0 %1169
        %1171 = vrot.lane.b32.xlu0 %v1130, 64
        %v1172 = vpop.permute.xlu0 %1171
        %1173 = vrot.lane.b32.xlu0 %v1132, 64
        %v1174 = vpop.permute.xlu0 %1173
        %1175 = vrot.lane.b32.xlu0 %v1133, 64
        %v1176 = vpop.permute.xlu0 %1175
        %1177 = vrot.lane.b32.xlu0 %v1135, 64
        %v1178 = vpop.permute.xlu0 %1177
        %1179 = vrot.lane.b32.xlu0 %v1136, 64
        %v1180 = vpop.permute.xlu0 %1179
        %1181 = vrot.lane.b32.xlu0 %v1138, 64
        %v1182 = vpop.permute.xlu0 %1181
        %1183 = vrot.lane.b32.xlu0 %v1139, 64
        %v1184 = vpop.permute.xlu0 %1183
        %1185 = vrot.lane.b32.xlu0 %v1141, 64
        %v1186 = vpop.permute.xlu0 %1185
        %1187 = vrot.lane.b32.xlu0 %v1142, 64
        %v1188 = vpop.permute.xlu0 %1187
        %1189 = vrot.lane.b32.xlu0 %v1144, 64
        %v1190 = vpop.permute.xlu0 %1189
        %1191 = vrot.lane.b32.xlu0 %v1145, 64
        %v1192 = vpop.permute.xlu0 %1191
        %1193 = vrot.lane.b32.xlu0 %v1147, 64
        %v1194 = vpop.permute.xlu0 %1193
        %1195 = vrot.lane.b32.xlu0 %v1148, 64
        %v1196 = vpop.permute.xlu0 %1195
        %1197 = vrot.lane.b32.xlu0 %v1150, 64
        %v1198 = vpop.permute.xlu0 %1197
        %vm1199 = vcmask 261120
        %v1202 = vsel %vm1199, %v922, %v1055
        %v1204 = vsel %vm1199, %v923, %v1055
        %v1207 = vsel %vm1199, %v924, %v1057
        %v1209 = vsel %vm1199, %v925, %v1057
        %v1212 = vsel %vm1199, %v926, %v1059
        %v1214 = vsel %vm1199, %v927, %v1059
        %v1217 = vsel %vm1199, %v928, %v1061
        %v1219 = vsel %vm1199, %v929, %v1061
        %v1222 = vsel %vm1199, %v930, %v1063
        %v1224 = vsel %vm1199, %v931, %v1063
        %v1227 = vsel %vm1199, %v932, %v1065
        %v1229 = vsel %vm1199, %v933, %v1065
        %v1232 = vsel %vm1199, %v934, %v1067
        %v1234 = vsel %vm1199, %v935, %v1067
        %v1237 = vsel %vm1199, %v936, %v1069
        %v1239 = vsel %vm1199, %v937, %v1069
        %v1242 = vsel %vm1199, %v938, %v1071
        %v1244 = vsel %vm1199, %v939, %v1071
        %v1247 = vsel %vm1199, %v940, %v1073
        %v1249 = vsel %vm1199, %v941, %v1073
        %v1252 = vsel %vm1199, %v942, %v1075
        %v1254 = vsel %vm1199, %v943, %v1075
        %v1257 = vsel %vm1199, %v944, %v1077
        %v1259 = vsel %vm1199, %v945, %v1077
        %vm1260 = vcmask 523264
        %v1262 = vsel %vm1260, %v1202, %v1152
        %v1264 = vsel %vm1260, %v1204, %v1154
        %v1266 = vsel %vm1260, %v1207, %v1156
        %v1268 = vsel %vm1260, %v1209, %v1158
        %v1270 = vsel %vm1260, %v1212, %v1160
        %v1272 = vsel %vm1260, %v1214, %v1162
        %v1274 = vsel %vm1260, %v1217, %v1164
        %v1276 = vsel %vm1260, %v1219, %v1166
        %v1278 = vsel %vm1260, %v1222, %v1168
        %v1280 = vsel %vm1260, %v1224, %v1170
        %v1282 = vsel %vm1260, %v1227, %v1172
        %v1284 = vsel %vm1260, %v1229, %v1174
        %v1286 = vsel %vm1260, %v1232, %v1176
        %v1288 = vsel %vm1260, %v1234, %v1178
        %v1290 = vsel %vm1260, %v1237, %v1180
        %v1292 = vsel %vm1260, %v1239, %v1182
        %v1294 = vsel %vm1260, %v1242, %v1184
        %v1296 = vsel %vm1260, %v1244, %v1186
        %v1298 = vsel %vm1260, %v1247, %v1188
        %v1300 = vsel %vm1260, %v1249, %v1190
        %v1302 = vsel %vm1260, %v1252, %v1192
        %v1304 = vsel %vm1260, %v1254, %v1194
        %v1306 = vsel %vm1260, %v1257, %v1196
        %v1308 = vsel %vm1260, %v1259, %v1198
        %vm1309 = vsmask.f32 4352
        %v1310 = vshrl.u32 %v1262, 16
        %v1312 = vrot.slane %v1310, 3
        %v1313 = vshll.u32 %v1262, 16
        %v1315 = vrot.slane %v1313, 4
        %v1316 = vor.u32 %v1312, %v1315
        %v1317 = vshrl.u32 %v1264, 16
        %v1319 = vrot.slane %v1317, 3
        %v1320 = vshll.u32 %v1264, 16
        %v1322 = vrot.slane %v1320, 4
        %v1323 = vor.u32 %v1319, %v1322
        %v1324 = vsel %vm1309, %v1316, %v1323
        %v1325 = vshrl.u32 %v1266, 16
        %v1327 = vrot.slane %v1325, 3
        %v1328 = vshll.u32 %v1266, 16
        %v1330 = vrot.slane %v1328, 4
        %v1331 = vor.u32 %v1327, %v1330
        %v1332 = vshrl.u32 %v1268, 16
        %v1334 = vrot.slane %v1332, 3
        %v1335 = vshll.u32 %v1268, 16
        %v1337 = vrot.slane %v1335, 4
        %v1338 = vor.u32 %v1334, %v1337
        %v1339 = vsel %vm1309, %v1331, %v1338
        %v1340 = vshrl.u32 %v1270, 16
        %v1342 = vrot.slane %v1340, 3
        %v1343 = vshll.u32 %v1270, 16
        %v1345 = vrot.slane %v1343, 4
        %v1346 = vor.u32 %v1342, %v1345
        %v1347 = vshrl.u32 %v1272, 16
        %v1349 = vrot.slane %v1347, 3
        %v1350 = vshll.u32 %v1272, 16
        %v1352 = vrot.slane %v1350, 4
        %v1353 = vor.u32 %v1349, %v1352
        %v1354 = vsel %vm1309, %v1346, %v1353
        %v1355 = vshrl.u32 %v1274, 16
        %v1357 = vrot.slane %v1355, 3
        %v1358 = vshll.u32 %v1274, 16
        %v1360 = vrot.slane %v1358, 4
        %v1361 = vor.u32 %v1357, %v1360
        %v1362 = vshrl.u32 %v1276, 16
        %v1364 = vrot.slane %v1362, 3
        %v1365 = vshll.u32 %v1276, 16
        %v1367 = vrot.slane %v1365, 4
        %v1368 = vor.u32 %v1364, %v1367
        %v1369 = vsel %vm1309, %v1361, %v1368
        %v1370 = vshrl.u32 %v1278, 16
        %v1372 = vrot.slane %v1370, 3
        %v1373 = vshll.u32 %v1278, 16
        %v1375 = vrot.slane %v1373, 4
        %v1376 = vor.u32 %v1372, %v1375
        %v1377 = vshrl.u32 %v1280, 16
        %v1379 = vrot.slane %v1377, 3
        %v1380 = vshll.u32 %v1280, 16
        %v1382 = vrot.slane %v1380, 4
        %v1383 = vor.u32 %v1379, %v1382
        %v1384 = vsel %vm1309, %v1376, %v1383
        %v1385 = vshrl.u32 %v1282, 16
        %v1387 = vrot.slane %v1385, 3
        %v1388 = vshll.u32 %v1282, 16
        %v1390 = vrot.slane %v1388, 4
        %v1391 = vor.u32 %v1387, %v1390
        %v1392 = vshrl.u32 %v1284, 16
        %v1394 = vrot.slane %v1392, 3
        %v1395 = vshll.u32 %v1284, 16
        %v1397 = vrot.slane %v1395, 4
        %v1398 = vor.u32 %v1394, %v1397
        %v1399 = vsel %vm1309, %v1391, %v1398
        %v1400 = vshrl.u32 %v1286, 16
        %v1402 = vrot.slane %v1400, 3
        %v1403 = vshll.u32 %v1286, 16
        %v1405 = vrot.slane %v1403, 4
        %v1406 = vor.u32 %v1402, %v1405
        %v1407 = vshrl.u32 %v1288, 16
        %v1409 = vrot.slane %v1407, 3
        %v1410 = vshll.u32 %v1288, 16
        %v1412 = vrot.slane %v1410, 4
        %v1413 = vor.u32 %v1409, %v1412
        %v1414 = vsel %vm1309, %v1406, %v1413
        %v1415 = vshrl.u32 %v1290, 16
        %v1417 = vrot.slane %v1415, 3
        %v1418 = vshll.u32 %v1290, 16
        %v1420 = vrot.slane %v1418, 4
        %v1421 = vor.u32 %v1417, %v1420
        %v1422 = vshrl.u32 %v1292, 16
        %v1424 = vrot.slane %v1422, 3
        %v1425 = vshll.u32 %v1292, 16
        %v1427 = vrot.slane %v1425, 4
        %v1428 = vor.u32 %v1424, %v1427
        %v1429 = vsel %vm1309, %v1421, %v1428
        %v1430 = vshrl.u32 %v1294, 16
        %v1432 = vrot.slane %v1430, 3
        %v1433 = vshll.u32 %v1294, 16
        %v1435 = vrot.slane %v1433, 4
        %v1436 = vor.u32 %v1432, %v1435
        %v1437 = vshrl.u32 %v1296, 16
        %v1439 = vrot.slane %v1437, 3
        %v1440 = vshll.u32 %v1296, 16
        %v1442 = vrot.slane %v1440, 4
        %v1443 = vor.u32 %v1439, %v1442
        %v1444 = vsel %vm1309, %v1436, %v1443
        %v1445 = vshrl.u32 %v1298, 16
        %v1447 = vrot.slane %v1445, 3
        %v1448 = vshll.u32 %v1298, 16
        %v1450 = vrot.slane %v1448, 4
        %v1451 = vor.u32 %v1447, %v1450
        %v1452 = vshrl.u32 %v1300, 16
        %v1454 = vrot.slane %v1452, 3
        %v1455 = vshll.u32 %v1300, 16
        %v1457 = vrot.slane %v1455, 4
        %v1458 = vor.u32 %v1454, %v1457
        %v1459 = vsel %vm1309, %v1451, %v1458
        %v1460 = vshrl.u32 %v1302, 16
        %v1462 = vrot.slane %v1460, 3
        %v1463 = vshll.u32 %v1302, 16
        %v1465 = vrot.slane %v1463, 4
        %v1466 = vor.u32 %v1462, %v1465
        %v1467 = vshrl.u32 %v1304, 16
        %v1469 = vrot.slane %v1467, 3
        %v1470 = vshll.u32 %v1304, 16
        %v1472 = vrot.slane %v1470, 4
        %v1473 = vor.u32 %v1469, %v1472
        %v1474 = vsel %vm1309, %v1466, %v1473
        %v1475 = vshrl.u32 %v1306, 16
        %v1477 = vrot.slane %v1475, 3
        %v1478 = vshll.u32 %v1306, 16
        %v1480 = vrot.slane %v1478, 4
        %v1481 = vor.u32 %v1477, %v1480
        %v1482 = vshrl.u32 %v1308, 16
        %v1484 = vrot.slane %v1482, 3
        %v1485 = vshll.u32 %v1308, 16
        %v1487 = vrot.slane %v1485, 4
        %v1488 = vor.u32 %v1484, %v1487
        %v1489 = vsel %vm1309, %v1481, %v1488
        %v1490 = vld [vmem:[%s4] sm:$0xf]
        %v1491 = vld [vmem:[%s4 + $0x4] sm:$0xf]
        %v1492 = vld [vmem:[%s4 + $0x8] sm:$0xf]
        %v1493 = vld [vmem:[%s4 + $0xc] sm:$0xf]
        %v1494 = vld [vmem:[%s4 + $0x10] sm:$0xf]
        %v1495 = vld [vmem:[%s4 + $0x14] sm:$0xf]
        %v1496 = vld [vmem:[%s4 + $0x18] sm:$0xf]
        %v1497 = vld [vmem:[%s4 + $0x1c] sm:$0xf]
        %v1498 = vld [vmem:[%s4 + $0x20] sm:$0xf]
        %v1499 = vld [vmem:[%s4 + $0x24] sm:$0xf]
        %v1500 = vld [vmem:[%s4 + $0x28] sm:$0xf]
        %v1501 = vld [vmem:[%s4 + $0x2c] sm:$0xf]
        %s1502 = scalar_lea.vmem [#allocation2], 16
        %v1503 = vld [vmem:[%s1502] sm:$0x8]
        %v1504 = vld [vmem:[%s1502 + $0x4] sm:$0xf]
        %v1505 = vld [vmem:[%s1502 + $0x8] sm:$0xf]
        %v1506 = vld [vmem:[%s1502 + $0x10] sm:$0x8]
        %v1507 = vld [vmem:[%s1502 + $0x14] sm:$0xf]
        %v1508 = vld [vmem:[%s1502 + $0x18] sm:$0xf]
        %v1509 = vld [vmem:[%s1502 + $0x20] sm:$0x8]
        %v1510 = vld [vmem:[%s1502 + $0x24] sm:$0xf]
        %v1511 = vld [vmem:[%s1502 + $0x28] sm:$0xf]
        %v1512 = vld [vmem:[%s1502 + $0x30] sm:$0x8]
        %v1513 = vld [vmem:[%s1502 + $0x34] sm:$0xf]
        %v1514 = vld [vmem:[%s1502 + $0x38] sm:$0xf]
        %v1515 = vld [vmem:[%s1502 + $0x40] sm:$0x8]
        %v1516 = vld [vmem:[%s1502 + $0x44] sm:$0xf]
        %v1517 = vld [vmem:[%s1502 + $0x48] sm:$0xf]
        %v1518 = vld [vmem:[%s1502 + $0x50] sm:$0x8]
        %v1519 = vld [vmem:[%s1502 + $0x54] sm:$0xf]
        %v1520 = vld [vmem:[%s1502 + $0x58] sm:$0xf]
        %v1521 = vld [vmem:[%s1502 + $0x60] sm:$0x8]
        %v1522 = vld [vmem:[%s1502 + $0x64] sm:$0xf]
        %v1523 = vld [vmem:[%s1502 + $0x68] sm:$0xf]
        %v1524 = vld [vmem:[%s1502 + $0x70] sm:$0x8]
        %v1525 = vld [vmem:[%s1502 + $0x74] sm:$0xf]
        %v1526 = vld [vmem:[%s1502 + $0x78] sm:$0xf]
        %v1527 = vld [vmem:[%s1502 + $0x80] sm:$0x8]
        %v1528 = vld [vmem:[%s1502 + $0x84] sm:$0xf]
        %v1529 = vld [vmem:[%s1502 + $0x88] sm:$0xf]
        %v1530 = vld [vmem:[%s1502 + $0x90] sm:$0x8]
        %v1531 = vld [vmem:[%s1502 + $0x94] sm:$0xf]
        %v1532 = vld [vmem:[%s1502 + $0x98] sm:$0xf]
        %v1533 = vld [vmem:[%s1502 + $0xa0] sm:$0x8]
        %v1534 = vld [vmem:[%s1502 + $0xa4] sm:$0xf]
        %v1535 = vld [vmem:[%s1502 + $0xa8] sm:$0xf]
        %v1536 = vld [vmem:[%s1502 + $0xb0] sm:$0x8]
        %v1537 = vld [vmem:[%s1502 + $0xb4] sm:$0xf]
        %v1538 = vld [vmem:[%s1502 + $0xb8] sm:$0xf]
        %v1539 = vld [vmem:[%s1502 + $0xc] sm:$0x1]
        %v1540 = vld [vmem:[%s1502 + $0x1c] sm:$0x1]
        %v1541 = vld [vmem:[%s1502 + $0x2c] sm:$0x1]
        %v1542 = vld [vmem:[%s1502 + $0x3c] sm:$0x1]
        %v1543 = vld [vmem:[%s1502 + $0x4c] sm:$0x1]
        %v1544 = vld [vmem:[%s1502 + $0x5c] sm:$0x1]
        %v1545 = vld [vmem:[%s1502 + $0x6c] sm:$0x1]
        %v1546 = vld [vmem:[%s1502 + $0x7c] sm:$0x1]
        %v1547 = vld [vmem:[%s1502 + $0x8c] sm:$0x1]
        %v1548 = vld [vmem:[%s1502 + $0x9c] sm:$0x1]
        %v1549 = vld [vmem:[%s1502 + $0xac] sm:$0x1]
        %v1550 = vld [vmem:[%s1502 + $0xbc] sm:$0x1]
        %v1587 = vunpack.c.l.b16 %v1503
        %v1588 = vunpack.c.l.b16 %v1504
        %v1589 = vunpack.c.l.b16 %v1505
        %v1590 = vunpack.c.l.b16 %v1506
        %v1591 = vunpack.c.l.b16 %v1507
        %v1592 = vunpack.c.l.b16 %v1508
        %v1593 = vunpack.c.l.b16 %v1509
        %v1594 = vunpack.c.l.b16 %v1510
        %v1595 = vunpack.c.l.b16 %v1511
        %v1596 = vunpack.c.l.b16 %v1512
        %v1597 = vunpack.c.l.b16 %v1513
        %v1598 = vunpack.c.l.b16 %v1514
        %v1599 = vunpack.c.l.b16 %v1515
        %v1600 = vunpack.c.l.b16 %v1516
        %v1601 = vunpack.c.l.b16 %v1517
        %v1602 = vunpack.c.l.b16 %v1518
        %v1603 = vunpack.c.l.b16 %v1519
        %v1604 = vunpack.c.l.b16 %v1520
        %v1605 = vunpack.c.l.b16 %v1521
        %v1606 = vunpack.c.l.b16 %v1522
        %v1607 = vunpack.c.l.b16 %v1523
        %v1608 = vunpack.c.l.b16 %v1524
        %v1609 = vunpack.c.l.b16 %v1525
        %v1610 = vunpack.c.l.b16 %v1526
        %v1611 = vunpack.c.l.b16 %v1527
        %v1612 = vunpack.c.l.b16 %v1528
        %v1613 = vunpack.c.l.b16 %v1529
        %v1614 = vunpack.c.l.b16 %v1530
        %v1615 = vunpack.c.l.b16 %v1531
        %v1616 = vunpack.c.l.b16 %v1532
        %v1617 = vunpack.c.l.b16 %v1533
        %v1618 = vunpack.c.l.b16 %v1534
        %v1619 = vunpack.c.l.b16 %v1535
        %v1620 = vunpack.c.l.b16 %v1536
        %v1621 = vunpack.c.l.b16 %v1537
        %v1622 = vunpack.c.l.b16 %v1538
        %v1623 = vpack.c.b16 %v1588, %v1587
        %v1624 = vpack.c.b16 %v1589, %v1589
        %v1625 = vpack.c.b16 %v1591, %v1590
        %v1626 = vpack.c.b16 %v1592, %v1592
        %v1627 = vpack.c.b16 %v1594, %v1593
        %v1628 = vpack.c.b16 %v1595, %v1595
        %v1629 = vpack.c.b16 %v1597, %v1596
        %v1630 = vpack.c.b16 %v1598, %v1598
        %v1631 = vpack.c.b16 %v1600, %v1599
        %v1632 = vpack.c.b16 %v1601, %v1601
        %v1633 = vpack.c.b16 %v1603, %v1602
        %v1634 = vpack.c.b16 %v1604, %v1604
        %v1635 = vpack.c.b16 %v1606, %v1605
        %v1636 = vpack.c.b16 %v1607, %v1607
        %v1637 = vpack.c.b16 %v1609, %v1608
        %v1638 = vpack.c.b16 %v1610, %v1610
        %v1639 = vpack.c.b16 %v1612, %v1611
        %v1640 = vpack.c.b16 %v1613, %v1613
        %v1641 = vpack.c.b16 %v1615, %v1614
        %v1642 = vpack.c.b16 %v1616, %v1616
        %v1643 = vpack.c.b16 %v1618, %v1617
        %v1644 = vpack.c.b16 %v1619, %v1619
        %v1645 = vpack.c.b16 %v1621, %v1620
        %v1646 = vpack.c.b16 %v1622, %v1622
        %v1647 = vpack.c.b16 %v1589, %v1588
        %v1648 = vpack.c.b16 %v1592, %v1591
        %v1649 = vpack.c.b16 %v1595, %v1594
        %v1650 = vpack.c.b16 %v1598, %v1597
        %v1651 = vpack.c.b16 %v1601, %v1600
        %v1652 = vpack.c.b16 %v1604, %v1603
        %v1653 = vpack.c.b16 %v1607, %v1606
        %v1654 = vpack.c.b16 %v1610, %v1609
        %v1655 = vpack.c.b16 %v1613, %v1612
        %v1656 = vpack.c.b16 %v1616, %v1615
        %v1657 = vpack.c.b16 %v1619, %v1618
        %v1658 = vpack.c.b16 %v1622, %v1621
        %v1660 = vshrl.u32 %v1647, 16
        %v1662 = vrot.slane %v1660, 4
        %v1663 = vshll.u32 %v1647, 16
        %v1665 = vrot.slane %v1663, 5
        %v1666 = vor.u32 %v1662, %v1665
        %v1668 = vshrl.u32 %v1648, 16
        %v1670 = vrot.slane %v1668, 4
        %v1671 = vshll.u32 %v1648, 16
        %v1673 = vrot.slane %v1671, 5
        %v1674 = vor.u32 %v1670, %v1673
        %v1676 = vshrl.u32 %v1649, 16
        %v1678 = vrot.slane %v1676, 4
        %v1679 = vshll.u32 %v1649, 16
        %v1681 = vrot.slane %v1679, 5
        %v1682 = vor.u32 %v1678, %v1681
        %v1684 = vshrl.u32 %v1650, 16
        %v1686 = vrot.slane %v1684, 4
        %v1687 = vshll.u32 %v1650, 16
        %v1689 = vrot.slane %v1687, 5
        %v1690 = vor.u32 %v1686, %v1689
        %v1692 = vshrl.u32 %v1651, 16
        %v1694 = vrot.slane %v1692, 4
        %v1695 = vshll.u32 %v1651, 16
        %v1697 = vrot.slane %v1695, 5
        %v1698 = vor.u32 %v1694, %v1697
        %v1700 = vshrl.u32 %v1652, 16
        %v1702 = vrot.slane %v1700, 4
        %v1703 = vshll.u32 %v1652, 16
        %v1705 = vrot.slane %v1703, 5
        %v1706 = vor.u32 %v1702, %v1705
        %v1708 = vshrl.u32 %v1653, 16
        %v1710 = vrot.slane %v1708, 4
        %v1711 = vshll.u32 %v1653, 16
        %v1713 = vrot.slane %v1711, 5
        %v1714 = vor.u32 %v1710, %v1713
        %v1716 = vshrl.u32 %v1654, 16
        %v1718 = vrot.slane %v1716, 4
        %v1719 = vshll.u32 %v1654, 16
        %v1721 = vrot.slane %v1719, 5
        %v1722 = vor.u32 %v1718, %v1721
        %v1724 = vshrl.u32 %v1655, 16
        %v1726 = vrot.slane %v1724, 4
        %v1727 = vshll.u32 %v1655, 16
        %v1729 = vrot.slane %v1727, 5
        %v1730 = vor.u32 %v1726, %v1729
        %v1732 = vshrl.u32 %v1656, 16
        %v1734 = vrot.slane %v1732, 4
        %v1735 = vshll.u32 %v1656, 16
        %v1737 = vrot.slane %v1735, 5
        %v1738 = vor.u32 %v1734, %v1737
        %v1740 = vshrl.u32 %v1657, 16
        %v1742 = vrot.slane %v1740, 4
        %v1743 = vshll.u32 %v1657, 16
        %v1745 = vrot.slane %v1743, 5
        %v1746 = vor.u32 %v1742, %v1745
        %v1748 = vshrl.u32 %v1658, 16
        %v1750 = vrot.slane %v1748, 4
        %v1751 = vshll.u32 %v1658, 16
        %v1753 = vrot.slane %v1751, 5
        %v1754 = vor.u32 %v1750, %v1753
        %1755 = vrot.lane.b32.xlu0 %v1666, 32
        %v1756 = vpop.permute.xlu0 %1755
        %1757 = vrot.lane.b32.xlu0 %v1674, 32
        %v1758 = vpop.permute.xlu0 %1757
        %1759 = vrot.lane.b32.xlu0 %v1682, 32
        %v1760 = vpop.permute.xlu0 %1759
        %1761 = vrot.lane.b32.xlu0 %v1690, 32
        %v1762 = vpop.permute.xlu0 %1761
        %1763 = vrot.lane.b32.xlu0 %v1698, 32
        %v1764 = vpop.permute.xlu0 %1763
        %1765 = vrot.lane.b32.xlu0 %v1706, 32
        %v1766 = vpop.permute.xlu0 %1765
        %1767 = vrot.lane.b32.xlu0 %v1714, 32
        %v1768 = vpop.permute.xlu0 %1767
        %1769 = vrot.lane.b32.xlu0 %v1722, 32
        %v1770 = vpop.permute.xlu0 %1769
        %1771 = vrot.lane.b32.xlu0 %v1730, 32
        %v1772 = vpop.permute.xlu0 %1771
        %1773 = vrot.lane.b32.xlu0 %v1738, 32
        %v1774 = vpop.permute.xlu0 %1773
        %1775 = vrot.lane.b32.xlu0 %v1746, 32
        %v1776 = vpop.permute.xlu0 %1775
        %1777 = vrot.lane.b32.xlu0 %v1754, 32
        %v1778 = vpop.permute.xlu0 %1777
        %v1791 = vunpack.c.l.b16 %v1539
        %v1792 = vunpack.c.l.b16 %v1540
        %v1793 = vunpack.c.l.b16 %v1541
        %v1794 = vunpack.c.l.b16 %v1542
        %v1795 = vunpack.c.l.b16 %v1543
        %v1796 = vunpack.c.l.b16 %v1544
        %v1797 = vunpack.c.l.b16 %v1545
        %v1798 = vunpack.c.l.b16 %v1546
        %v1799 = vunpack.c.l.b16 %v1547
        %v1800 = vunpack.c.l.b16 %v1548
        %v1801 = vunpack.c.l.b16 %v1549
        %v1802 = vunpack.c.l.b16 %v1550
        %v1803 = vpack.c.b16 %v1791, %v1791
        %v1804 = vpack.c.b16 %v1792, %v1792
        %v1805 = vpack.c.b16 %v1793, %v1793
        %v1806 = vpack.c.b16 %v1794, %v1794
        %v1807 = vpack.c.b16 %v1795, %v1795
        %v1808 = vpack.c.b16 %v1796, %v1796
        %v1809 = vpack.c.b16 %v1797, %v1797
        %v1810 = vpack.c.b16 %v1798, %v1798
        %v1811 = vpack.c.b16 %v1799, %v1799
        %v1812 = vpack.c.b16 %v1800, %v1800
        %v1813 = vpack.c.b16 %v1801, %v1801
        %v1814 = vpack.c.b16 %v1802, %v1802
        %v1815 = vrot.slane %v1647, 5
        %v1816 = vrot.slane %v1803, 5
        %v1817 = vsel %vm1114, %v1815, %v1816
        %v1818 = vrot.slane %v1648, 5
        %v1819 = vrot.slane %v1804, 5
        %v1820 = vsel %vm1114, %v1818, %v1819
        %v1821 = vrot.slane %v1649, 5
        %v1822 = vrot.slane %v1805, 5
        %v1823 = vsel %vm1114, %v1821, %v1822
        %v1824 = vrot.slane %v1650, 5
        %v1825 = vrot.slane %v1806, 5
        %v1826 = vsel %vm1114, %v1824, %v1825
        %v1827 = vrot.slane %v1651, 5
        %v1828 = vrot.slane %v1807, 5
        %v1829 = vsel %vm1114, %v1827, %v1828
        %v1830 = vrot.slane %v1652, 5
        %v1831 = vrot.slane %v1808, 5
        %v1832 = vsel %vm1114, %v1830, %v1831
        %v1833 = vrot.slane %v1653, 5
        %v1834 = vrot.slane %v1809, 5
        %v1835 = vsel %vm1114, %v1833, %v1834
        %v1836 = vrot.slane %v1654, 5
        %v1837 = vrot.slane %v1810, 5
        %v1838 = vsel %vm1114, %v1836, %v1837
        %v1839 = vrot.slane %v1655, 5
        %v1840 = vrot.slane %v1811, 5
        %v1841 = vsel %vm1114, %v1839, %v1840
        %v1842 = vrot.slane %v1656, 5
        %v1843 = vrot.slane %v1812, 5
        %v1844 = vsel %vm1114, %v1842, %v1843
        %v1845 = vrot.slane %v1657, 5
        %v1846 = vrot.slane %v1813, 5
        %v1847 = vsel %vm1114, %v1845, %v1846
        %v1848 = vrot.slane %v1658, 5
        %v1849 = vrot.slane %v1814, 5
        %v1850 = vsel %vm1114, %v1848, %v1849
        %1851 = vrot.lane.b32.xlu0 %v1815, 64
        %v1852 = vpop.permute.xlu0 %1851
        %1853 = vrot.lane.b32.xlu0 %v1817, 64
        %v1854 = vpop.permute.xlu0 %1853
        %1855 = vrot.lane.b32.xlu0 %v1818, 64
        %v1856 = vpop.permute.xlu0 %1855
        %1857 = vrot.lane.b32.xlu0 %v1820, 64
        %v1858 = vpop.permute.xlu0 %1857
        %1859 = vrot.lane.b32.xlu0 %v1821, 64
        %v1860 = vpop.permute.xlu0 %1859
        %1861 = vrot.lane.b32.xlu0 %v1823, 64
        %v1862 = vpop.permute.xlu0 %1861
        %1863 = vrot.lane.b32.xlu0 %v1824, 64
        %v1864 = vpop.permute.xlu0 %1863
        %1865 = vrot.lane.b32.xlu0 %v1826, 64
        %v1866 = vpop.permute.xlu0 %1865
        %1867 = vrot.lane.b32.xlu0 %v1827, 64
        %v1868 = vpop.permute.xlu0 %1867
        %1869 = vrot.lane.b32.xlu0 %v1829, 64
        %v1870 = vpop.permute.xlu0 %1869
        %1871 = vrot.lane.b32.xlu0 %v1830, 64
        %v1872 = vpop.permute.xlu0 %1871
        %1873 = vrot.lane.b32.xlu0 %v1832, 64
        %v1874 = vpop.permute.xlu0 %1873
        %1875 = vrot.lane.b32.xlu0 %v1833, 64
        %v1876 = vpop.permute.xlu0 %1875
        %1877 = vrot.lane.b32.xlu0 %v1835, 64
        %v1878 = vpop.permute.xlu0 %1877
        %1879 = vrot.lane.b32.xlu0 %v1836, 64
        %v1880 = vpop.permute.xlu0 %1879
        %1881 = vrot.lane.b32.xlu0 %v1838, 64
        %v1882 = vpop.permute.xlu0 %1881
        %1883 = vrot.lane.b32.xlu0 %v1839, 64
        %v1884 = vpop.permute.xlu0 %1883
        %1885 = vrot.lane.b32.xlu0 %v1841, 64
        %v1886 = vpop.permute.xlu0 %1885
        %1887 = vrot.lane.b32.xlu0 %v1842, 64
        %v1888 = vpop.permute.xlu0 %1887
        %1889 = vrot.lane.b32.xlu0 %v1844, 64
        %v1890 = vpop.permute.xlu0 %1889
        %1891 = vrot.lane.b32.xlu0 %v1845, 64
        %v1892 = vpop.permute.xlu0 %1891
        %1893 = vrot.lane.b32.xlu0 %v1847, 64
        %v1894 = vpop.permute.xlu0 %1893
        %1895 = vrot.lane.b32.xlu0 %v1848, 64
        %v1896 = vpop.permute.xlu0 %1895
        %1897 = vrot.lane.b32.xlu0 %v1850, 64
        %v1898 = vpop.permute.xlu0 %1897
        %v1901 = vsel %vm1199, %v1623, %v1756
        %v1903 = vsel %vm1199, %v1624, %v1756
        %v1906 = vsel %vm1199, %v1625, %v1758
        %v1908 = vsel %vm1199, %v1626, %v1758
        %v1911 = vsel %vm1199, %v1627, %v1760
        %v1913 = vsel %vm1199, %v1628, %v1760
        %v1916 = vsel %vm1199, %v1629, %v1762
        %v1918 = vsel %vm1199, %v1630, %v1762
        %v1921 = vsel %vm1199, %v1631, %v1764
        %v1923 = vsel %vm1199, %v1632, %v1764
        %v1926 = vsel %vm1199, %v1633, %v1766
        %v1928 = vsel %vm1199, %v1634, %v1766
        %v1931 = vsel %vm1199, %v1635, %v1768
        %v1933 = vsel %vm1199, %v1636, %v1768
        %v1936 = vsel %vm1199, %v1637, %v1770
        %v1938 = vsel %vm1199, %v1638, %v1770
        %v1941 = vsel %vm1199, %v1639, %v1772
        %v1943 = vsel %vm1199, %v1640, %v1772
        %v1946 = vsel %vm1199, %v1641, %v1774
        %v1948 = vsel %vm1199, %v1642, %v1774
        %v1951 = vsel %vm1199, %v1643, %v1776
        %v1953 = vsel %vm1199, %v1644, %v1776
        %v1956 = vsel %vm1199, %v1645, %v1778
        %v1958 = vsel %vm1199, %v1646, %v1778
        %v1960 = vsel %vm1260, %v1901, %v1852
        %v1962 = vsel %vm1260, %v1903, %v1854
        %v1964 = vsel %vm1260, %v1906, %v1856
        %v1966 = vsel %vm1260, %v1908, %v1858
        %v1968 = vsel %vm1260, %v1911, %v1860
        %v1970 = vsel %vm1260, %v1913, %v1862
        %v1972 = vsel %vm1260, %v1916, %v1864
        %v1974 = vsel %vm1260, %v1918, %v1866
        %v1976 = vsel %vm1260, %v1921, %v1868
        %v1978 = vsel %vm1260, %v1923, %v1870
        %v1980 = vsel %vm1260, %v1926, %v1872
        %v1982 = vsel %vm1260, %v1928, %v1874
        %v1984 = vsel %vm1260, %v1931, %v1876
        %v1986 = vsel %vm1260, %v1933, %v1878
        %v1988 = vsel %vm1260, %v1936, %v1880
        %v1990 = vsel %vm1260, %v1938, %v1882
        %v1992 = vsel %vm1260, %v1941, %v1884
        %v1994 = vsel %vm1260, %v1943, %v1886
        %v1996 = vsel %vm1260, %v1946, %v1888
        %v1998 = vsel %vm1260, %v1948, %v1890
        %v2000 = vsel %vm1260, %v1951, %v1892
        %v2002 = vsel %vm1260, %v1953, %v1894
        %v2004 = vsel %vm1260, %v1956, %v1896
        %v2006 = vsel %vm1260, %v1958, %v1898
        %v2007 = vshrl.u32 %v1960, 16
        %v2009 = vrot.slane %v2007, 3
        %v2010 = vshll.u32 %v1960, 16
        %v2012 = vrot.slane %v2010, 4
        %v2013 = vor.u32 %v2009, %v2012
        %v2014 = vshrl.u32 %v1962, 16
        %v2016 = vrot.slane %v2014, 3
        %v2017 = vshll.u32 %v1962, 16
        %v2019 = vrot.slane %v2017, 4
        %v2020 = vor.u32 %v2016, %v2019
        %v2021 = vsel %vm1309, %v2013, %v2020
        %v2022 = vshrl.u32 %v1964, 16
        %v2024 = vrot.slane %v2022, 3
        %v2025 = vshll.u32 %v1964, 16
        %v2027 = vrot.slane %v2025, 4
        %v2028 = vor.u32 %v2024, %v2027
        %v2029 = vshrl.u32 %v1966, 16
        %v2031 = vrot.slane %v2029, 3
        %v2032 = vshll.u32 %v1966, 16
        %v2034 = vrot.slane %v2032, 4
        %v2035 = vor.u32 %v2031, %v2034
        %v2036 = vsel %vm1309, %v2028, %v2035
        %v2037 = vshrl.u32 %v1968, 16
        %v2039 = vrot.slane %v2037, 3
        %v2040 = vshll.u32 %v1968, 16
        %v2042 = vrot.slane %v2040, 4
        %v2043 = vor.u32 %v2039, %v2042
        %v2044 = vshrl.u32 %v1970, 16
        %v2046 = vrot.slane %v2044, 3
        %v2047 = vshll.u32 %v1970, 16
        %v2049 = vrot.slane %v2047, 4
        %v2050 = vor.u32 %v2046, %v2049
        %v2051 = vsel %vm1309, %v2043, %v2050
        %v2052 = vshrl.u32 %v1972, 16
        %v2054 = vrot.slane %v2052, 3
        %v2055 = vshll.u32 %v1972, 16
        %v2057 = vrot.slane %v2055, 4
        %v2058 = vor.u32 %v2054, %v2057
        %v2059 = vshrl.u32 %v1974, 16
        %v2061 = vrot.slane %v2059, 3
        %v2062 = vshll.u32 %v1974, 16
        %v2064 = vrot.slane %v2062, 4
        %v2065 = vor.u32 %v2061, %v2064
        %v2066 = vsel %vm1309, %v2058, %v2065
        %v2067 = vshrl.u32 %v1976, 16
        %v2069 = vrot.slane %v2067, 3
        %v2070 = vshll.u32 %v1976, 16
        %v2072 = vrot.slane %v2070, 4
        %v2073 = vor.u32 %v2069, %v2072
        %v2074 = vshrl.u32 %v1978, 16
        %v2076 = vrot.slane %v2074, 3
        %v2077 = vshll.u32 %v1978, 16
        %v2079 = vrot.slane %v2077, 4
        %v2080 = vor.u32 %v2076, %v2079
        %v2081 = vsel %vm1309, %v2073, %v2080
        %v2082 = vshrl.u32 %v1980, 16
        %v2084 = vrot.slane %v2082, 3
        %v2085 = vshll.u32 %v1980, 16
        %v2087 = vrot.slane %v2085, 4
        %v2088 = vor.u32 %v2084, %v2087
        %v2089 = vshrl.u32 %v1982, 16
        %v2091 = vrot.slane %v2089, 3
        %v2092 = vshll.u32 %v1982, 16
        %v2094 = vrot.slane %v2092, 4
        %v2095 = vor.u32 %v2091, %v2094
        %v2096 = vsel %vm1309, %v2088, %v2095
        %v2097 = vshrl.u32 %v1984, 16
        %v2099 = vrot.slane %v2097, 3
        %v2100 = vshll.u32 %v1984, 16
        %v2102 = vrot.slane %v2100, 4
        %v2103 = vor.u32 %v2099, %v2102
        %v2104 = vshrl.u32 %v1986, 16
        %v2106 = vrot.slane %v2104, 3
        %v2107 = vshll.u32 %v1986, 16
        %v2109 = vrot.slane %v2107, 4
        %v2110 = vor.u32 %v2106, %v2109
        %v2111 = vsel %vm1309, %v2103, %v2110
        %v2112 = vshrl.u32 %v1988, 16
        %v2114 = vrot.slane %v2112, 3
        %v2115 = vshll.u32 %v1988, 16
        %v2117 = vrot.slane %v2115, 4
        %v2118 = vor.u32 %v2114, %v2117
        %v2119 = vshrl.u32 %v1990, 16
        %v2121 = vrot.slane %v2119, 3
        %v2122 = vshll.u32 %v1990, 16
        %v2124 = vrot.slane %v2122, 4
        %v2125 = vor.u32 %v2121, %v2124
        %v2126 = vsel %vm1309, %v2118, %v2125
        %v2127 = vshrl.u32 %v1992, 16
        %v2129 = vrot.slane %v2127, 3
        %v2130 = vshll.u32 %v1992, 16
        %v2132 = vrot.slane %v2130, 4
        %v2133 = vor.u32 %v2129, %v2132
        %v2134 = vshrl.u32 %v1994, 16
        %v2136 = vrot.slane %v2134, 3
        %v2137 = vshll.u32 %v1994, 16
        %v2139 = vrot.slane %v2137, 4
        %v2140 = vor.u32 %v2136, %v2139
        %v2141 = vsel %vm1309, %v2133, %v2140
        %v2142 = vshrl.u32 %v1996, 16
        %v2144 = vrot.slane %v2142, 3
        %v2145 = vshll.u32 %v1996, 16
        %v2147 = vrot.slane %v2145, 4
        %v2148 = vor.u32 %v2144, %v2147
        %v2149 = vshrl.u32 %v1998, 16
        %v2151 = vrot.slane %v2149, 3
        %v2152 = vshll.u32 %v1998, 16
        %v2154 = vrot.slane %v2152, 4
        %v2155 = vor.u32 %v2151, %v2154
        %v2156 = vsel %vm1309, %v2148, %v2155
        %v2157 = vshrl.u32 %v2000, 16
        %v2159 = vrot.slane %v2157, 3
        %v2160 = vshll.u32 %v2000, 16
        %v2162 = vrot.slane %v2160, 4
        %v2163 = vor.u32 %v2159, %v2162
        %v2164 = vshrl.u32 %v2002, 16
        %v2166 = vrot.slane %v2164, 3
        %v2167 = vshll.u32 %v2002, 16
        %v2169 = vrot.slane %v2167, 4
        %v2170 = vor.u32 %v2166, %v2169
        %v2171 = vsel %vm1309, %v2163, %v2170
        %v2172 = vshrl.u32 %v2004, 16
        %v2174 = vrot.slane %v2172, 3
        %v2175 = vshll.u32 %v2004, 16
        %v2177 = vrot.slane %v2175, 4
        %v2178 = vor.u32 %v2174, %v2177
        %v2179 = vshrl.u32 %v2006, 16
        %v2181 = vrot.slane %v2179, 3
        %v2182 = vshll.u32 %v2006, 16
        %v2184 = vrot.slane %v2182, 4
        %v2185 = vor.u32 %v2181, %v2184
        %v2186 = vsel %vm1309, %v2178, %v2185
        %s2187 = scalar_lea.vmem %s4, 48
        %v2188 = vld [vmem:[%s2187] sm:$0xf]
        %v2189 = vld [vmem:[%s2187 + $0x4] sm:$0xf]
        %v2190 = vld [vmem:[%s2187 + $0x8] sm:$0xf]
        %v2191 = vld [vmem:[%s2187 + $0xc] sm:$0xf]
        %v2192 = vld [vmem:[%s2187 + $0x10] sm:$0xf]
        %v2193 = vld [vmem:[%s2187 + $0x14] sm:$0xf]
        %v2194 = vld [vmem:[%s2187 + $0x18] sm:$0xf]
        %v2195 = vld [vmem:[%s2187 + $0x1c] sm:$0xf]
        %v2196 = vld [vmem:[%s2187 + $0x20] sm:$0xf]
        %v2197 = vld [vmem:[%s2187 + $0x24] sm:$0xf]
        %v2198 = vld [vmem:[%s2187 + $0x28] sm:$0xf]
        %v2199 = vld [vmem:[%s2187 + $0x2c] sm:$0xf]
        %v2212 = vunpack.c.l.b16 %v2188
        %v2213 = vunpack.c.l.b16 %v2189
        %v2214 = vunpack.c.l.b16 %v2190
        %v2215 = vunpack.c.l.b16 %v2191
        %v2216 = vunpack.c.l.b16 %v2192
        %v2217 = vunpack.c.l.b16 %v2193
        %v2218 = vunpack.c.l.b16 %v2194
        %v2219 = vunpack.c.l.b16 %v2195
        %v2220 = vunpack.c.l.b16 %v2196
        %v2221 = vunpack.c.l.b16 %v2197
        %v2222 = vunpack.c.l.b16 %v2198
        %v2223 = vunpack.c.l.b16 %v2199
        %v2224 = vpack.c.b16 %v2213, %v2212
        %v2225 = vpack.c.b16 %v2215, %v2214
        %v2226 = vpack.c.b16 %v2217, %v2216
        %v2227 = vpack.c.b16 %v2219, %v2218
        %v2228 = vpack.c.b16 %v2221, %v2220
        %v2229 = vpack.c.b16 %v2223, %v2222
        %vm2236 = vcmask 785408
        %v2238 = vsel %vm2236, %v2021, 0
        %v2241 = vsel %vm2236, %v2036, 0
        %v2244 = vsel %vm2236, %v2051, 0
        %v2247 = vsel %vm2236, %v2066, 0
        %v2250 = vsel %vm2236, %v2081, 0
        %v2253 = vsel %vm2236, %v2096, 0
        %v2256 = vsel %vm2236, %v2111, 0
        %v2259 = vsel %vm2236, %v2126, 0
        %v2262 = vsel %vm2236, %v2141, 0
        %v2265 = vsel %vm2236, %v2156, 0
        %v2268 = vsel %vm2236, %v2171, 0
        %v2271 = vsel %vm2236, %v2186, 0
        %2273 = vmatpush.bf16.msra.mxu0 0
        %2274 = vmatpush.bf16.msra.mxu0 0
        %2275 = vmatpush.bf16.msra.mxu0 %v2229
        %2276 = vmatpush.bf16.msra.mxu0 %v2228
        %2277 = vmatpush.bf16.msra.mxu0 %v2227
        %2278 = vmatpush.bf16.msra.mxu0 %v2226
        %2279 = vmatpush.bf16.msra.mxu0 %v2225
        %2280 = vmatpush.bf16.msra.mxu0 %v2224
        %2281 = vmatmul.bf16.gmra.mxu0 %v2238
        %v2282 = vpop.f32.mrf.mxu0
        %v2283 = vadd.f32 0.0, %v2282
        %v2284 = vpop.f32.mrf.mxu0
        %v2285 = vadd.f32 0.0, %v2284
        %2286 = vmatmul.bf16.gmra.mxu0 %v2241
        %v2287 = vpop.f32.mrf.mxu0
        %v2288 = vadd.f32 0.0, %v2287
        %v2289 = vpop.f32.mrf.mxu0
        %v2290 = vadd.f32 0.0, %v2289
        %2291 = vmatmul.bf16.gmra.mxu0 %v2244
        %v2292 = vpop.f32.mrf.mxu0
        %v2293 = vadd.f32 0.0, %v2292
        %v2294 = vpop.f32.mrf.mxu0
        %v2295 = vadd.f32 0.0, %v2294
        %2296 = vmatmul.bf16.gmra.mxu0 %v2247
        %v2297 = vpop.f32.mrf.mxu0
        %v2298 = vadd.f32 0.0, %v2297
        %v2299 = vpop.f32.mrf.mxu0
        %v2300 = vadd.f32 0.0, %v2299
        %2301 = vmatmul.bf16.gmra.mxu0 %v2250
        %v2302 = vpop.f32.mrf.mxu0
        %v2303 = vadd.f32 0.0, %v2302
        %v2304 = vpop.f32.mrf.mxu0
        %v2305 = vadd.f32 0.0, %v2304
        %2306 = vmatmul.bf16.gmra.mxu0 %v2253
        %v2307 = vpop.f32.mrf.mxu0
        %v2308 = vadd.f32 0.0, %v2307
        %v2309 = vpop.f32.mrf.mxu0
        %v2310 = vadd.f32 0.0, %v2309
        %2311 = vmatmul.bf16.gmra.mxu0 %v2256
        %v2312 = vpop.f32.mrf.mxu0
        %v2313 = vadd.f32 0.0, %v2312
        %v2314 = vpop.f32.mrf.mxu0
        %v2315 = vadd.f32 0.0, %v2314
        %2316 = vmatmul.bf16.gmra.mxu0 %v2259
        %v2317 = vpop.f32.mrf.mxu0
        %v2318 = vadd.f32 0.0, %v2317
        %v2319 = vpop.f32.mrf.mxu0
        %v2320 = vadd.f32 0.0, %v2319
        %2321 = vmatmul.bf16.gmra.mxu0 %v2262
        %v2322 = vpop.f32.mrf.mxu0
        %v2323 = vadd.f32 0.0, %v2322
        %v2324 = vpop.f32.mrf.mxu0
        %v2325 = vadd.f32 0.0, %v2324
        %2326 = vmatmul.bf16.gmra.mxu0 %v2265
        %v2327 = vpop.f32.mrf.mxu0
        %v2328 = vadd.f32 0.0, %v2327
        %v2329 = vpop.f32.mrf.mxu0
        %v2330 = vadd.f32 0.0, %v2329
        %2331 = vmatmul.bf16.gmra.mxu0 %v2268
        %v2332 = vpop.f32.mrf.mxu0
        %v2333 = vadd.f32 0.0, %v2332
        %v2334 = vpop.f32.mrf.mxu0
        %v2335 = vadd.f32 0.0, %v2334
        %2336 = vmatmul.bf16.gmra.mxu0 %v2271
        %v2337 = vpop.f32.mrf.mxu0
        %v2338 = vadd.f32 0.0, %v2337
        %v2339 = vpop.f32.mrf.mxu0
        %v2340 = vadd.f32 0.0, %v2339
        %2341 = vdwg.mxu0
        %v2354 = vunpack.c.l.b16 %v1490
        %v2355 = vunpack.c.l.b16 %v1491
        %v2356 = vunpack.c.l.b16 %v1492
        %v2357 = vunpack.c.l.b16 %v1493
        %v2358 = vunpack.c.l.b16 %v1494
        %v2359 = vunpack.c.l.b16 %v1495
        %v2360 = vunpack.c.l.b16 %v1496
        %v2361 = vunpack.c.l.b16 %v1497
        %v2362 = vunpack.c.l.b16 %v1498
        %v2363 = vunpack.c.l.b16 %v1499
        %v2364 = vunpack.c.l.b16 %v1500
        %v2365 = vunpack.c.l.b16 %v1501
        %v2366 = vpack.c.b16 %v2355, %v2354
        %v2367 = vpack.c.b16 %v2357, %v2356
        %v2368 = vpack.c.b16 %v2359, %v2358
        %v2369 = vpack.c.b16 %v2361, %v2360
        %v2370 = vpack.c.b16 %v2363, %v2362
        %v2371 = vpack.c.b16 %v2365, %v2364
        %v2379 = vsel %vm2236, %v1324, 0
        %v2382 = vsel %vm2236, %v1339, 0
        %v2385 = vsel %vm2236, %v1354, 0
        %v2388 = vsel %vm2236, %v1369, 0
        %v2391 = vsel %vm2236, %v1384, 0
        %v2394 = vsel %vm2236, %v1399, 0
        %v2397 = vsel %vm2236, %v1414, 0
        %v2400 = vsel %vm2236, %v1429, 0
        %v2403 = vsel %vm2236, %v1444, 0
        %v2406 = vsel %vm2236, %v1459, 0
        %v2409 = vsel %vm2236, %v1474, 0
        %v2412 = vsel %vm2236, %v1489, 0
        %2414 = vmatpush.bf16.msra.mxu0 0
        %2415 = vmatpush.bf16.msra.mxu0 0
        %2416 = vmatpush.bf16.msra.mxu0 %v2371
        %2417 = vmatpush.bf16.msra.mxu0 %v2370
        %2418 = vmatpush.bf16.msra.mxu0 %v2369
        %2419 = vmatpush.bf16.msra.mxu0 %v2368
        %2420 = vmatpush.bf16.msra.mxu0 %v2367
        %2421 = vmatpush.bf16.msra.mxu0 %v2366
        %2422 = vmatmul.bf16.gmra.mxu0 %v2379
        %v2423 = vpop.f32.mrf.mxu0
        %v2424 = vadd.f32 %v2283, %v2423
        %v2425 = vpop.f32.mrf.mxu0
        %v2426 = vadd.f32 %v2285, %v2425
        %2427 = vmatmul.bf16.gmra.mxu0 %v2382
        %v2428 = vpop.f32.mrf.mxu0
        %v2429 = vadd.f32 %v2288, %v2428
        %v2430 = vpop.f32.mrf.mxu0
        %v2431 = vadd.f32 %v2290, %v2430
        %2432 = vmatmul.bf16.gmra.mxu0 %v2385
        %v2433 = vpop.f32.mrf.mxu0
        %v2434 = vadd.f32 %v2293, %v2433
        %v2435 = vpop.f32.mrf.mxu0
        %v2436 = vadd.f32 %v2295, %v2435
        %2437 = vmatmul.bf16.gmra.mxu0 %v2388
        %v2438 = vpop.f32.mrf.mxu0
        %v2439 = vadd.f32 %v2298, %v2438
        %v2440 = vpop.f32.mrf.mxu0
        %v2441 = vadd.f32 %v2300, %v2440
        %2442 = vmatmul.bf16.gmra.mxu0 %v2391
        %v2443 = vpop.f32.mrf.mxu0
        %v2444 = vadd.f32 %v2303, %v2443
        %v2445 = vpop.f32.mrf.mxu0
        %v2446 = vadd.f32 %v2305, %v2445
        %2447 = vmatmul.bf16.gmra.mxu0 %v2394
        %v2448 = vpop.f32.mrf.mxu0
        %v2449 = vadd.f32 %v2308, %v2448
        %v2450 = vpop.f32.mrf.mxu0
        %v2451 = vadd.f32 %v2310, %v2450
        %2452 = vmatmul.bf16.gmra.mxu0 %v2397
        %v2453 = vpop.f32.mrf.mxu0
        %v2454 = vadd.f32 %v2313, %v2453
        %v2455 = vpop.f32.mrf.mxu0
        %v2456 = vadd.f32 %v2315, %v2455
        %2457 = vmatmul.bf16.gmra.mxu0 %v2400
        %v2458 = vpop.f32.mrf.mxu0
        %v2459 = vadd.f32 %v2318, %v2458
        %v2460 = vpop.f32.mrf.mxu0
        %v2461 = vadd.f32 %v2320, %v2460
        %2462 = vmatmul.bf16.gmra.mxu0 %v2403
        %v2463 = vpop.f32.mrf.mxu0
        %v2464 = vadd.f32 %v2323, %v2463
        %v2465 = vpop.f32.mrf.mxu0
        %v2466 = vadd.f32 %v2325, %v2465
        %2467 = vmatmul.bf16.gmra.mxu0 %v2406
        %v2468 = vpop.f32.mrf.mxu0
        %v2469 = vadd.f32 %v2328, %v2468
        %v2470 = vpop.f32.mrf.mxu0
        %v2471 = vadd.f32 %v2330, %v2470
        %2472 = vmatmul.bf16.gmra.mxu0 %v2409
        %v2473 = vpop.f32.mrf.mxu0
        %v2474 = vadd.f32 %v2333, %v2473
        %v2475 = vpop.f32.mrf.mxu0
        %v2476 = vadd.f32 %v2335, %v2475
        %2477 = vmatmul.bf16.gmra.mxu0 %v2412
        %v2478 = vpop.f32.mrf.mxu0
        %v2479 = vadd.f32 %v2338, %v2478
        %v2480 = vpop.f32.mrf.mxu0
        %v2481 = vadd.f32 %v2340, %v2480
        %2482 = vdwg.mxu0
        %s2483 = scalar_lea.vmem [#allocation2], 32
        %v2484 = vld [vmem:[%s2483] sm:$0x8]
        %v2485 = vld [vmem:[%s2483 + $0x4] sm:$0xf]
        %v2486 = vld [vmem:[%s2483 + $0x8] sm:$0xf]
        %v2487 = vld [vmem:[%s2483 + $0x10] sm:$0x8]
        %v2488 = vld [vmem:[%s2483 + $0x14] sm:$0xf]
        %v2489 = vld [vmem:[%s2483 + $0x18] sm:$0xf]
        %v2490 = vld [vmem:[%s2483 + $0x20] sm:$0x8]
        %v2491 = vld [vmem:[%s2483 + $0x24] sm:$0xf]
        %v2492 = vld [vmem:[%s2483 + $0x28] sm:$0xf]
        %v2493 = vld [vmem:[%s2483 + $0x30] sm:$0x8]
        %v2494 = vld [vmem:[%s2483 + $0x34] sm:$0xf]
        %v2495 = vld [vmem:[%s2483 + $0x38] sm:$0xf]
        %v2496 = vld [vmem:[%s2483 + $0x40] sm:$0x8]
        %v2497 = vld [vmem:[%s2483 + $0x44] sm:$0xf]
        %v2498 = vld [vmem:[%s2483 + $0x48] sm:$0xf]
        %v2499 = vld [vmem:[%s2483 + $0x50] sm:$0x8]
        %v2500 = vld [vmem:[%s2483 + $0x54] sm:$0xf]
        %v2501 = vld [vmem:[%s2483 + $0x58] sm:$0xf]
        %v2502 = vld [vmem:[%s2483 + $0x60] sm:$0x8]
        %v2503 = vld [vmem:[%s2483 + $0x64] sm:$0xf]
        %v2504 = vld [vmem:[%s2483 + $0x68] sm:$0xf]
        %v2505 = vld [vmem:[%s2483 + $0x70] sm:$0x8]
        %v2506 = vld [vmem:[%s2483 + $0x74] sm:$0xf]
        %v2507 = vld [vmem:[%s2483 + $0x78] sm:$0xf]
        %v2508 = vld [vmem:[%s2483 + $0x80] sm:$0x8]
        %v2509 = vld [vmem:[%s2483 + $0x84] sm:$0xf]
        %v2510 = vld [vmem:[%s2483 + $0x88] sm:$0xf]
        %v2511 = vld [vmem:[%s2483 + $0x90] sm:$0x8]
        %v2512 = vld [vmem:[%s2483 + $0x94] sm:$0xf]
        %v2513 = vld [vmem:[%s2483 + $0x98] sm:$0xf]
        %v2514 = vld [vmem:[%s2483 + $0xa0] sm:$0x8]
        %v2515 = vld [vmem:[%s2483 + $0xa4] sm:$0xf]
        %v2516 = vld [vmem:[%s2483 + $0xa8] sm:$0xf]
        %v2517 = vld [vmem:[%s2483 + $0xb0] sm:$0x8]
        %v2518 = vld [vmem:[%s2483 + $0xb4] sm:$0xf]
        %v2519 = vld [vmem:[%s2483 + $0xb8] sm:$0xf]
        %v2520 = vld [vmem:[%s2483 + $0xc] sm:$0x1]
        %v2521 = vld [vmem:[%s2483 + $0x1c] sm:$0x1]
        %v2522 = vld [vmem:[%s2483 + $0x2c] sm:$0x1]
        %v2523 = vld [vmem:[%s2483 + $0x3c] sm:$0x1]
        %v2524 = vld [vmem:[%s2483 + $0x4c] sm:$0x1]
        %v2525 = vld [vmem:[%s2483 + $0x5c] sm:$0x1]
        %v2526 = vld [vmem:[%s2483 + $0x6c] sm:$0x1]
        %v2527 = vld [vmem:[%s2483 + $0x7c] sm:$0x1]
        %v2528 = vld [vmem:[%s2483 + $0x8c] sm:$0x1]
        %v2529 = vld [vmem:[%s2483 + $0x9c] sm:$0x1]
        %v2530 = vld [vmem:[%s2483 + $0xac] sm:$0x1]
        %v2531 = vld [vmem:[%s2483 + $0xbc] sm:$0x1]
        %v2568 = vunpack.c.l.b16 %v2484
        %v2569 = vunpack.c.l.b16 %v2485
        %v2570 = vunpack.c.l.b16 %v2486
        %v2571 = vunpack.c.l.b16 %v2487
        %v2572 = vunpack.c.l.b16 %v2488
        %v2573 = vunpack.c.l.b16 %v2489
        %v2574 = vunpack.c.l.b16 %v2490
        %v2575 = vunpack.c.l.b16 %v2491
        %v2576 = vunpack.c.l.b16 %v2492
        %v2577 = vunpack.c.l.b16 %v2493
        %v2578 = vunpack.c.l.b16 %v2494
        %v2579 = vunpack.c.l.b16 %v2495
        %v2580 = vunpack.c.l.b16 %v2496
        %v2581 = vunpack.c.l.b16 %v2497
        %v2582 = vunpack.c.l.b16 %v2498
        %v2583 = vunpack.c.l.b16 %v2499
        %v2584 = vunpack.c.l.b16 %v2500
        %v2585 = vunpack.c.l.b16 %v2501
        %v2586 = vunpack.c.l.b16 %v2502
        %v2587 = vunpack.c.l.b16 %v2503
        %v2588 = vunpack.c.l.b16 %v2504
        %v2589 = vunpack.c.l.b16 %v2505
        %v2590 = vunpack.c.l.b16 %v2506
        %v2591 = vunpack.c.l.b16 %v2507
        %v2592 = vunpack.c.l.b16 %v2508
        %v2593 = vunpack.c.l.b16 %v2509
        %v2594 = vunpack.c.l.b16 %v2510
        %v2595 = vunpack.c.l.b16 %v2511
        %v2596 = vunpack.c.l.b16 %v2512
        %v2597 = vunpack.c.l.b16 %v2513
        %v2598 = vunpack.c.l.b16 %v2514
        %v2599 = vunpack.c.l.b16 %v2515
        %v2600 = vunpack.c.l.b16 %v2516
        %v2601 = vunpack.c.l.b16 %v2517
        %v2602 = vunpack.c.l.b16 %v2518
        %v2603 = vunpack.c.l.b16 %v2519
        %v2604 = vpack.c.b16 %v2569, %v2568
        %v2605 = vpack.c.b16 %v2570, %v2570
        %v2606 = vpack.c.b16 %v2572, %v2571
        %v2607 = vpack.c.b16 %v2573, %v2573
        %v2608 = vpack.c.b16 %v2575, %v2574
        %v2609 = vpack.c.b16 %v2576, %v2576
        %v2610 = vpack.c.b16 %v2578, %v2577
        %v2611 = vpack.c.b16 %v2579, %v2579
        %v2612 = vpack.c.b16 %v2581, %v2580
        %v2613 = vpack.c.b16 %v2582, %v2582
        %v2614 = vpack.c.b16 %v2584, %v2583
        %v2615 = vpack.c.b16 %v2585, %v2585
        %v2616 = vpack.c.b16 %v2587, %v2586
        %v2617 = vpack.c.b16 %v2588, %v2588
        %v2618 = vpack.c.b16 %v2590, %v2589
        %v2619 = vpack.c.b16 %v2591, %v2591
        %v2620 = vpack.c.b16 %v2593, %v2592
        %v2621 = vpack.c.b16 %v2594, %v2594
        %v2622 = vpack.c.b16 %v2596, %v2595
        %v2623 = vpack.c.b16 %v2597, %v2597
        %v2624 = vpack.c.b16 %v2599, %v2598
        %v2625 = vpack.c.b16 %v2600, %v2600
        %v2626 = vpack.c.b16 %v2602, %v2601
        %v2627 = vpack.c.b16 %v2603, %v2603
        %v2628 = vpack.c.b16 %v2570, %v2569
        %v2629 = vpack.c.b16 %v2573, %v2572
        %v2630 = vpack.c.b16 %v2576, %v2575
        %v2631 = vpack.c.b16 %v2579, %v2578
        %v2632 = vpack.c.b16 %v2582, %v2581
        %v2633 = vpack.c.b16 %v2585, %v2584
        %v2634 = vpack.c.b16 %v2588, %v2587
        %v2635 = vpack.c.b16 %v2591, %v2590
        %v2636 = vpack.c.b16 %v2594, %v2593
        %v2637 = vpack.c.b16 %v2597, %v2596
        %v2638 = vpack.c.b16 %v2600, %v2599
        %v2639 = vpack.c.b16 %v2603, %v2602
        %v2641 = vshrl.u32 %v2628, 16
        %v2643 = vrot.slane %v2641, 4
        %v2644 = vshll.u32 %v2628, 16
        %v2646 = vrot.slane %v2644, 5
        %v2647 = vor.u32 %v2643, %v2646
        %v2649 = vshrl.u32 %v2629, 16
        %v2651 = vrot.slane %v2649, 4
        %v2652 = vshll.u32 %v2629, 16
        %v2654 = vrot.slane %v2652, 5
        %v2655 = vor.u32 %v2651, %v2654
        %v2657 = vshrl.u32 %v2630, 16
        %v2659 = vrot.slane %v2657, 4
        %v2660 = vshll.u32 %v2630, 16
        %v2662 = vrot.slane %v2660, 5
        %v2663 = vor.u32 %v2659, %v2662
        %v2665 = vshrl.u32 %v2631, 16
        %v2667 = vrot.slane %v2665, 4
        %v2668 = vshll.u32 %v2631, 16
        %v2670 = vrot.slane %v2668, 5
        %v2671 = vor.u32 %v2667, %v2670
        %v2673 = vshrl.u32 %v2632, 16
        %v2675 = vrot.slane %v2673, 4
        %v2676 = vshll.u32 %v2632, 16
        %v2678 = vrot.slane %v2676, 5
        %v2679 = vor.u32 %v2675, %v2678
        %v2681 = vshrl.u32 %v2633, 16
        %v2683 = vrot.slane %v2681, 4
        %v2684 = vshll.u32 %v2633, 16
        %v2686 = vrot.slane %v2684, 5
        %v2687 = vor.u32 %v2683, %v2686
        %v2689 = vshrl.u32 %v2634, 16
        %v2691 = vrot.slane %v2689, 4
        %v2692 = vshll.u32 %v2634, 16
        %v2694 = vrot.slane %v2692, 5
        %v2695 = vor.u32 %v2691, %v2694
        %v2697 = vshrl.u32 %v2635, 16
        %v2699 = vrot.slane %v2697, 4
        %v2700 = vshll.u32 %v2635, 16
        %v2702 = vrot.slane %v2700, 5
        %v2703 = vor.u32 %v2699, %v2702
        %v2705 = vshrl.u32 %v2636, 16
        %v2707 = vrot.slane %v2705, 4
        %v2708 = vshll.u32 %v2636, 16
        %v2710 = vrot.slane %v2708, 5
        %v2711 = vor.u32 %v2707, %v2710
        %v2713 = vshrl.u32 %v2637, 16
        %v2715 = vrot.slane %v2713, 4
        %v2716 = vshll.u32 %v2637, 16
        %v2718 = vrot.slane %v2716, 5
        %v2719 = vor.u32 %v2715, %v2718
        %v2721 = vshrl.u32 %v2638, 16
        %v2723 = vrot.slane %v2721, 4
        %v2724 = vshll.u32 %v2638, 16
        %v2726 = vrot.slane %v2724, 5
        %v2727 = vor.u32 %v2723, %v2726
        %v2729 = vshrl.u32 %v2639, 16
        %v2731 = vrot.slane %v2729, 4
        %v2732 = vshll.u32 %v2639, 16
        %v2734 = vrot.slane %v2732, 5
        %v2735 = vor.u32 %v2731, %v2734
        %2736 = vrot.lane.b32.xlu0 %v2647, 32
        %v2737 = vpop.permute.xlu0 %2736
        %2738 = vrot.lane.b32.xlu0 %v2655, 32
        %v2739 = vpop.permute.xlu0 %2738
        %2740 = vrot.lane.b32.xlu0 %v2663, 32
        %v2741 = vpop.permute.xlu0 %2740
        %2742 = vrot.lane.b32.xlu0 %v2671, 32
        %v2743 = vpop.permute.xlu0 %2742
        %2744 = vrot.lane.b32.xlu0 %v2679, 32
        %v2745 = vpop.permute.xlu0 %2744
        %2746 = vrot.lane.b32.xlu0 %v2687, 32
        %v2747 = vpop.permute.xlu0 %2746
        %2748 = vrot.lane.b32.xlu0 %v2695, 32
        %v2749 = vpop.permute.xlu0 %2748
        %2750 = vrot.lane.b32.xlu0 %v2703, 32
        %v2751 = vpop.permute.xlu0 %2750
        %2752 = vrot.lane.b32.xlu0 %v2711, 32
        %v2753 = vpop.permute.xlu0 %2752
        %2754 = vrot.lane.b32.xlu0 %v2719, 32
        %v2755 = vpop.permute.xlu0 %2754
        %2756 = vrot.lane.b32.xlu0 %v2727, 32
        %v2757 = vpop.permute.xlu0 %2756
        %2758 = vrot.lane.b32.xlu0 %v2735, 32
        %v2759 = vpop.permute.xlu0 %2758
        %v2772 = vunpack.c.l.b16 %v2520
        %v2773 = vunpack.c.l.b16 %v2521
        %v2774 = vunpack.c.l.b16 %v2522
        %v2775 = vunpack.c.l.b16 %v2523
        %v2776 = vunpack.c.l.b16 %v2524
        %v2777 = vunpack.c.l.b16 %v2525
        %v2778 = vunpack.c.l.b16 %v2526
        %v2779 = vunpack.c.l.b16 %v2527
        %v2780 = vunpack.c.l.b16 %v2528
        %v2781 = vunpack.c.l.b16 %v2529
        %v2782 = vunpack.c.l.b16 %v2530
        %v2783 = vunpack.c.l.b16 %v2531
        %v2784 = vpack.c.b16 %v2772, %v2772
        %v2785 = vpack.c.b16 %v2773, %v2773
        %v2786 = vpack.c.b16 %v2774, %v2774
        %v2787 = vpack.c.b16 %v2775, %v2775
        %v2788 = vpack.c.b16 %v2776, %v2776
        %v2789 = vpack.c.b16 %v2777, %v2777
        %v2790 = vpack.c.b16 %v2778, %v2778
        %v2791 = vpack.c.b16 %v2779, %v2779
        %v2792 = vpack.c.b16 %v2780, %v2780
        %v2793 = vpack.c.b16 %v2781, %v2781
        %v2794 = vpack.c.b16 %v2782, %v2782
        %v2795 = vpack.c.b16 %v2783, %v2783
        %v2796 = vrot.slane %v2628, 5
        %v2797 = vrot.slane %v2784, 5
        %v2798 = vsel %vm1114, %v2796, %v2797
        %v2799 = vrot.slane %v2629, 5
        %v2800 = vrot.slane %v2785, 5
        %v2801 = vsel %vm1114, %v2799, %v2800
        %v2802 = vrot.slane %v2630, 5
        %v2803 = vrot.slane %v2786, 5
        %v2804 = vsel %vm1114, %v2802, %v2803
        %v2805 = vrot.slane %v2631, 5
        %v2806 = vrot.slane %v2787, 5
        %v2807 = vsel %vm1114, %v2805, %v2806
        %v2808 = vrot.slane %v2632, 5
        %v2809 = vrot.slane %v2788, 5
        %v2810 = vsel %vm1114, %v2808, %v2809
        %v2811 = vrot.slane %v2633, 5
        %v2812 = vrot.slane %v2789, 5
        %v2813 = vsel %vm1114, %v2811, %v2812
        %v2814 = vrot.slane %v2634, 5
        %v2815 = vrot.slane %v2790, 5
        %v2816 = vsel %vm1114, %v2814, %v2815
        %v2817 = vrot.slane %v2635, 5
        %v2818 = vrot.slane %v2791, 5
        %v2819 = vsel %vm1114, %v2817, %v2818
        %v2820 = vrot.slane %v2636, 5
        %v2821 = vrot.slane %v2792, 5
        %v2822 = vsel %vm1114, %v2820, %v2821
        %v2823 = vrot.slane %v2637, 5
        %v2824 = vrot.slane %v2793, 5
        %v2825 = vsel %vm1114, %v2823, %v2824
        %v2826 = vrot.slane %v2638, 5
        %v2827 = vrot.slane %v2794, 5
        %v2828 = vsel %vm1114, %v2826, %v2827
        %v2829 = vrot.slane %v2639, 5
        %v2830 = vrot.slane %v2795, 5
        %v2831 = vsel %vm1114, %v2829, %v2830
        %2832 = vrot.lane.b32.xlu0 %v2796, 64
        %v2833 = vpop.permute.xlu0 %2832
        %2834 = vrot.lane.b32.xlu0 %v2798, 64
        %v2835 = vpop.permute.xlu0 %2834
        %2836 = vrot.lane.b32.xlu0 %v2799, 64
        %v2837 = vpop.permute.xlu0 %2836
        %2838 = vrot.lane.b32.xlu0 %v2801, 64
        %v2839 = vpop.permute.xlu0 %2838
        %2840 = vrot.lane.b32.xlu0 %v2802, 64
        %v2841 = vpop.permute.xlu0 %2840
        %2842 = vrot.lane.b32.xlu0 %v2804, 64
        %v2843 = vpop.permute.xlu0 %2842
        %2844 = vrot.lane.b32.xlu0 %v2805, 64
        %v2845 = vpop.permute.xlu0 %2844
        %2846 = vrot.lane.b32.xlu0 %v2807, 64
        %v2847 = vpop.permute.xlu0 %2846
        %2848 = vrot.lane.b32.xlu0 %v2808, 64
        %v2849 = vpop.permute.xlu0 %2848
        %2850 = vrot.lane.b32.xlu0 %v2810, 64
        %v2851 = vpop.permute.xlu0 %2850
        %2852 = vrot.lane.b32.xlu0 %v2811, 64
        %v2853 = vpop.permute.xlu0 %2852
        %2854 = vrot.lane.b32.xlu0 %v2813, 64
        %v2855 = vpop.permute.xlu0 %2854
        %2856 = vrot.lane.b32.xlu0 %v2814, 64
        %v2857 = vpop.permute.xlu0 %2856
        %2858 = vrot.lane.b32.xlu0 %v2816, 64
        %v2859 = vpop.permute.xlu0 %2858
        %2860 = vrot.lane.b32.xlu0 %v2817, 64
        %v2861 = vpop.permute.xlu0 %2860
        %2862 = vrot.lane.b32.xlu0 %v2819, 64
        %v2863 = vpop.permute.xlu0 %2862
        %2864 = vrot.lane.b32.xlu0 %v2820, 64
        %v2865 = vpop.permute.xlu0 %2864
        %2866 = vrot.lane.b32.xlu0 %v2822, 64
        %v2867 = vpop.permute.xlu0 %2866
        %2868 = vrot.lane.b32.xlu0 %v2823, 64
        %v2869 = vpop.permute.xlu0 %2868
        %2870 = vrot.lane.b32.xlu0 %v2825, 64
        %v2871 = vpop.permute.xlu0 %2870
        %2872 = vrot.lane.b32.xlu0 %v2826, 64
        %v2873 = vpop.permute.xlu0 %2872
        %2874 = vrot.lane.b32.xlu0 %v2828, 64
        %v2875 = vpop.permute.xlu0 %2874
        %2876 = vrot.lane.b32.xlu0 %v2829, 64
        %v2877 = vpop.permute.xlu0 %2876
        %2878 = vrot.lane.b32.xlu0 %v2831, 64
        %v2879 = vpop.permute.xlu0 %2878
        %v2882 = vsel %vm1199, %v2604, %v2737
        %v2884 = vsel %vm1199, %v2605, %v2737
        %v2887 = vsel %vm1199, %v2606, %v2739
        %v2889 = vsel %vm1199, %v2607, %v2739
        %v2892 = vsel %vm1199, %v2608, %v2741
        %v2894 = vsel %vm1199, %v2609, %v2741
        %v2897 = vsel %vm1199, %v2610, %v2743
        %v2899 = vsel %vm1199, %v2611, %v2743
        %v2902 = vsel %vm1199, %v2612, %v2745
        %v2904 = vsel %vm1199, %v2613, %v2745
        %v2907 = vsel %vm1199, %v2614, %v2747
        %v2909 = vsel %vm1199, %v2615, %v2747
        %v2912 = vsel %vm1199, %v2616, %v2749
        %v2914 = vsel %vm1199, %v2617, %v2749
        %v2917 = vsel %vm1199, %v2618, %v2751
        %v2919 = vsel %vm1199, %v2619, %v2751
        %v2922 = vsel %vm1199, %v2620, %v2753
        %v2924 = vsel %vm1199, %v2621, %v2753
        %v2927 = vsel %vm1199, %v2622, %v2755
        %v2929 = vsel %vm1199, %v2623, %v2755
        %v2932 = vsel %vm1199, %v2624, %v2757
        %v2934 = vsel %vm1199, %v2625, %v2757
        %v2937 = vsel %vm1199, %v2626, %v2759
        %v2939 = vsel %vm1199, %v2627, %v2759
        %v2941 = vsel %vm1260, %v2882, %v2833
        %v2943 = vsel %vm1260, %v2884, %v2835
        %v2945 = vsel %vm1260, %v2887, %v2837
        %v2947 = vsel %vm1260, %v2889, %v2839
        %v2949 = vsel %vm1260, %v2892, %v2841
        %v2951 = vsel %vm1260, %v2894, %v2843
        %v2953 = vsel %vm1260, %v2897, %v2845
        %v2955 = vsel %vm1260, %v2899, %v2847
        %v2957 = vsel %vm1260, %v2902, %v2849
        %v2959 = vsel %vm1260, %v2904, %v2851
        %v2961 = vsel %vm1260, %v2907, %v2853
        %v2963 = vsel %vm1260, %v2909, %v2855
        %v2965 = vsel %vm1260, %v2912, %v2857
        %v2967 = vsel %vm1260, %v2914, %v2859
        %v2969 = vsel %vm1260, %v2917, %v2861
        %v2971 = vsel %vm1260, %v2919, %v2863
        %v2973 = vsel %vm1260, %v2922, %v2865
        %v2975 = vsel %vm1260, %v2924, %v2867
        %v2977 = vsel %vm1260, %v2927, %v2869
        %v2979 = vsel %vm1260, %v2929, %v2871
        %v2981 = vsel %vm1260, %v2932, %v2873
        %v2983 = vsel %vm1260, %v2934, %v2875
        %v2985 = vsel %vm1260, %v2937, %v2877
        %v2987 = vsel %vm1260, %v2939, %v2879
        %v2988 = vshrl.u32 %v2941, 16
        %v2990 = vrot.slane %v2988, 3
        %v2991 = vshll.u32 %v2941, 16
        %v2993 = vrot.slane %v2991, 4
        %v2994 = vor.u32 %v2990, %v2993
        %v2995 = vshrl.u32 %v2943, 16
        %v2997 = vrot.slane %v2995, 3
        %v2998 = vshll.u32 %v2943, 16
        %v3000 = vrot.slane %v2998, 4
        %v3001 = vor.u32 %v2997, %v3000
        %v3002 = vsel %vm1309, %v2994, %v3001
        %v3003 = vshrl.u32 %v2945, 16
        %v3005 = vrot.slane %v3003, 3
        %v3006 = vshll.u32 %v2945, 16
        %v3008 = vrot.slane %v3006, 4
        %v3009 = vor.u32 %v3005, %v3008
        %v3010 = vshrl.u32 %v2947, 16
        %v3012 = vrot.slane %v3010, 3
        %v3013 = vshll.u32 %v2947, 16
        %v3015 = vrot.slane %v3013, 4
        %v3016 = vor.u32 %v3012, %v3015
        %v3017 = vsel %vm1309, %v3009, %v3016
        %v3018 = vshrl.u32 %v2949, 16
        %v3020 = vrot.slane %v3018, 3
        %v3021 = vshll.u32 %v2949, 16
        %v3023 = vrot.slane %v3021, 4
        %v3024 = vor.u32 %v3020, %v3023
        %v3025 = vshrl.u32 %v2951, 16
        %v3027 = vrot.slane %v3025, 3
        %v3028 = vshll.u32 %v2951, 16
        %v3030 = vrot.slane %v3028, 4
        %v3031 = vor.u32 %v3027, %v3030
        %v3032 = vsel %vm1309, %v3024, %v3031
        %v3033 = vshrl.u32 %v2953, 16
        %v3035 = vrot.slane %v3033, 3
        %v3036 = vshll.u32 %v2953, 16
        %v3038 = vrot.slane %v3036, 4
        %v3039 = vor.u32 %v3035, %v3038
        %v3040 = vshrl.u32 %v2955, 16
        %v3042 = vrot.slane %v3040, 3
        %v3043 = vshll.u32 %v2955, 16
        %v3045 = vrot.slane %v3043, 4
        %v3046 = vor.u32 %v3042, %v3045
        %v3047 = vsel %vm1309, %v3039, %v3046
        %v3048 = vshrl.u32 %v2957, 16
        %v3050 = vrot.slane %v3048, 3
        %v3051 = vshll.u32 %v2957, 16
        %v3053 = vrot.slane %v3051, 4
        %v3054 = vor.u32 %v3050, %v3053
        %v3055 = vshrl.u32 %v2959, 16
        %v3057 = vrot.slane %v3055, 3
        %v3058 = vshll.u32 %v2959, 16
        %v3060 = vrot.slane %v3058, 4
        %v3061 = vor.u32 %v3057, %v3060
        %v3062 = vsel %vm1309, %v3054, %v3061
        %v3063 = vshrl.u32 %v2961, 16
        %v3065 = vrot.slane %v3063, 3
        %v3066 = vshll.u32 %v2961, 16
        %v3068 = vrot.slane %v3066, 4
        %v3069 = vor.u32 %v3065, %v3068
        %v3070 = vshrl.u32 %v2963, 16
        %v3072 = vrot.slane %v3070, 3
        %v3073 = vshll.u32 %v2963, 16
        %v3075 = vrot.slane %v3073, 4
        %v3076 = vor.u32 %v3072, %v3075
        %v3077 = vsel %vm1309, %v3069, %v3076
        %v3078 = vshrl.u32 %v2965, 16
        %v3080 = vrot.slane %v3078, 3
        %v3081 = vshll.u32 %v2965, 16
        %v3083 = vrot.slane %v3081, 4
        %v3084 = vor.u32 %v3080, %v3083
        %v3085 = vshrl.u32 %v2967, 16
        %v3087 = vrot.slane %v3085, 3
        %v3088 = vshll.u32 %v2967, 16
        %v3090 = vrot.slane %v3088, 4
        %v3091 = vor.u32 %v3087, %v3090
        %v3092 = vsel %vm1309, %v3084, %v3091
        %v3093 = vshrl.u32 %v2969, 16
        %v3095 = vrot.slane %v3093, 3
        %v3096 = vshll.u32 %v2969, 16
        %v3098 = vrot.slane %v3096, 4
        %v3099 = vor.u32 %v3095, %v3098
        %v3100 = vshrl.u32 %v2971, 16
        %v3102 = vrot.slane %v3100, 3
        %v3103 = vshll.u32 %v2971, 16
        %v3105 = vrot.slane %v3103, 4
        %v3106 = vor.u32 %v3102, %v3105
        %v3107 = vsel %vm1309, %v3099, %v3106
        %v3108 = vshrl.u32 %v2973, 16
        %v3110 = vrot.slane %v3108, 3
        %v3111 = vshll.u32 %v2973, 16
        %v3113 = vrot.slane %v3111, 4
        %v3114 = vor.u32 %v3110, %v3113
        %v3115 = vshrl.u32 %v2975, 16
        %v3117 = vrot.slane %v3115, 3
        %v3118 = vshll.u32 %v2975, 16
        %v3120 = vrot.slane %v3118, 4
        %v3121 = vor.u32 %v3117, %v3120
        %v3122 = vsel %vm1309, %v3114, %v3121
        %v3123 = vshrl.u32 %v2977, 16
        %v3125 = vrot.slane %v3123, 3
        %v3126 = vshll.u32 %v2977, 16
        %v3128 = vrot.slane %v3126, 4
        %v3129 = vor.u32 %v3125, %v3128
        %v3130 = vshrl.u32 %v2979, 16
        %v3132 = vrot.slane %v3130, 3
        %v3133 = vshll.u32 %v2979, 16
        %v3135 = vrot.slane %v3133, 4
        %v3136 = vor.u32 %v3132, %v3135
        %v3137 = vsel %vm1309, %v3129, %v3136
        %v3138 = vshrl.u32 %v2981, 16
        %v3140 = vrot.slane %v3138, 3
        %v3141 = vshll.u32 %v2981, 16
        %v3143 = vrot.slane %v3141, 4
        %v3144 = vor.u32 %v3140, %v3143
        %v3145 = vshrl.u32 %v2983, 16
        %v3147 = vrot.slane %v3145, 3
        %v3148 = vshll.u32 %v2983, 16
        %v3150 = vrot.slane %v3148, 4
        %v3151 = vor.u32 %v3147, %v3150
        %v3152 = vsel %vm1309, %v3144, %v3151
        %v3153 = vshrl.u32 %v2985, 16
        %v3155 = vrot.slane %v3153, 3
        %v3156 = vshll.u32 %v2985, 16
        %v3158 = vrot.slane %v3156, 4
        %v3159 = vor.u32 %v3155, %v3158
        %v3160 = vshrl.u32 %v2987, 16
        %v3162 = vrot.slane %v3160, 3
        %v3163 = vshll.u32 %v2987, 16
        %v3165 = vrot.slane %v3163, 4
        %v3166 = vor.u32 %v3162, %v3165
        %v3167 = vsel %vm1309, %v3159, %v3166
        %s3168 = scalar_lea.vmem %s4, 96
        %v3169 = vld [vmem:[%s3168] sm:$0xf]
        %v3170 = vld [vmem:[%s3168 + $0x4] sm:$0xf]
        %v3171 = vld [vmem:[%s3168 + $0x8] sm:$0xf]
        %v3172 = vld [vmem:[%s3168 + $0xc] sm:$0xf]
        %v3173 = vld [vmem:[%s3168 + $0x10] sm:$0xf]
        %v3174 = vld [vmem:[%s3168 + $0x14] sm:$0xf]
        %v3175 = vld [vmem:[%s3168 + $0x18] sm:$0xf]
        %v3176 = vld [vmem:[%s3168 + $0x1c] sm:$0xf]
        %v3177 = vld [vmem:[%s3168 + $0x20] sm:$0xf]
        %v3178 = vld [vmem:[%s3168 + $0x24] sm:$0xf]
        %v3179 = vld [vmem:[%s3168 + $0x28] sm:$0xf]
        %v3180 = vld [vmem:[%s3168 + $0x2c] sm:$0xf]
        %v3193 = vunpack.c.l.b16 %v3169
        %v3194 = vunpack.c.l.b16 %v3170
        %v3195 = vunpack.c.l.b16 %v3171
        %v3196 = vunpack.c.l.b16 %v3172
        %v3197 = vunpack.c.l.b16 %v3173
        %v3198 = vunpack.c.l.b16 %v3174
        %v3199 = vunpack.c.l.b16 %v3175
        %v3200 = vunpack.c.l.b16 %v3176
        %v3201 = vunpack.c.l.b16 %v3177
        %v3202 = vunpack.c.l.b16 %v3178
        %v3203 = vunpack.c.l.b16 %v3179
        %v3204 = vunpack.c.l.b16 %v3180
        %v3205 = vpack.c.b16 %v3194, %v3193
        %v3206 = vpack.c.b16 %v3196, %v3195
        %v3207 = vpack.c.b16 %v3198, %v3197
        %v3208 = vpack.c.b16 %v3200, %v3199
        %v3209 = vpack.c.b16 %v3202, %v3201
        %v3210 = vpack.c.b16 %v3204, %v3203
        %v3218 = vsel %vm2236, %v3002, 0
        %v3221 = vsel %vm2236, %v3017, 0
        %v3224 = vsel %vm2236, %v3032, 0
        %v3227 = vsel %vm2236, %v3047, 0
        %v3230 = vsel %vm2236, %v3062, 0
        %v3233 = vsel %vm2236, %v3077, 0
        %v3236 = vsel %vm2236, %v3092, 0
        %v3239 = vsel %vm2236, %v3107, 0
        %v3242 = vsel %vm2236, %v3122, 0
        %v3245 = vsel %vm2236, %v3137, 0
        %v3248 = vsel %vm2236, %v3152, 0
        %v3251 = vsel %vm2236, %v3167, 0
        %3253 = vmatpush.bf16.msra.mxu0 0
        %3254 = vmatpush.bf16.msra.mxu0 0
        %3255 = vmatpush.bf16.msra.mxu0 %v3210
        %3256 = vmatpush.bf16.msra.mxu0 %v3209
        %3257 = vmatpush.bf16.msra.mxu0 %v3208
        %3258 = vmatpush.bf16.msra.mxu0 %v3207
        %3259 = vmatpush.bf16.msra.mxu0 %v3206
        %3260 = vmatpush.bf16.msra.mxu0 %v3205
        %3261 = vmatmul.bf16.gmra.mxu0 %v3218
        %v3262 = vpop.f32.mrf.mxu0
        %v3263 = vadd.f32 0.0, %v3262
        %v3264 = vpop.f32.mrf.mxu0
        %v3265 = vadd.f32 0.0, %v3264
        %3266 = vmatmul.bf16.gmra.mxu0 %v3221
        %v3267 = vpop.f32.mrf.mxu0
        %v3268 = vadd.f32 0.0, %v3267
        %v3269 = vpop.f32.mrf.mxu0
        %v3270 = vadd.f32 0.0, %v3269
        %3271 = vmatmul.bf16.gmra.mxu0 %v3224
        %v3272 = vpop.f32.mrf.mxu0
        %v3273 = vadd.f32 0.0, %v3272
        %v3274 = vpop.f32.mrf.mxu0
        %v3275 = vadd.f32 0.0, %v3274
        %3276 = vmatmul.bf16.gmra.mxu0 %v3227
        %v3277 = vpop.f32.mrf.mxu0
        %v3278 = vadd.f32 0.0, %v3277
        %v3279 = vpop.f32.mrf.mxu0
        %v3280 = vadd.f32 0.0, %v3279
        %3281 = vmatmul.bf16.gmra.mxu0 %v3230
        %v3282 = vpop.f32.mrf.mxu0
        %v3283 = vadd.f32 0.0, %v3282
        %v3284 = vpop.f32.mrf.mxu0
        %v3285 = vadd.f32 0.0, %v3284
        %3286 = vmatmul.bf16.gmra.mxu0 %v3233
        %v3287 = vpop.f32.mrf.mxu0
        %v3288 = vadd.f32 0.0, %v3287
        %v3289 = vpop.f32.mrf.mxu0
        %v3290 = vadd.f32 0.0, %v3289
        %3291 = vmatmul.bf16.gmra.mxu0 %v3236
        %v3292 = vpop.f32.mrf.mxu0
        %v3293 = vadd.f32 0.0, %v3292
        %v3294 = vpop.f32.mrf.mxu0
        %v3295 = vadd.f32 0.0, %v3294
        %3296 = vmatmul.bf16.gmra.mxu0 %v3239
        %v3297 = vpop.f32.mrf.mxu0
        %v3298 = vadd.f32 0.0, %v3297
        %v3299 = vpop.f32.mrf.mxu0
        %v3300 = vadd.f32 0.0, %v3299
        %3301 = vmatmul.bf16.gmra.mxu0 %v3242
        %v3302 = vpop.f32.mrf.mxu0
        %v3303 = vadd.f32 0.0, %v3302
        %v3304 = vpop.f32.mrf.mxu0
        %v3305 = vadd.f32 0.0, %v3304
        %3306 = vmatmul.bf16.gmra.mxu0 %v3245
        %v3307 = vpop.f32.mrf.mxu0
        %v3308 = vadd.f32 0.0, %v3307
        %v3309 = vpop.f32.mrf.mxu0
        %v3310 = vadd.f32 0.0, %v3309
        %3311 = vmatmul.bf16.gmra.mxu0 %v3248
        %v3312 = vpop.f32.mrf.mxu0
        %v3313 = vadd.f32 0.0, %v3312
        %v3314 = vpop.f32.mrf.mxu0
        %v3315 = vadd.f32 0.0, %v3314
        %3316 = vmatmul.bf16.gmra.mxu0 %v3251
        %v3317 = vpop.f32.mrf.mxu0
        %v3318 = vadd.f32 0.0, %v3317
        %v3319 = vpop.f32.mrf.mxu0
        %v3320 = vadd.f32 0.0, %v3319
        %3321 = vdwg.mxu0
        %v3322 = vadd.f32 %v2424, %v3263
        %v3323 = vadd.f32 %v2426, %v3265
        %v3324 = vadd.f32 %v2429, %v3268
        %v3325 = vadd.f32 %v2431, %v3270
        %v3326 = vadd.f32 %v2434, %v3273
        %v3327 = vadd.f32 %v2436, %v3275
        %v3328 = vadd.f32 %v2439, %v3278
        %v3329 = vadd.f32 %v2441, %v3280
        %v3330 = vadd.f32 %v2444, %v3283
        %v3331 = vadd.f32 %v2446, %v3285
        %v3332 = vadd.f32 %v2449, %v3288
        %v3333 = vadd.f32 %v2451, %v3290
        %v3334 = vadd.f32 %v2454, %v3293
        %v3335 = vadd.f32 %v2456, %v3295
        %v3336 = vadd.f32 %v2459, %v3298
        %v3337 = vadd.f32 %v2461, %v3300
        %v3338 = vadd.f32 %v2464, %v3303
        %v3339 = vadd.f32 %v2466, %v3305
        %v3340 = vadd.f32 %v2469, %v3308
        %v3341 = vadd.f32 %v2471, %v3310
        %v3342 = vadd.f32 %v2474, %v3313
        %v3343 = vadd.f32 %v2476, %v3315
        %v3344 = vadd.f32 %v2479, %v3318
        %v3345 = vadd.f32 %v2481, %v3320
        %v3346 = vld [vmem:[%s5] sm:$0x1]
        %v3348 = vperm.slane %v3346, 0
        %v3350 = vadd.f32 %v3322, %v3348
        %v3351 = vadd.f32 %v3323, %v3348
        %v3352 = vadd.f32 %v3324, %v3348
        %v3353 = vadd.f32 %v3325, %v3348
        %v3354 = vadd.f32 %v3326, %v3348
        %v3355 = vadd.f32 %v3327, %v3348
        %v3356 = vadd.f32 %v3328, %v3348
        %v3357 = vadd.f32 %v3329, %v3348
        %v3358 = vadd.f32 %v3330, %v3348
        %v3359 = vadd.f32 %v3331, %v3348
        %v3360 = vadd.f32 %v3332, %v3348
        %v3361 = vadd.f32 %v3333, %v3348
        %v3362 = vadd.f32 %v3334, %v3348
        %v3363 = vadd.f32 %v3335, %v3348
        %v3364 = vadd.f32 %v3336, %v3348
        %v3365 = vadd.f32 %v3337, %v3348
        %v3366 = vadd.f32 %v3338, %v3348
        %v3367 = vadd.f32 %v3339, %v3348
        %v3368 = vadd.f32 %v3340, %v3348
        %v3369 = vadd.f32 %v3341, %v3348
        %v3370 = vadd.f32 %v3342, %v3348
        %v3371 = vadd.f32 %v3343, %v3348
        %v3372 = vadd.f32 %v3344, %v3348
        %v3373 = vadd.f32 %v3345, %v3348
        %v3374 = vmax.f32 %v3350, 0.0
        %v3375 = vmax.f32 %v3351, 0.0
        %v3376 = vmax.f32 %v3352, 0.0
        %v3377 = vmax.f32 %v3353, 0.0
        %v3378 = vmax.f32 %v3354, 0.0
        %v3379 = vmax.f32 %v3355, 0.0
        %v3380 = vmax.f32 %v3356, 0.0
        %v3381 = vmax.f32 %v3357, 0.0
        %v3382 = vmax.f32 %v3358, 0.0
        %v3383 = vmax.f32 %v3359, 0.0
        %v3384 = vmax.f32 %v3360, 0.0
        %v3385 = vmax.f32 %v3361, 0.0
        %v3386 = vmax.f32 %v3362, 0.0
        %v3387 = vmax.f32 %v3363, 0.0
        %v3388 = vmax.f32 %v3364, 0.0
        %v3389 = vmax.f32 %v3365, 0.0
        %v3390 = vmax.f32 %v3366, 0.0
        %v3391 = vmax.f32 %v3367, 0.0
        %v3392 = vmax.f32 %v3368, 0.0
        %v3393 = vmax.f32 %v3369, 0.0
        %v3394 = vmax.f32 %v3370, 0.0
        %v3395 = vmax.f32 %v3371, 0.0
        %v3396 = vmax.f32 %v3372, 0.0
        %v3397 = vmax.f32 %v3373, 0.0
        %v3398 = vpack.c.bf16 %v3374, %v3374
        %v3399 = vpack.c.bf16 %v3375, %v3375
        %v3400 = vpack.c.bf16 %v3376, %v3376
        %v3401 = vpack.c.bf16 %v3377, %v3377
        %v3402 = vpack.c.bf16 %v3378, %v3378
        %v3403 = vpack.c.bf16 %v3379, %v3379
        %v3404 = vpack.c.bf16 %v3380, %v3380
        %v3405 = vpack.c.bf16 %v3381, %v3381
        %v3406 = vpack.c.bf16 %v3382, %v3382
        %v3407 = vpack.c.bf16 %v3383, %v3383
        %v3408 = vpack.c.bf16 %v3384, %v3384
        %v3409 = vpack.c.bf16 %v3385, %v3385
        %v3410 = vpack.c.bf16 %v3386, %v3386
        %v3411 = vpack.c.bf16 %v3387, %v3387
        %v3412 = vpack.c.bf16 %v3388, %v3388
        %v3413 = vpack.c.bf16 %v3389, %v3389
        %v3414 = vpack.c.bf16 %v3390, %v3390
        %v3415 = vpack.c.bf16 %v3391, %v3391
        %v3416 = vpack.c.bf16 %v3392, %v3392
        %v3417 = vpack.c.bf16 %v3393, %v3393
        %v3418 = vpack.c.bf16 %v3394, %v3394
        %v3419 = vpack.c.bf16 %v3395, %v3395
        %v3420 = vpack.c.bf16 %v3396, %v3396
        %v3421 = vpack.c.bf16 %v3397, %v3397
        %3422 = vst.msk [vmem:[#allocation2 + $0x4] sm:$0xf] %vm420, %v3398
        %3423 = vst.msk [vmem:[#allocation2 + $0x8] sm:$0xf] %vm420, %v3399
        %3424 = vst.msk [vmem:[#allocation2 + $0x14] sm:$0xf] %vm420, %v3400
        %3425 = vst.msk [vmem:[#allocation2 + $0x18] sm:$0xf] %vm420, %v3401
        %3426 = vst.msk [vmem:[#allocation2 + $0x24] sm:$0xf] %vm420, %v3402
        %3427 = vst.msk [vmem:[#allocation2 + $0x28] sm:$0xf] %vm420, %v3403
        %3428 = vst.msk [vmem:[#allocation2 + $0x34] sm:$0xf] %vm420, %v3404
        %3429 = vst.msk [vmem:[#allocation2 + $0x38] sm:$0xf] %vm420, %v3405
        %3430 = vst.msk [vmem:[#allocation2 + $0x44] sm:$0xf] %vm420, %v3406
        %3431 = vst.msk [vmem:[#allocation2 + $0x48] sm:$0xf] %vm420, %v3407
        %3432 = vst.msk [vmem:[#allocation2 + $0x54] sm:$0xf] %vm420, %v3408
        %3433 = vst.msk [vmem:[#allocation2 + $0x58] sm:$0xf] %vm420, %v3409
        %3434 = vst.msk [vmem:[#allocation2 + $0x64] sm:$0xf] %vm420, %v3410
        %3435 = vst.msk [vmem:[#allocation2 + $0x68] sm:$0xf] %vm420, %v3411
        %3436 = vst.msk [vmem:[#allocation2 + $0x74] sm:$0xf] %vm420, %v3412
        %3437 = vst.msk [vmem:[#allocation2 + $0x78] sm:$0xf] %vm420, %v3413
        %3438 = vst.msk [vmem:[#allocation2 + $0x84] sm:$0xf] %vm420, %v3414
        %3439 = vst.msk [vmem:[#allocation2 + $0x88] sm:$0xf] %vm420, %v3415
        %3440 = vst.msk [vmem:[#allocation2 + $0x94] sm:$0xf] %vm420, %v3416
        %3441 = vst.msk [vmem:[#allocation2 + $0x98] sm:$0xf] %vm420, %v3417
        %3442 = vst.msk [vmem:[#allocation2 + $0xa4] sm:$0xf] %vm420, %v3418
        %3443 = vst.msk [vmem:[#allocation2 + $0xa8] sm:$0xf] %vm420, %v3419
        %3444 = vst.msk [vmem:[#allocation2 + $0xb4] sm:$0xf] %vm420, %v3420
        %3445 = vst.msk [vmem:[#allocation2 + $0xb8] sm:$0xf] %vm420, %v3421
        // Predicated region
        $region69: #{plain_refiner_pallas.1} parent=59 // pred_check
          %p3446 = pneg %p781
        $region70: #{plain_refiner_pallas.1} parent=59 // pred_check_branch
          %3448 = sbr.rel (%p3446) target = $region72
        $region71: #{plain_refiner_pallas.1} parent=59 // pred_region
          %3449 = vst.msk [vmem:[#allocation2 + $0x4] sm:$0xf] %vm420, 0
          %3450 = vst.msk [vmem:[#allocation2 + $0x8] sm:$0xf] %vm420, 0
          %3451 = vst.msk [vmem:[#allocation2 + $0x14] sm:$0xf] %vm420, 0
          %3452 = vst.msk [vmem:[#allocation2 + $0x18] sm:$0xf] %vm420, 0
        $region72: #{plain_refiner_pallas.1} parent=59 // pred_fallthru
          _
        // Predicated region
        $region73: #{plain_refiner_pallas.1} parent=59 // pred_check
          %p3453 = pneg %p791
        $region74: #{plain_refiner_pallas.1} parent=59 // pred_check_branch
          %3455 = sbr.rel (%p3453) target = $region76
        $region75: #{plain_refiner_pallas.1} parent=59 // pred_region
          %s3456 = scalar_lea.vmem [#allocation2], 160
          %3457 = vst.msk [vmem:[%s3456 + $0x4] sm:$0xf] %vm420, 0
          %3458 = vst.msk [vmem:[%s3456 + $0x8] sm:$0xf] %vm420, 0
          %3459 = vst.msk [vmem:[%s3456 + $0x14] sm:$0xf] %vm420, 0
          %3460 = vst.msk [vmem:[%s3456 + $0x18] sm:$0xf] %vm420, 0
        $region76: #{plain_refiner_pallas.1} parent=59 // pred_fallthru
          _
        %v3461 = vld [vmem:[#allocation2] sm:$0x8]
        %v3462 = vld [vmem:[#allocation2 + $0x4] sm:$0xf]
        %v3463 = vld [vmem:[#allocation2 + $0x8] sm:$0xf]
        %v3464 = vld [vmem:[#allocation2 + $0x10] sm:$0x8]
        %v3465 = vld [vmem:[#allocation2 + $0x14] sm:$0xf]
        %v3466 = vld [vmem:[#allocation2 + $0x18] sm:$0xf]
        %v3467 = vld [vmem:[#allocation2 + $0x20] sm:$0x8]
        %v3468 = vld [vmem:[#allocation2 + $0x24] sm:$0xf]
        %v3469 = vld [vmem:[#allocation2 + $0x28] sm:$0xf]
        %v3470 = vld [vmem:[#allocation2 + $0x30] sm:$0x8]
        %v3471 = vld [vmem:[#allocation2 + $0x34] sm:$0xf]
        %v3472 = vld [vmem:[#allocation2 + $0x38] sm:$0xf]
        %v3473 = vld [vmem:[#allocation2 + $0x40] sm:$0x8]
        %v3474 = vld [vmem:[#allocation2 + $0x44] sm:$0xf]
        %v3475 = vld [vmem:[#allocation2 + $0x48] sm:$0xf]
        %v3476 = vld [vmem:[#allocation2 + $0x50] sm:$0x8]
        %v3477 = vld [vmem:[#allocation2 + $0x54] sm:$0xf]
        %v3478 = vld [vmem:[#allocation2 + $0x58] sm:$0xf]
        %v3479 = vld [vmem:[#allocation2 + $0x60] sm:$0x8]
        %v3480 = vld [vmem:[#allocation2 + $0x64] sm:$0xf]
        %v3481 = vld [vmem:[#allocation2 + $0x68] sm:$0xf]
        %v3482 = vld [vmem:[#allocation2 + $0x70] sm:$0x8]
        %v3483 = vld [vmem:[#allocation2 + $0x74] sm:$0xf]
        %v3484 = vld [vmem:[#allocation2 + $0x78] sm:$0xf]
        %v3485 = vld [vmem:[#allocation2 + $0x80] sm:$0x8]
        %v3486 = vld [vmem:[#allocation2 + $0x84] sm:$0xf]
        %v3487 = vld [vmem:[#allocation2 + $0x88] sm:$0xf]
        %v3488 = vld [vmem:[#allocation2 + $0x90] sm:$0x8]
        %v3489 = vld [vmem:[#allocation2 + $0x94] sm:$0xf]
        %v3490 = vld [vmem:[#allocation2 + $0x98] sm:$0xf]
        %v3491 = vld [vmem:[#allocation2 + $0xc] sm:$0x1]
        %v3492 = vld [vmem:[#allocation2 + $0x1c] sm:$0x1]
        %v3493 = vld [vmem:[#allocation2 + $0x2c] sm:$0x1]
        %v3494 = vld [vmem:[#allocation2 + $0x3c] sm:$0x1]
        %v3495 = vld [vmem:[#allocation2 + $0x4c] sm:$0x1]
        %v3496 = vld [vmem:[#allocation2 + $0x5c] sm:$0x1]
        %v3497 = vld [vmem:[#allocation2 + $0x6c] sm:$0x1]
        %v3498 = vld [vmem:[#allocation2 + $0x7c] sm:$0x1]
        %v3499 = vld [vmem:[#allocation2 + $0x8c] sm:$0x1]
        %v3500 = vld [vmem:[#allocation2 + $0x9c] sm:$0x1]
        %v3531 = vunpack.c.l.b16 %v3461
        %v3532 = vunpack.c.l.b16 %v3462
        %v3533 = vunpack.c.l.b16 %v3463
        %v3534 = vunpack.c.l.b16 %v3464
        %v3535 = vunpack.c.l.b16 %v3465
        %v3536 = vunpack.c.l.b16 %v3466
        %v3537 = vunpack.c.l.b16 %v3467
        %v3538 = vunpack.c.l.b16 %v3468
        %v3539 = vunpack.c.l.b16 %v3469
        %v3540 = vunpack.c.l.b16 %v3470
        %v3541 = vunpack.c.l.b16 %v3471
        %v3542 = vunpack.c.l.b16 %v3472
        %v3543 = vunpack.c.l.b16 %v3473
        %v3544 = vunpack.c.l.b16 %v3474
        %v3545 = vunpack.c.l.b16 %v3475
        %v3546 = vunpack.c.l.b16 %v3476
        %v3547 = vunpack.c.l.b16 %v3477
        %v3548 = vunpack.c.l.b16 %v3478
        %v3549 = vunpack.c.l.b16 %v3479
        %v3550 = vunpack.c.l.b16 %v3480
        %v3551 = vunpack.c.l.b16 %v3481
        %v3552 = vunpack.c.l.b16 %v3482
        %v3553 = vunpack.c.l.b16 %v3483
        %v3554 = vunpack.c.l.b16 %v3484
        %v3555 = vunpack.c.l.b16 %v3485
        %v3556 = vunpack.c.l.b16 %v3486
        %v3557 = vunpack.c.l.b16 %v3487
        %v3558 = vunpack.c.l.b16 %v3488
        %v3559 = vunpack.c.l.b16 %v3489
        %v3560 = vunpack.c.l.b16 %v3490
        %v3561 = vpack.c.b16 %v3532, %v3531
        %v3562 = vpack.c.b16 %v3533, %v3533
        %v3563 = vpack.c.b16 %v3535, %v3534
        %v3564 = vpack.c.b16 %v3536, %v3536
        %v3565 = vpack.c.b16 %v3538, %v3537
        %v3566 = vpack.c.b16 %v3539, %v3539
        %v3567 = vpack.c.b16 %v3541, %v3540
        %v3568 = vpack.c.b16 %v3542, %v3542
        %v3569 = vpack.c.b16 %v3544, %v3543
        %v3570 = vpack.c.b16 %v3545, %v3545
        %v3571 = vpack.c.b16 %v3547, %v3546
        %v3572 = vpack.c.b16 %v3548, %v3548
        %v3573 = vpack.c.b16 %v3550, %v3549
        %v3574 = vpack.c.b16 %v3551, %v3551
        %v3575 = vpack.c.b16 %v3553, %v3552
        %v3576 = vpack.c.b16 %v3554, %v3554
        %v3577 = vpack.c.b16 %v3556, %v3555
        %v3578 = vpack.c.b16 %v3557, %v3557
        %v3579 = vpack.c.b16 %v3559, %v3558
        %v3580 = vpack.c.b16 %v3560, %v3560
        %v3581 = vpack.c.b16 %v3533, %v3532
        %v3582 = vpack.c.b16 %v3536, %v3535
        %v3583 = vpack.c.b16 %v3539, %v3538
        %v3584 = vpack.c.b16 %v3542, %v3541
        %v3585 = vpack.c.b16 %v3545, %v3544
        %v3586 = vpack.c.b16 %v3548, %v3547
        %v3587 = vpack.c.b16 %v3551, %v3550
        %v3588 = vpack.c.b16 %v3554, %v3553
        %v3589 = vpack.c.b16 %v3557, %v3556
        %v3590 = vpack.c.b16 %v3560, %v3559
        %v3592 = vshrl.u32 %v3581, 16
        %v3594 = vrot.slane %v3592, 4
        %v3595 = vshll.u32 %v3581, 16
        %v3597 = vrot.slane %v3595, 5
        %v3598 = vor.u32 %v3594, %v3597
        %v3600 = vshrl.u32 %v3582, 16
        %v3602 = vrot.slane %v3600, 4
        %v3603 = vshll.u32 %v3582, 16
        %v3605 = vrot.slane %v3603, 5
        %v3606 = vor.u32 %v3602, %v3605
        %v3608 = vshrl.u32 %v3583, 16
        %v3610 = vrot.slane %v3608, 4
        %v3611 = vshll.u32 %v3583, 16
        %v3613 = vrot.slane %v3611, 5
        %v3614 = vor.u32 %v3610, %v3613
        %v3616 = vshrl.u32 %v3584, 16
        %v3618 = vrot.slane %v3616, 4
        %v3619 = vshll.u32 %v3584, 16
        %v3621 = vrot.slane %v3619, 5
        %v3622 = vor.u32 %v3618, %v3621
        %v3624 = vshrl.u32 %v3585, 16
        %v3626 = vrot.slane %v3624, 4
        %v3627 = vshll.u32 %v3585, 16
        %v3629 = vrot.slane %v3627, 5
        %v3630 = vor.u32 %v3626, %v3629
        %v3632 = vshrl.u32 %v3586, 16
        %v3634 = vrot.slane %v3632, 4
        %v3635 = vshll.u32 %v3586, 16
        %v3637 = vrot.slane %v3635, 5
        %v3638 = vor.u32 %v3634, %v3637
        %v3640 = vshrl.u32 %v3587, 16
        %v3642 = vrot.slane %v3640, 4
        %v3643 = vshll.u32 %v3587, 16
        %v3645 = vrot.slane %v3643, 5
        %v3646 = vor.u32 %v3642, %v3645
        %v3648 = vshrl.u32 %v3588, 16
        %v3650 = vrot.slane %v3648, 4
        %v3651 = vshll.u32 %v3588, 16
        %v3653 = vrot.slane %v3651, 5
        %v3654 = vor.u32 %v3650, %v3653
        %v3656 = vshrl.u32 %v3589, 16
        %v3658 = vrot.slane %v3656, 4
        %v3659 = vshll.u32 %v3589, 16
        %v3661 = vrot.slane %v3659, 5
        %v3662 = vor.u32 %v3658, %v3661
        %v3664 = vshrl.u32 %v3590, 16
        %v3666 = vrot.slane %v3664, 4
        %v3667 = vshll.u32 %v3590, 16
        %v3669 = vrot.slane %v3667, 5
        %v3670 = vor.u32 %v3666, %v3669
        %3671 = vrot.lane.b32.xlu0 %v3598, 32
        %v3672 = vpop.permute.xlu0 %3671
        %3673 = vrot.lane.b32.xlu0 %v3606, 32
        %v3674 = vpop.permute.xlu0 %3673
        %3675 = vrot.lane.b32.xlu0 %v3614, 32
        %v3676 = vpop.permute.xlu0 %3675
        %3677 = vrot.lane.b32.xlu0 %v3622, 32
        %v3678 = vpop.permute.xlu0 %3677
        %3679 = vrot.lane.b32.xlu0 %v3630, 32
        %v3680 = vpop.permute.xlu0 %3679
        %3681 = vrot.lane.b32.xlu0 %v3638, 32
        %v3682 = vpop.permute.xlu0 %3681
        %3683 = vrot.lane.b32.xlu0 %v3646, 32
        %v3684 = vpop.permute.xlu0 %3683
        %3685 = vrot.lane.b32.xlu0 %v3654, 32
        %v3686 = vpop.permute.xlu0 %3685
        %3687 = vrot.lane.b32.xlu0 %v3662, 32
        %v3688 = vpop.permute.xlu0 %3687
        %3689 = vrot.lane.b32.xlu0 %v3670, 32
        %v3690 = vpop.permute.xlu0 %3689
        %v3701 = vunpack.c.l.b16 %v3491
        %v3702 = vunpack.c.l.b16 %v3492
        %v3703 = vunpack.c.l.b16 %v3493
        %v3704 = vunpack.c.l.b16 %v3494
        %v3705 = vunpack.c.l.b16 %v3495
        %v3706 = vunpack.c.l.b16 %v3496
        %v3707 = vunpack.c.l.b16 %v3497
        %v3708 = vunpack.c.l.b16 %v3498
        %v3709 = vunpack.c.l.b16 %v3499
        %v3710 = vunpack.c.l.b16 %v3500
        %v3711 = vpack.c.b16 %v3701, %v3701
        %v3712 = vpack.c.b16 %v3702, %v3702
        %v3713 = vpack.c.b16 %v3703, %v3703
        %v3714 = vpack.c.b16 %v3704, %v3704
        %v3715 = vpack.c.b16 %v3705, %v3705
        %v3716 = vpack.c.b16 %v3706, %v3706
        %v3717 = vpack.c.b16 %v3707, %v3707
        %v3718 = vpack.c.b16 %v3708, %v3708
        %v3719 = vpack.c.b16 %v3709, %v3709
        %v3720 = vpack.c.b16 %v3710, %v3710
        %v3721 = vrot.slane %v3581, 5
        %v3722 = vrot.slane %v3711, 5
        %v3723 = vsel %vm1114, %v3721, %v3722
        %v3724 = vrot.slane %v3582, 5
        %v3725 = vrot.slane %v3712, 5
        %v3726 = vsel %vm1114, %v3724, %v3725
        %v3727 = vrot.slane %v3583, 5
        %v3728 = vrot.slane %v3713, 5
        %v3729 = vsel %vm1114, %v3727, %v3728
        %v3730 = vrot.slane %v3584, 5
        %v3731 = vrot.slane %v3714, 5
        %v3732 = vsel %vm1114, %v3730, %v3731
        %v3733 = vrot.slane %v3585, 5
        %v3734 = vrot.slane %v3715, 5
        %v3735 = vsel %vm1114, %v3733, %v3734
        %v3736 = vrot.slane %v3586, 5
        %v3737 = vrot.slane %v3716, 5
        %v3738 = vsel %vm1114, %v3736, %v3737
        %v3739 = vrot.slane %v3587, 5
        %v3740 = vrot.slane %v3717, 5
        %v3741 = vsel %vm1114, %v3739, %v3740
        %v3742 = vrot.slane %v3588, 5
        %v3743 = vrot.slane %v3718, 5
        %v3744 = vsel %vm1114, %v3742, %v3743
        %v3745 = vrot.slane %v3589, 5
        %v3746 = vrot.slane %v3719, 5
        %v3747 = vsel %vm1114, %v3745, %v3746
        %v3748 = vrot.slane %v3590, 5
        %v3749 = vrot.slane %v3720, 5
        %v3750 = vsel %vm1114, %v3748, %v3749
        %3751 = vrot.lane.b32.xlu0 %v3721, 64
        %v3752 = vpop.permute.xlu0 %3751
        %3753 = vrot.lane.b32.xlu0 %v3723, 64
        %v3754 = vpop.permute.xlu0 %3753
        %3755 = vrot.lane.b32.xlu0 %v3724, 64
        %v3756 = vpop.permute.xlu0 %3755
        %3757 = vrot.lane.b32.xlu0 %v3726, 64
        %v3758 = vpop.permute.xlu0 %3757
        %3759 = vrot.lane.b32.xlu0 %v3727, 64
        %v3760 = vpop.permute.xlu0 %3759
        %3761 = vrot.lane.b32.xlu0 %v3729, 64
        %v3762 = vpop.permute.xlu0 %3761
        %3763 = vrot.lane.b32.xlu0 %v3730, 64
        %v3764 = vpop.permute.xlu0 %3763
        %3765 = vrot.lane.b32.xlu0 %v3732, 64
        %v3766 = vpop.permute.xlu0 %3765
        %3767 = vrot.lane.b32.xlu0 %v3733, 64
        %v3768 = vpop.permute.xlu0 %3767
        %3769 = vrot.lane.b32.xlu0 %v3735, 64
        %v3770 = vpop.permute.xlu0 %3769
        %3771 = vrot.lane.b32.xlu0 %v3736, 64
        %v3772 = vpop.permute.xlu0 %3771
        %3773 = vrot.lane.b32.xlu0 %v3738, 64
        %v3774 = vpop.permute.xlu0 %3773
        %3775 = vrot.lane.b32.xlu0 %v3739, 64
        %v3776 = vpop.permute.xlu0 %3775
        %3777 = vrot.lane.b32.xlu0 %v3741, 64
        %v3778 = vpop.permute.xlu0 %3777
        %3779 = vrot.lane.b32.xlu0 %v3742, 64
        %v3780 = vpop.permute.xlu0 %3779
        %3781 = vrot.lane.b32.xlu0 %v3744, 64
        %v3782 = vpop.permute.xlu0 %3781
        %3783 = vrot.lane.b32.xlu0 %v3745, 64
        %v3784 = vpop.permute.xlu0 %3783
        %3785 = vrot.lane.b32.xlu0 %v3747, 64
        %v3786 = vpop.permute.xlu0 %3785
        %3787 = vrot.lane.b32.xlu0 %v3748, 64
        %v3788 = vpop.permute.xlu0 %3787
        %3789 = vrot.lane.b32.xlu0 %v3750, 64
        %v3790 = vpop.permute.xlu0 %3789
        %v3793 = vsel %vm1199, %v3561, %v3672
        %v3795 = vsel %vm1199, %v3562, %v3672
        %v3798 = vsel %vm1199, %v3563, %v3674
        %v3800 = vsel %vm1199, %v3564, %v3674
        %v3803 = vsel %vm1199, %v3565, %v3676
        %v3805 = vsel %vm1199, %v3566, %v3676
        %v3808 = vsel %vm1199, %v3567, %v3678
        %v3810 = vsel %vm1199, %v3568, %v3678
        %v3813 = vsel %vm1199, %v3569, %v3680
        %v3815 = vsel %vm1199, %v3570, %v3680
        %v3818 = vsel %vm1199, %v3571, %v3682
        %v3820 = vsel %vm1199, %v3572, %v3682
        %v3823 = vsel %vm1199, %v3573, %v3684
        %v3825 = vsel %vm1199, %v3574, %v3684
        %v3828 = vsel %vm1199, %v3575, %v3686
        %v3830 = vsel %vm1199, %v3576, %v3686
        %v3833 = vsel %vm1199, %v3577, %v3688
        %v3835 = vsel %vm1199, %v3578, %v3688
        %v3838 = vsel %vm1199, %v3579, %v3690
        %v3840 = vsel %vm1199, %v3580, %v3690
        %v3842 = vsel %vm1260, %v3793, %v3752
        %v3844 = vsel %vm1260, %v3795, %v3754
        %v3846 = vsel %vm1260, %v3798, %v3756
        %v3848 = vsel %vm1260, %v3800, %v3758
        %v3850 = vsel %vm1260, %v3803, %v3760
        %v3852 = vsel %vm1260, %v3805, %v3762
        %v3854 = vsel %vm1260, %v3808, %v3764
        %v3856 = vsel %vm1260, %v3810, %v3766
        %v3858 = vsel %vm1260, %v3813, %v3768
        %v3860 = vsel %vm1260, %v3815, %v3770
        %v3862 = vsel %vm1260, %v3818, %v3772
        %v3864 = vsel %vm1260, %v3820, %v3774
        %v3866 = vsel %vm1260, %v3823, %v3776
        %v3868 = vsel %vm1260, %v3825, %v3778
        %v3870 = vsel %vm1260, %v3828, %v3780
        %v3872 = vsel %vm1260, %v3830, %v3782
        %v3874 = vsel %vm1260, %v3833, %v3784
        %v3876 = vsel %vm1260, %v3835, %v3786
        %v3878 = vsel %vm1260, %v3838, %v3788
        %v3880 = vsel %vm1260, %v3840, %v3790
        %v3881 = vshrl.u32 %v3842, 16
        %v3883 = vrot.slane %v3881, 3
        %v3884 = vshll.u32 %v3842, 16
        %v3886 = vrot.slane %v3884, 4
        %v3887 = vor.u32 %v3883, %v3886
        %v3888 = vshrl.u32 %v3844, 16
        %v3890 = vrot.slane %v3888, 3
        %v3891 = vshll.u32 %v3844, 16
        %v3893 = vrot.slane %v3891, 4
        %v3894 = vor.u32 %v3890, %v3893
        %v3895 = vsel %vm1309, %v3887, %v3894
        %v3896 = vshrl.u32 %v3846, 16
        %v3898 = vrot.slane %v3896, 3
        %v3899 = vshll.u32 %v3846, 16
        %v3901 = vrot.slane %v3899, 4
        %v3902 = vor.u32 %v3898, %v3901
        %v3903 = vshrl.u32 %v3848, 16
        %v3905 = vrot.slane %v3903, 3
        %v3906 = vshll.u32 %v3848, 16
        %v3908 = vrot.slane %v3906, 4
        %v3909 = vor.u32 %v3905, %v3908
        %v3910 = vsel %vm1309, %v3902, %v3909
        %v3911 = vshrl.u32 %v3850, 16
        %v3913 = vrot.slane %v3911, 3
        %v3914 = vshll.u32 %v3850, 16
        %v3916 = vrot.slane %v3914, 4
        %v3917 = vor.u32 %v3913, %v3916
        %v3918 = vshrl.u32 %v3852, 16
        %v3920 = vrot.slane %v3918, 3
        %v3921 = vshll.u32 %v3852, 16
        %v3923 = vrot.slane %v3921, 4
        %v3924 = vor.u32 %v3920, %v3923
        %v3925 = vsel %vm1309, %v3917, %v3924
        %v3926 = vshrl.u32 %v3854, 16
        %v3928 = vrot.slane %v3926, 3
        %v3929 = vshll.u32 %v3854, 16
        %v3931 = vrot.slane %v3929, 4
        %v3932 = vor.u32 %v3928, %v3931
        %v3933 = vshrl.u32 %v3856, 16
        %v3935 = vrot.slane %v3933, 3
        %v3936 = vshll.u32 %v3856, 16
        %v3938 = vrot.slane %v3936, 4
        %v3939 = vor.u32 %v3935, %v3938
        %v3940 = vsel %vm1309, %v3932, %v3939
        %v3941 = vshrl.u32 %v3858, 16
        %v3943 = vrot.slane %v3941, 3
        %v3944 = vshll.u32 %v3858, 16
        %v3946 = vrot.slane %v3944, 4
        %v3947 = vor.u32 %v3943, %v3946
        %v3948 = vshrl.u32 %v3860, 16
        %v3950 = vrot.slane %v3948, 3
        %v3951 = vshll.u32 %v3860, 16
        %v3953 = vrot.slane %v3951, 4
        %v3954 = vor.u32 %v3950, %v3953
        %v3955 = vsel %vm1309, %v3947, %v3954
        %v3956 = vshrl.u32 %v3862, 16
        %v3958 = vrot.slane %v3956, 3
        %v3959 = vshll.u32 %v3862, 16
        %v3961 = vrot.slane %v3959, 4
        %v3962 = vor.u32 %v3958, %v3961
        %v3963 = vshrl.u32 %v3864, 16
        %v3965 = vrot.slane %v3963, 3
        %v3966 = vshll.u32 %v3864, 16
        %v3968 = vrot.slane %v3966, 4
        %v3969 = vor.u32 %v3965, %v3968
        %v3970 = vsel %vm1309, %v3962, %v3969
        %v3971 = vshrl.u32 %v3866, 16
        %v3973 = vrot.slane %v3971, 3
        %v3974 = vshll.u32 %v3866, 16
        %v3976 = vrot.slane %v3974, 4
        %v3977 = vor.u32 %v3973, %v3976
        %v3978 = vshrl.u32 %v3868, 16
        %v3980 = vrot.slane %v3978, 3
        %v3981 = vshll.u32 %v3868, 16
        %v3983 = vrot.slane %v3981, 4
        %v3984 = vor.u32 %v3980, %v3983
        %v3985 = vsel %vm1309, %v3977, %v3984
        %v3986 = vshrl.u32 %v3870, 16
        %v3988 = vrot.slane %v3986, 3
        %v3989 = vshll.u32 %v3870, 16
        %v3991 = vrot.slane %v3989, 4
        %v3992 = vor.u32 %v3988, %v3991
        %v3993 = vshrl.u32 %v3872, 16
        %v3995 = vrot.slane %v3993, 3
        %v3996 = vshll.u32 %v3872, 16
        %v3998 = vrot.slane %v3996, 4
        %v3999 = vor.u32 %v3995, %v3998
        %v4000 = vsel %vm1309, %v3992, %v3999
        %v4001 = vshrl.u32 %v3874, 16
        %v4003 = vrot.slane %v4001, 3
        %v4004 = vshll.u32 %v3874, 16
        %v4006 = vrot.slane %v4004, 4
        %v4007 = vor.u32 %v4003, %v4006
        %v4008 = vshrl.u32 %v3876, 16
        %v4010 = vrot.slane %v4008, 3
        %v4011 = vshll.u32 %v3876, 16
        %v4013 = vrot.slane %v4011, 4
        %v4014 = vor.u32 %v4010, %v4013
        %v4015 = vsel %vm1309, %v4007, %v4014
        %v4016 = vshrl.u32 %v3878, 16
        %v4018 = vrot.slane %v4016, 3
        %v4019 = vshll.u32 %v3878, 16
        %v4021 = vrot.slane %v4019, 4
        %v4022 = vor.u32 %v4018, %v4021
        %v4023 = vshrl.u32 %v3880, 16
        %v4025 = vrot.slane %v4023, 3
        %v4026 = vshll.u32 %v3880, 16
        %v4028 = vrot.slane %v4026, 4
        %v4029 = vor.u32 %v4025, %v4028
        %v4030 = vsel %vm1309, %v4022, %v4029
        %v4031 = vld [vmem:[%s6] sm:$0xf]
        %v4032 = vld [vmem:[%s6 + $0x4] sm:$0xf]
        %v4033 = vld [vmem:[%s6 + $0x8] sm:$0xf]
        %v4034 = vld [vmem:[%s6 + $0xc] sm:$0xf]
        %v4035 = vld [vmem:[%s6 + $0x10] sm:$0xf]
        %v4036 = vld [vmem:[%s6 + $0x14] sm:$0xf]
        %v4037 = vld [vmem:[%s6 + $0x18] sm:$0xf]
        %v4038 = vld [vmem:[%s6 + $0x1c] sm:$0xf]
        %v4039 = vld [vmem:[%s6 + $0x20] sm:$0xf]
        %v4040 = vld [vmem:[%s6 + $0x24] sm:$0xf]
        %v4041 = vld [vmem:[%s6 + $0x28] sm:$0xf]
        %v4042 = vld [vmem:[%s6 + $0x2c] sm:$0xf]
        %v4043 = vld [vmem:[%s1502] sm:$0x8]
        %v4044 = vld [vmem:[%s1502 + $0x4] sm:$0xf]
        %v4045 = vld [vmem:[%s1502 + $0x8] sm:$0xf]
        %v4046 = vld [vmem:[%s1502 + $0x10] sm:$0x8]
        %v4047 = vld [vmem:[%s1502 + $0x14] sm:$0xf]
        %v4048 = vld [vmem:[%s1502 + $0x18] sm:$0xf]
        %v4049 = vld [vmem:[%s1502 + $0x20] sm:$0x8]
        %v4050 = vld [vmem:[%s1502 + $0x24] sm:$0xf]
        %v4051 = vld [vmem:[%s1502 + $0x28] sm:$0xf]
        %v4052 = vld [vmem:[%s1502 + $0x30] sm:$0x8]
        %v4053 = vld [vmem:[%s1502 + $0x34] sm:$0xf]
        %v4054 = vld [vmem:[%s1502 + $0x38] sm:$0xf]
        %v4055 = vld [vmem:[%s1502 + $0x40] sm:$0x8]
        %v4056 = vld [vmem:[%s1502 + $0x44] sm:$0xf]
        %v4057 = vld [vmem:[%s1502 + $0x48] sm:$0xf]
        %v4058 = vld [vmem:[%s1502 + $0x50] sm:$0x8]
        %v4059 = vld [vmem:[%s1502 + $0x54] sm:$0xf]
        %v4060 = vld [vmem:[%s1502 + $0x58] sm:$0xf]
        %v4061 = vld [vmem:[%s1502 + $0x60] sm:$0x8]
        %v4062 = vld [vmem:[%s1502 + $0x64] sm:$0xf]
        %v4063 = vld [vmem:[%s1502 + $0x68] sm:$0xf]
        %v4064 = vld [vmem:[%s1502 + $0x70] sm:$0x8]
        %v4065 = vld [vmem:[%s1502 + $0x74] sm:$0xf]
        %v4066 = vld [vmem:[%s1502 + $0x78] sm:$0xf]
        %v4067 = vld [vmem:[%s1502 + $0x80] sm:$0x8]
        %v4068 = vld [vmem:[%s1502 + $0x84] sm:$0xf]
        %v4069 = vld [vmem:[%s1502 + $0x88] sm:$0xf]
        %v4070 = vld [vmem:[%s1502 + $0x90] sm:$0x8]
        %v4071 = vld [vmem:[%s1502 + $0x94] sm:$0xf]
        %v4072 = vld [vmem:[%s1502 + $0x98] sm:$0xf]
        %v4073 = vld [vmem:[%s1502 + $0xc] sm:$0x1]
        %v4074 = vld [vmem:[%s1502 + $0x1c] sm:$0x1]
        %v4075 = vld [vmem:[%s1502 + $0x2c] sm:$0x1]
        %v4076 = vld [vmem:[%s1502 + $0x3c] sm:$0x1]
        %v4077 = vld [vmem:[%s1502 + $0x4c] sm:$0x1]
        %v4078 = vld [vmem:[%s1502 + $0x5c] sm:$0x1]
        %v4079 = vld [vmem:[%s1502 + $0x6c] sm:$0x1]
        %v4080 = vld [vmem:[%s1502 + $0x7c] sm:$0x1]
        %v4081 = vld [vmem:[%s1502 + $0x8c] sm:$0x1]
        %v4082 = vld [vmem:[%s1502 + $0x9c] sm:$0x1]
        %v4113 = vunpack.c.l.b16 %v4043
        %v4114 = vunpack.c.l.b16 %v4044
        %v4115 = vunpack.c.l.b16 %v4045
        %v4116 = vunpack.c.l.b16 %v4046
        %v4117 = vunpack.c.l.b16 %v4047
        %v4118 = vunpack.c.l.b16 %v4048
        %v4119 = vunpack.c.l.b16 %v4049
        %v4120 = vunpack.c.l.b16 %v4050
        %v4121 = vunpack.c.l.b16 %v4051
        %v4122 = vunpack.c.l.b16 %v4052
        %v4123 = vunpack.c.l.b16 %v4053
        %v4124 = vunpack.c.l.b16 %v4054
        %v4125 = vunpack.c.l.b16 %v4055
        %v4126 = vunpack.c.l.b16 %v4056
        %v4127 = vunpack.c.l.b16 %v4057
        %v4128 = vunpack.c.l.b16 %v4058
        %v4129 = vunpack.c.l.b16 %v4059
        %v4130 = vunpack.c.l.b16 %v4060
        %v4131 = vunpack.c.l.b16 %v4061
        %v4132 = vunpack.c.l.b16 %v4062
        %v4133 = vunpack.c.l.b16 %v4063
        %v4134 = vunpack.c.l.b16 %v4064
        %v4135 = vunpack.c.l.b16 %v4065
        %v4136 = vunpack.c.l.b16 %v4066
        %v4137 = vunpack.c.l.b16 %v4067
        %v4138 = vunpack.c.l.b16 %v4068
        %v4139 = vunpack.c.l.b16 %v4069
        %v4140 = vunpack.c.l.b16 %v4070
        %v4141 = vunpack.c.l.b16 %v4071
        %v4142 = vunpack.c.l.b16 %v4072
        %v4143 = vpack.c.b16 %v4114, %v4113
        %v4144 = vpack.c.b16 %v4115, %v4115
        %v4145 = vpack.c.b16 %v4117, %v4116
        %v4146 = vpack.c.b16 %v4118, %v4118
        %v4147 = vpack.c.b16 %v4120, %v4119
        %v4148 = vpack.c.b16 %v4121, %v4121
        %v4149 = vpack.c.b16 %v4123, %v4122
        %v4150 = vpack.c.b16 %v4124, %v4124
        %v4151 = vpack.c.b16 %v4126, %v4125
        %v4152 = vpack.c.b16 %v4127, %v4127
        %v4153 = vpack.c.b16 %v4129, %v4128
        %v4154 = vpack.c.b16 %v4130, %v4130
        %v4155 = vpack.c.b16 %v4132, %v4131
        %v4156 = vpack.c.b16 %v4133, %v4133
        %v4157 = vpack.c.b16 %v4135, %v4134
        %v4158 = vpack.c.b16 %v4136, %v4136
        %v4159 = vpack.c.b16 %v4138, %v4137
        %v4160 = vpack.c.b16 %v4139, %v4139
        %v4161 = vpack.c.b16 %v4141, %v4140
        %v4162 = vpack.c.b16 %v4142, %v4142
        %v4163 = vpack.c.b16 %v4115, %v4114
        %v4164 = vpack.c.b16 %v4118, %v4117
        %v4165 = vpack.c.b16 %v4121, %v4120
        %v4166 = vpack.c.b16 %v4124, %v4123
        %v4167 = vpack.c.b16 %v4127, %v4126
        %v4168 = vpack.c.b16 %v4130, %v4129
        %v4169 = vpack.c.b16 %v4133, %v4132
        %v4170 = vpack.c.b16 %v4136, %v4135
        %v4171 = vpack.c.b16 %v4139, %v4138
        %v4172 = vpack.c.b16 %v4142, %v4141
        %v4174 = vshrl.u32 %v4163, 16
        %v4176 = vrot.slane %v4174, 4
        %v4177 = vshll.u32 %v4163, 16
        %v4179 = vrot.slane %v4177, 5
        %v4180 = vor.u32 %v4176, %v4179
        %v4182 = vshrl.u32 %v4164, 16
        %v4184 = vrot.slane %v4182, 4
        %v4185 = vshll.u32 %v4164, 16
        %v4187 = vrot.slane %v4185, 5
        %v4188 = vor.u32 %v4184, %v4187
        %v4190 = vshrl.u32 %v4165, 16
        %v4192 = vrot.slane %v4190, 4
        %v4193 = vshll.u32 %v4165, 16
        %v4195 = vrot.slane %v4193, 5
        %v4196 = vor.u32 %v4192, %v4195
        %v4198 = vshrl.u32 %v4166, 16
        %v4200 = vrot.slane %v4198, 4
        %v4201 = vshll.u32 %v4166, 16
        %v4203 = vrot.slane %v4201, 5
        %v4204 = vor.u32 %v4200, %v4203
        %v4206 = vshrl.u32 %v4167, 16
        %v4208 = vrot.slane %v4206, 4
        %v4209 = vshll.u32 %v4167, 16
        %v4211 = vrot.slane %v4209, 5
        %v4212 = vor.u32 %v4208, %v4211
        %v4214 = vshrl.u32 %v4168, 16
        %v4216 = vrot.slane %v4214, 4
        %v4217 = vshll.u32 %v4168, 16
        %v4219 = vrot.slane %v4217, 5
        %v4220 = vor.u32 %v4216, %v4219
        %v4222 = vshrl.u32 %v4169, 16
        %v4224 = vrot.slane %v4222, 4
        %v4225 = vshll.u32 %v4169, 16
        %v4227 = vrot.slane %v4225, 5
        %v4228 = vor.u32 %v4224, %v4227
        %v4230 = vshrl.u32 %v4170, 16
        %v4232 = vrot.slane %v4230, 4
        %v4233 = vshll.u32 %v4170, 16
        %v4235 = vrot.slane %v4233, 5
        %v4236 = vor.u32 %v4232, %v4235
        %v4238 = vshrl.u32 %v4171, 16
        %v4240 = vrot.slane %v4238, 4
        %v4241 = vshll.u32 %v4171, 16
        %v4243 = vrot.slane %v4241, 5
        %v4244 = vor.u32 %v4240, %v4243
        %v4246 = vshrl.u32 %v4172, 16
        %v4248 = vrot.slane %v4246, 4
        %v4249 = vshll.u32 %v4172, 16
        %v4251 = vrot.slane %v4249, 5
        %v4252 = vor.u32 %v4248, %v4251
        %4253 = vrot.lane.b32.xlu0 %v4180, 32
        %v4254 = vpop.permute.xlu0 %4253
        %4255 = vrot.lane.b32.xlu0 %v4188, 32
        %v4256 = vpop.permute.xlu0 %4255
        %4257 = vrot.lane.b32.xlu0 %v4196, 32
        %v4258 = vpop.permute.xlu0 %4257
        %4259 = vrot.lane.b32.xlu0 %v4204, 32
        %v4260 = vpop.permute.xlu0 %4259
        %4261 = vrot.lane.b32.xlu0 %v4212, 32
        %v4262 = vpop.permute.xlu0 %4261
        %4263 = vrot.lane.b32.xlu0 %v4220, 32
        %v4264 = vpop.permute.xlu0 %4263
        %4265 = vrot.lane.b32.xlu0 %v4228, 32
        %v4266 = vpop.permute.xlu0 %4265
        %4267 = vrot.lane.b32.xlu0 %v4236, 32
        %v4268 = vpop.permute.xlu0 %4267
        %4269 = vrot.lane.b32.xlu0 %v4244, 32
        %v4270 = vpop.permute.xlu0 %4269
        %4271 = vrot.lane.b32.xlu0 %v4252, 32
        %v4272 = vpop.permute.xlu0 %4271
        %v4283 = vunpack.c.l.b16 %v4073
        %v4284 = vunpack.c.l.b16 %v4074
        %v4285 = vunpack.c.l.b16 %v4075
        %v4286 = vunpack.c.l.b16 %v4076
        %v4287 = vunpack.c.l.b16 %v4077
        %v4288 = vunpack.c.l.b16 %v4078
        %v4289 = vunpack.c.l.b16 %v4079
        %v4290 = vunpack.c.l.b16 %v4080
        %v4291 = vunpack.c.l.b16 %v4081
        %v4292 = vunpack.c.l.b16 %v4082
        %v4293 = vpack.c.b16 %v4283, %v4283
        %v4294 = vpack.c.b16 %v4284, %v4284
        %v4295 = vpack.c.b16 %v4285, %v4285
        %v4296 = vpack.c.b16 %v4286, %v4286
        %v4297 = vpack.c.b16 %v4287, %v4287
        %v4298 = vpack.c.b16 %v4288, %v4288
        %v4299 = vpack.c.b16 %v4289, %v4289
        %v4300 = vpack.c.b16 %v4290, %v4290
        %v4301 = vpack.c.b16 %v4291, %v4291
        %v4302 = vpack.c.b16 %v4292, %v4292
        %v4303 = vrot.slane %v4163, 5
        %v4304 = vrot.slane %v4293, 5
        %v4305 = vsel %vm1114, %v4303, %v4304
        %v4306 = vrot.slane %v4164, 5
        %v4307 = vrot.slane %v4294, 5
        %v4308 = vsel %vm1114, %v4306, %v4307
        %v4309 = vrot.slane %v4165, 5
        %v4310 = vrot.slane %v4295, 5
        %v4311 = vsel %vm1114, %v4309, %v4310
        %v4312 = vrot.slane %v4166, 5
        %v4313 = vrot.slane %v4296, 5
        %v4314 = vsel %vm1114, %v4312, %v4313
        %v4315 = vrot.slane %v4167, 5
        %v4316 = vrot.slane %v4297, 5
        %v4317 = vsel %vm1114, %v4315, %v4316
        %v4318 = vrot.slane %v4168, 5
        %v4319 = vrot.slane %v4298, 5
        %v4320 = vsel %vm1114, %v4318, %v4319
        %v4321 = vrot.slane %v4169, 5
        %v4322 = vrot.slane %v4299, 5
        %v4323 = vsel %vm1114, %v4321, %v4322
        %v4324 = vrot.slane %v4170, 5
        %v4325 = vrot.slane %v4300, 5
        %v4326 = vsel %vm1114, %v4324, %v4325
        %v4327 = vrot.slane %v4171, 5
        %v4328 = vrot.slane %v4301, 5
        %v4329 = vsel %vm1114, %v4327, %v4328
        %v4330 = vrot.slane %v4172, 5
        %v4331 = vrot.slane %v4302, 5
        %v4332 = vsel %vm1114, %v4330, %v4331
        %4333 = vrot.lane.b32.xlu0 %v4303, 64
        %v4334 = vpop.permute.xlu0 %4333
        %4335 = vrot.lane.b32.xlu0 %v4305, 64
        %v4336 = vpop.permute.xlu0 %4335
        %4337 = vrot.lane.b32.xlu0 %v4306, 64
        %v4338 = vpop.permute.xlu0 %4337
        %4339 = vrot.lane.b32.xlu0 %v4308, 64
        %v4340 = vpop.permute.xlu0 %4339
        %4341 = vrot.lane.b32.xlu0 %v4309, 64
        %v4342 = vpop.permute.xlu0 %4341
        %4343 = vrot.lane.b32.xlu0 %v4311, 64
        %v4344 = vpop.permute.xlu0 %4343
        %4345 = vrot.lane.b32.xlu0 %v4312, 64
        %v4346 = vpop.permute.xlu0 %4345
        %4347 = vrot.lane.b32.xlu0 %v4314, 64
        %v4348 = vpop.permute.xlu0 %4347
        %4349 = vrot.lane.b32.xlu0 %v4315, 64
        %v4350 = vpop.permute.xlu0 %4349
        %4351 = vrot.lane.b32.xlu0 %v4317, 64
        %v4352 = vpop.permute.xlu0 %4351
        %4353 = vrot.lane.b32.xlu0 %v4318, 64
        %v4354 = vpop.permute.xlu0 %4353
        %4355 = vrot.lane.b32.xlu0 %v4320, 64
        %v4356 = vpop.permute.xlu0 %4355
        %4357 = vrot.lane.b32.xlu0 %v4321, 64
        %v4358 = vpop.permute.xlu0 %4357
        %4359 = vrot.lane.b32.xlu0 %v4323, 64
        %v4360 = vpop.permute.xlu0 %4359
        %4361 = vrot.lane.b32.xlu0 %v4324, 64
        %v4362 = vpop.permute.xlu0 %4361
        %4363 = vrot.lane.b32.xlu0 %v4326, 64
        %v4364 = vpop.permute.xlu0 %4363
        %4365 = vrot.lane.b32.xlu0 %v4327, 64
        %v4366 = vpop.permute.xlu0 %4365
        %4367 = vrot.lane.b32.xlu0 %v4329, 64
        %v4368 = vpop.permute.xlu0 %4367
        %4369 = vrot.lane.b32.xlu0 %v4330, 64
        %v4370 = vpop.permute.xlu0 %4369
        %4371 = vrot.lane.b32.xlu0 %v4332, 64
        %v4372 = vpop.permute.xlu0 %4371
        %v4375 = vsel %vm1199, %v4143, %v4254
        %v4377 = vsel %vm1199, %v4144, %v4254
        %v4380 = vsel %vm1199, %v4145, %v4256
        %v4382 = vsel %vm1199, %v4146, %v4256
        %v4385 = vsel %vm1199, %v4147, %v4258
        %v4387 = vsel %vm1199, %v4148, %v4258
        %v4390 = vsel %vm1199, %v4149, %v4260
        %v4392 = vsel %vm1199, %v4150, %v4260
        %v4395 = vsel %vm1199, %v4151, %v4262
        %v4397 = vsel %vm1199, %v4152, %v4262
        %v4400 = vsel %vm1199, %v4153, %v4264
        %v4402 = vsel %vm1199, %v4154, %v4264
        %v4405 = vsel %vm1199, %v4155, %v4266
        %v4407 = vsel %vm1199, %v4156, %v4266
        %v4410 = vsel %vm1199, %v4157, %v4268
        %v4412 = vsel %vm1199, %v4158, %v4268
        %v4415 = vsel %vm1199, %v4159, %v4270
        %v4417 = vsel %vm1199, %v4160, %v4270
        %v4420 = vsel %vm1199, %v4161, %v4272
        %v4422 = vsel %vm1199, %v4162, %v4272
        %v4424 = vsel %vm1260, %v4375, %v4334
        %v4426 = vsel %vm1260, %v4377, %v4336
        %v4428 = vsel %vm1260, %v4380, %v4338
        %v4430 = vsel %vm1260, %v4382, %v4340
        %v4432 = vsel %vm1260, %v4385, %v4342
        %v4434 = vsel %vm1260, %v4387, %v4344
        %v4436 = vsel %vm1260, %v4390, %v4346
        %v4438 = vsel %vm1260, %v4392, %v4348
        %v4440 = vsel %vm1260, %v4395, %v4350
        %v4442 = vsel %vm1260, %v4397, %v4352
        %v4444 = vsel %vm1260, %v4400, %v4354
        %v4446 = vsel %vm1260, %v4402, %v4356
        %v4448 = vsel %vm1260, %v4405, %v4358
        %v4450 = vsel %vm1260, %v4407, %v4360
        %v4452 = vsel %vm1260, %v4410, %v4362
        %v4454 = vsel %vm1260, %v4412, %v4364
        %v4456 = vsel %vm1260, %v4415, %v4366
        %v4458 = vsel %vm1260, %v4417, %v4368
        %v4460 = vsel %vm1260, %v4420, %v4370
        %v4462 = vsel %vm1260, %v4422, %v4372
        %v4463 = vshrl.u32 %v4424, 16
        %v4465 = vrot.slane %v4463, 3
        %v4466 = vshll.u32 %v4424, 16
        %v4468 = vrot.slane %v4466, 4
        %v4469 = vor.u32 %v4465, %v4468
        %v4470 = vshrl.u32 %v4426, 16
        %v4472 = vrot.slane %v4470, 3
        %v4473 = vshll.u32 %v4426, 16
        %v4475 = vrot.slane %v4473, 4
        %v4476 = vor.u32 %v4472, %v4475
        %v4477 = vsel %vm1309, %v4469, %v4476
        %v4478 = vshrl.u32 %v4428, 16
        %v4480 = vrot.slane %v4478, 3
        %v4481 = vshll.u32 %v4428, 16
        %v4483 = vrot.slane %v4481, 4
        %v4484 = vor.u32 %v4480, %v4483
        %v4485 = vshrl.u32 %v4430, 16
        %v4487 = vrot.slane %v4485, 3
        %v4488 = vshll.u32 %v4430, 16
        %v4490 = vrot.slane %v4488, 4
        %v4491 = vor.u32 %v4487, %v4490
        %v4492 = vsel %vm1309, %v4484, %v4491
        %v4493 = vshrl.u32 %v4432, 16
        %v4495 = vrot.slane %v4493, 3
        %v4496 = vshll.u32 %v4432, 16
        %v4498 = vrot.slane %v4496, 4
        %v4499 = vor.u32 %v4495, %v4498
        %v4500 = vshrl.u32 %v4434, 16
        %v4502 = vrot.slane %v4500, 3
        %v4503 = vshll.u32 %v4434, 16
        %v4505 = vrot.slane %v4503, 4
        %v4506 = vor.u32 %v4502, %v4505
        %v4507 = vsel %vm1309, %v4499, %v4506
        %v4508 = vshrl.u32 %v4436, 16
        %v4510 = vrot.slane %v4508, 3
        %v4511 = vshll.u32 %v4436, 16
        %v4513 = vrot.slane %v4511, 4
        %v4514 = vor.u32 %v4510, %v4513
        %v4515 = vshrl.u32 %v4438, 16
        %v4517 = vrot.slane %v4515, 3
        %v4518 = vshll.u32 %v4438, 16
        %v4520 = vrot.slane %v4518, 4
        %v4521 = vor.u32 %v4517, %v4520
        %v4522 = vsel %vm1309, %v4514, %v4521
        %v4523 = vshrl.u32 %v4440, 16
        %v4525 = vrot.slane %v4523, 3
        %v4526 = vshll.u32 %v4440, 16
        %v4528 = vrot.slane %v4526, 4
        %v4529 = vor.u32 %v4525, %v4528
        %v4530 = vshrl.u32 %v4442, 16
        %v4532 = vrot.slane %v4530, 3
        %v4533 = vshll.u32 %v4442, 16
        %v4535 = vrot.slane %v4533, 4
        %v4536 = vor.u32 %v4532, %v4535
        %v4537 = vsel %vm1309, %v4529, %v4536
        %v4538 = vshrl.u32 %v4444, 16
        %v4540 = vrot.slane %v4538, 3
        %v4541 = vshll.u32 %v4444, 16
        %v4543 = vrot.slane %v4541, 4
        %v4544 = vor.u32 %v4540, %v4543
        %v4545 = vshrl.u32 %v4446, 16
        %v4547 = vrot.slane %v4545, 3
        %v4548 = vshll.u32 %v4446, 16
        %v4550 = vrot.slane %v4548, 4
        %v4551 = vor.u32 %v4547, %v4550
        %v4552 = vsel %vm1309, %v4544, %v4551
        %v4553 = vshrl.u32 %v4448, 16
        %v4555 = vrot.slane %v4553, 3
        %v4556 = vshll.u32 %v4448, 16
        %v4558 = vrot.slane %v4556, 4
        %v4559 = vor.u32 %v4555, %v4558
        %v4560 = vshrl.u32 %v4450, 16
        %v4562 = vrot.slane %v4560, 3
        %v4563 = vshll.u32 %v4450, 16
        %v4565 = vrot.slane %v4563, 4
        %v4566 = vor.u32 %v4562, %v4565
        %v4567 = vsel %vm1309, %v4559, %v4566
        %v4568 = vshrl.u32 %v4452, 16
        %v4570 = vrot.slane %v4568, 3
        %v4571 = vshll.u32 %v4452, 16
        %v4573 = vrot.slane %v4571, 4
        %v4574 = vor.u32 %v4570, %v4573
        %v4575 = vshrl.u32 %v4454, 16
        %v4577 = vrot.slane %v4575, 3
        %v4578 = vshll.u32 %v4454, 16
        %v4580 = vrot.slane %v4578, 4
        %v4581 = vor.u32 %v4577, %v4580
        %v4582 = vsel %vm1309, %v4574, %v4581
        %v4583 = vshrl.u32 %v4456, 16
        %v4585 = vrot.slane %v4583, 3
        %v4586 = vshll.u32 %v4456, 16
        %v4588 = vrot.slane %v4586, 4
        %v4589 = vor.u32 %v4585, %v4588
        %v4590 = vshrl.u32 %v4458, 16
        %v4592 = vrot.slane %v4590, 3
        %v4593 = vshll.u32 %v4458, 16
        %v4595 = vrot.slane %v4593, 4
        %v4596 = vor.u32 %v4592, %v4595
        %v4597 = vsel %vm1309, %v4589, %v4596
        %v4598 = vshrl.u32 %v4460, 16
        %v4600 = vrot.slane %v4598, 3
        %v4601 = vshll.u32 %v4460, 16
        %v4603 = vrot.slane %v4601, 4
        %v4604 = vor.u32 %v4600, %v4603
        %v4605 = vshrl.u32 %v4462, 16
        %v4607 = vrot.slane %v4605, 3
        %v4608 = vshll.u32 %v4462, 16
        %v4610 = vrot.slane %v4608, 4
        %v4611 = vor.u32 %v4607, %v4610
        %v4612 = vsel %vm1309, %v4604, %v4611
        %s4613 = scalar_lea.vmem %s6, 48
        %v4614 = vld [vmem:[%s4613] sm:$0xf]
        %v4615 = vld [vmem:[%s4613 + $0x4] sm:$0xf]
        %v4616 = vld [vmem:[%s4613 + $0x8] sm:$0xf]
        %v4617 = vld [vmem:[%s4613 + $0xc] sm:$0xf]
        %v4618 = vld [vmem:[%s4613 + $0x10] sm:$0xf]
        %v4619 = vld [vmem:[%s4613 + $0x14] sm:$0xf]
        %v4620 = vld [vmem:[%s4613 + $0x18] sm:$0xf]
        %v4621 = vld [vmem:[%s4613 + $0x1c] sm:$0xf]
        %v4622 = vld [vmem:[%s4613 + $0x20] sm:$0xf]
        %v4623 = vld [vmem:[%s4613 + $0x24] sm:$0xf]
        %v4624 = vld [vmem:[%s4613 + $0x28] sm:$0xf]
        %v4625 = vld [vmem:[%s4613 + $0x2c] sm:$0xf]
        %v4638 = vunpack.c.l.b16 %v4614
        %v4639 = vunpack.c.l.b16 %v4615
        %v4640 = vunpack.c.l.b16 %v4616
        %v4641 = vunpack.c.l.b16 %v4617
        %v4642 = vunpack.c.l.b16 %v4618
        %v4643 = vunpack.c.l.b16 %v4619
        %v4644 = vunpack.c.l.b16 %v4620
        %v4645 = vunpack.c.l.b16 %v4621
        %v4646 = vunpack.c.l.b16 %v4622
        %v4647 = vunpack.c.l.b16 %v4623
        %v4648 = vunpack.c.l.b16 %v4624
        %v4649 = vunpack.c.l.b16 %v4625
        %v4650 = vpack.c.b16 %v4639, %v4638
        %v4651 = vpack.c.b16 %v4641, %v4640
        %v4652 = vpack.c.b16 %v4643, %v4642
        %v4653 = vpack.c.b16 %v4645, %v4644
        %v4654 = vpack.c.b16 %v4647, %v4646
        %v4655 = vpack.c.b16 %v4649, %v4648
        %v4663 = vsel %vm2236, %v4477, 0
        %v4666 = vsel %vm2236, %v4492, 0
        %v4669 = vsel %vm2236, %v4507, 0
        %v4672 = vsel %vm2236, %v4522, 0
        %v4675 = vsel %vm2236, %v4537, 0
        %v4678 = vsel %vm2236, %v4552, 0
        %v4681 = vsel %vm2236, %v4567, 0
        %v4684 = vsel %vm2236, %v4582, 0
        %v4687 = vsel %vm2236, %v4597, 0
        %v4690 = vsel %vm2236, %v4612, 0
        %4692 = vmatpush.bf16.msra.mxu0 0
        %4693 = vmatpush.bf16.msra.mxu0 0
        %4694 = vmatpush.bf16.msra.mxu0 %v4655
        %4695 = vmatpush.bf16.msra.mxu0 %v4654
        %4696 = vmatpush.bf16.msra.mxu0 %v4653
        %4697 = vmatpush.bf16.msra.mxu0 %v4652
        %4698 = vmatpush.bf16.msra.mxu0 %v4651
        %4699 = vmatpush.bf16.msra.mxu0 %v4650
        %4700 = vmatmul.bf16.gmra.mxu0 %v4663
        %v4701 = vpop.f32.mrf.mxu0
        %v4702 = vadd.f32 0.0, %v4701
        %v4703 = vpop.f32.mrf.mxu0
        %v4704 = vadd.f32 0.0, %v4703
        %4705 = vmatmul.bf16.gmra.mxu0 %v4666
        %v4706 = vpop.f32.mrf.mxu0
        %v4707 = vadd.f32 0.0, %v4706
        %v4708 = vpop.f32.mrf.mxu0
        %v4709 = vadd.f32 0.0, %v4708
        %4710 = vmatmul.bf16.gmra.mxu0 %v4669
        %v4711 = vpop.f32.mrf.mxu0
        %v4712 = vadd.f32 0.0, %v4711
        %v4713 = vpop.f32.mrf.mxu0
        %v4714 = vadd.f32 0.0, %v4713
        %4715 = vmatmul.bf16.gmra.mxu0 %v4672
        %v4716 = vpop.f32.mrf.mxu0
        %v4717 = vadd.f32 0.0, %v4716
        %v4718 = vpop.f32.mrf.mxu0
        %v4719 = vadd.f32 0.0, %v4718
        %4720 = vmatmul.bf16.gmra.mxu0 %v4675
        %v4721 = vpop.f32.mrf.mxu0
        %v4722 = vadd.f32 0.0, %v4721
        %v4723 = vpop.f32.mrf.mxu0
        %v4724 = vadd.f32 0.0, %v4723
        %4725 = vmatmul.bf16.gmra.mxu0 %v4678
        %v4726 = vpop.f32.mrf.mxu0
        %v4727 = vadd.f32 0.0, %v4726
        %v4728 = vpop.f32.mrf.mxu0
        %v4729 = vadd.f32 0.0, %v4728
        %4730 = vmatmul.bf16.gmra.mxu0 %v4681
        %v4731 = vpop.f32.mrf.mxu0
        %v4732 = vadd.f32 0.0, %v4731
        %v4733 = vpop.f32.mrf.mxu0
        %v4734 = vadd.f32 0.0, %v4733
        %4735 = vmatmul.bf16.gmra.mxu0 %v4684
        %v4736 = vpop.f32.mrf.mxu0
        %v4737 = vadd.f32 0.0, %v4736
        %v4738 = vpop.f32.mrf.mxu0
        %v4739 = vadd.f32 0.0, %v4738
        %4740 = vmatmul.bf16.gmra.mxu0 %v4687
        %v4741 = vpop.f32.mrf.mxu0
        %v4742 = vadd.f32 0.0, %v4741
        %v4743 = vpop.f32.mrf.mxu0
        %v4744 = vadd.f32 0.0, %v4743
        %4745 = vmatmul.bf16.gmra.mxu0 %v4690
        %v4746 = vpop.f32.mrf.mxu0
        %v4747 = vadd.f32 0.0, %v4746
        %v4748 = vpop.f32.mrf.mxu0
        %v4749 = vadd.f32 0.0, %v4748
        %4750 = vdwg.mxu0
        %v4763 = vunpack.c.l.b16 %v4031
        %v4764 = vunpack.c.l.b16 %v4032
        %v4765 = vunpack.c.l.b16 %v4033
        %v4766 = vunpack.c.l.b16 %v4034
        %v4767 = vunpack.c.l.b16 %v4035
        %v4768 = vunpack.c.l.b16 %v4036
        %v4769 = vunpack.c.l.b16 %v4037
        %v4770 = vunpack.c.l.b16 %v4038
        %v4771 = vunpack.c.l.b16 %v4039
        %v4772 = vunpack.c.l.b16 %v4040
        %v4773 = vunpack.c.l.b16 %v4041
        %v4774 = vunpack.c.l.b16 %v4042
        %v4775 = vpack.c.b16 %v4764, %v4763
        %v4776 = vpack.c.b16 %v4766, %v4765
        %v4777 = vpack.c.b16 %v4768, %v4767
        %v4778 = vpack.c.b16 %v4770, %v4769
        %v4779 = vpack.c.b16 %v4772, %v4771
        %v4780 = vpack.c.b16 %v4774, %v4773
        %v4788 = vsel %vm2236, %v3895, 0
        %v4791 = vsel %vm2236, %v3910, 0
        %v4794 = vsel %vm2236, %v3925, 0
        %v4797 = vsel %vm2236, %v3940, 0
        %v4800 = vsel %vm2236, %v3955, 0
        %v4803 = vsel %vm2236, %v3970, 0
        %v4806 = vsel %vm2236, %v3985, 0
        %v4809 = vsel %vm2236, %v4000, 0
        %v4812 = vsel %vm2236, %v4015, 0
        %v4815 = vsel %vm2236, %v4030, 0
        %4817 = vmatpush.bf16.msra.mxu0 0
        %4818 = vmatpush.bf16.msra.mxu0 0
        %4819 = vmatpush.bf16.msra.mxu0 %v4780
        %4820 = vmatpush.bf16.msra.mxu0 %v4779
        %4821 = vmatpush.bf16.msra.mxu0 %v4778
        %4822 = vmatpush.bf16.msra.mxu0 %v4777
        %4823 = vmatpush.bf16.msra.mxu0 %v4776
        %4824 = vmatpush.bf16.msra.mxu0 %v4775
        %4825 = vmatmul.bf16.gmra.mxu0 %v4788
        %v4826 = vpop.f32.mrf.mxu0
        %v4827 = vadd.f32 %v4702, %v4826
        %v4828 = vpop.f32.mrf.mxu0
        %v4829 = vadd.f32 %v4704, %v4828
        %4830 = vmatmul.bf16.gmra.mxu0 %v4791
        %v4831 = vpop.f32.mrf.mxu0
        %v4832 = vadd.f32 %v4707, %v4831
        %v4833 = vpop.f32.mrf.mxu0
        %v4834 = vadd.f32 %v4709, %v4833
        %4835 = vmatmul.bf16.gmra.mxu0 %v4794
        %v4836 = vpop.f32.mrf.mxu0
        %v4837 = vadd.f32 %v4712, %v4836
        %v4838 = vpop.f32.mrf.mxu0
        %v4839 = vadd.f32 %v4714, %v4838
        %4840 = vmatmul.bf16.gmra.mxu0 %v4797
        %v4841 = vpop.f32.mrf.mxu0
        %v4842 = vadd.f32 %v4717, %v4841
        %v4843 = vpop.f32.mrf.mxu0
        %v4844 = vadd.f32 %v4719, %v4843
        %4845 = vmatmul.bf16.gmra.mxu0 %v4800
        %v4846 = vpop.f32.mrf.mxu0
        %v4847 = vadd.f32 %v4722, %v4846
        %v4848 = vpop.f32.mrf.mxu0
        %v4849 = vadd.f32 %v4724, %v4848
        %4850 = vmatmul.bf16.gmra.mxu0 %v4803
        %v4851 = vpop.f32.mrf.mxu0
        %v4852 = vadd.f32 %v4727, %v4851
        %v4853 = vpop.f32.mrf.mxu0
        %v4854 = vadd.f32 %v4729, %v4853
        %4855 = vmatmul.bf16.gmra.mxu0 %v4806
        %v4856 = vpop.f32.mrf.mxu0
        %v4857 = vadd.f32 %v4732, %v4856
        %v4858 = vpop.f32.mrf.mxu0
        %v4859 = vadd.f32 %v4734, %v4858
        %4860 = vmatmul.bf16.gmra.mxu0 %v4809
        %v4861 = vpop.f32.mrf.mxu0
        %v4862 = vadd.f32 %v4737, %v4861
        %v4863 = vpop.f32.mrf.mxu0
        %v4864 = vadd.f32 %v4739, %v4863
        %4865 = vmatmul.bf16.gmra.mxu0 %v4812
        %v4866 = vpop.f32.mrf.mxu0
        %v4867 = vadd.f32 %v4742, %v4866
        %v4868 = vpop.f32.mrf.mxu0
        %v4869 = vadd.f32 %v4744, %v4868
        %4870 = vmatmul.bf16.gmra.mxu0 %v4815
        %v4871 = vpop.f32.mrf.mxu0
        %v4872 = vadd.f32 %v4747, %v4871
        %v4873 = vpop.f32.mrf.mxu0
        %v4874 = vadd.f32 %v4749, %v4873
        %4875 = vdwg.mxu0
        %v4876 = vld [vmem:[%s2483] sm:$0x8]
        %v4877 = vld [vmem:[%s2483 + $0x4] sm:$0xf]
        %v4878 = vld [vmem:[%s2483 + $0x8] sm:$0xf]
        %v4879 = vld [vmem:[%s2483 + $0x10] sm:$0x8]
        %v4880 = vld [vmem:[%s2483 + $0x14] sm:$0xf]
        %v4881 = vld [vmem:[%s2483 + $0x18] sm:$0xf]
        %v4882 = vld [vmem:[%s2483 + $0x20] sm:$0x8]
        %v4883 = vld [vmem:[%s2483 + $0x24] sm:$0xf]
        %v4884 = vld [vmem:[%s2483 + $0x28] sm:$0xf]
        %v4885 = vld [vmem:[%s2483 + $0x30] sm:$0x8]
        %v4886 = vld [vmem:[%s2483 + $0x34] sm:$0xf]
        %v4887 = vld [vmem:[%s2483 + $0x38] sm:$0xf]
        %v4888 = vld [vmem:[%s2483 + $0x40] sm:$0x8]
        %v4889 = vld [vmem:[%s2483 + $0x44] sm:$0xf]
        %v4890 = vld [vmem:[%s2483 + $0x48] sm:$0xf]
        %v4891 = vld [vmem:[%s2483 + $0x50] sm:$0x8]
        %v4892 = vld [vmem:[%s2483 + $0x54] sm:$0xf]
        %v4893 = vld [vmem:[%s2483 + $0x58] sm:$0xf]
        %v4894 = vld [vmem:[%s2483 + $0x60] sm:$0x8]
        %v4895 = vld [vmem:[%s2483 + $0x64] sm:$0xf]
        %v4896 = vld [vmem:[%s2483 + $0x68] sm:$0xf]
        %v4897 = vld [vmem:[%s2483 + $0x70] sm:$0x8]
        %v4898 = vld [vmem:[%s2483 + $0x74] sm:$0xf]
        %v4899 = vld [vmem:[%s2483 + $0x78] sm:$0xf]
        %v4900 = vld [vmem:[%s2483 + $0x80] sm:$0x8]
        %v4901 = vld [vmem:[%s2483 + $0x84] sm:$0xf]
        %v4902 = vld [vmem:[%s2483 + $0x88] sm:$0xf]
        %v4903 = vld [vmem:[%s2483 + $0x90] sm:$0x8]
        %v4904 = vld [vmem:[%s2483 + $0x94] sm:$0xf]
        %v4905 = vld [vmem:[%s2483 + $0x98] sm:$0xf]
        %v4906 = vld [vmem:[%s2483 + $0xc] sm:$0x1]
        %v4907 = vld [vmem:[%s2483 + $0x1c] sm:$0x1]
        %v4908 = vld [vmem:[%s2483 + $0x2c] sm:$0x1]
        %v4909 = vld [vmem:[%s2483 + $0x3c] sm:$0x1]
        %v4910 = vld [vmem:[%s2483 + $0x4c] sm:$0x1]
        %v4911 = vld [vmem:[%s2483 + $0x5c] sm:$0x1]
        %v4912 = vld [vmem:[%s2483 + $0x6c] sm:$0x1]
        %v4913 = vld [vmem:[%s2483 + $0x7c] sm:$0x1]
        %v4914 = vld [vmem:[%s2483 + $0x8c] sm:$0x1]
        %v4915 = vld [vmem:[%s2483 + $0x9c] sm:$0x1]
        %v4946 = vunpack.c.l.b16 %v4876
        %v4947 = vunpack.c.l.b16 %v4877
        %v4948 = vunpack.c.l.b16 %v4878
        %v4949 = vunpack.c.l.b16 %v4879
        %v4950 = vunpack.c.l.b16 %v4880
        %v4951 = vunpack.c.l.b16 %v4881
        %v4952 = vunpack.c.l.b16 %v4882
        %v4953 = vunpack.c.l.b16 %v4883
        %v4954 = vunpack.c.l.b16 %v4884
        %v4955 = vunpack.c.l.b16 %v4885
        %v4956 = vunpack.c.l.b16 %v4886
        %v4957 = vunpack.c.l.b16 %v4887
        %v4958 = vunpack.c.l.b16 %v4888
        %v4959 = vunpack.c.l.b16 %v4889
        %v4960 = vunpack.c.l.b16 %v4890
        %v4961 = vunpack.c.l.b16 %v4891
        %v4962 = vunpack.c.l.b16 %v4892
        %v4963 = vunpack.c.l.b16 %v4893
        %v4964 = vunpack.c.l.b16 %v4894
        %v4965 = vunpack.c.l.b16 %v4895
        %v4966 = vunpack.c.l.b16 %v4896
        %v4967 = vunpack.c.l.b16 %v4897
        %v4968 = vunpack.c.l.b16 %v4898
        %v4969 = vunpack.c.l.b16 %v4899
        %v4970 = vunpack.c.l.b16 %v4900
        %v4971 = vunpack.c.l.b16 %v4901
        %v4972 = vunpack.c.l.b16 %v4902
        %v4973 = vunpack.c.l.b16 %v4903
        %v4974 = vunpack.c.l.b16 %v4904
        %v4975 = vunpack.c.l.b16 %v4905
        %v4976 = vpack.c.b16 %v4947, %v4946
        %v4977 = vpack.c.b16 %v4948, %v4948
        %v4978 = vpack.c.b16 %v4950, %v4949
        %v4979 = vpack.c.b16 %v4951, %v4951
        %v4980 = vpack.c.b16 %v4953, %v4952
        %v4981 = vpack.c.b16 %v4954, %v4954
        %v4982 = vpack.c.b16 %v4956, %v4955
        %v4983 = vpack.c.b16 %v4957, %v4957
        %v4984 = vpack.c.b16 %v4959, %v4958
        %v4985 = vpack.c.b16 %v4960, %v4960
        %v4986 = vpack.c.b16 %v4962, %v4961
        %v4987 = vpack.c.b16 %v4963, %v4963
        %v4988 = vpack.c.b16 %v4965, %v4964
        %v4989 = vpack.c.b16 %v4966, %v4966
        %v4990 = vpack.c.b16 %v4968, %v4967
        %v4991 = vpack.c.b16 %v4969, %v4969
        %v4992 = vpack.c.b16 %v4971, %v4970
        %v4993 = vpack.c.b16 %v4972, %v4972
        %v4994 = vpack.c.b16 %v4974, %v4973
        %v4995 = vpack.c.b16 %v4975, %v4975
        %v4996 = vpack.c.b16 %v4948, %v4947
        %v4997 = vpack.c.b16 %v4951, %v4950
        %v4998 = vpack.c.b16 %v4954, %v4953
        %v4999 = vpack.c.b16 %v4957, %v4956
        %v5000 = vpack.c.b16 %v4960, %v4959
        %v5001 = vpack.c.b16 %v4963, %v4962
        %v5002 = vpack.c.b16 %v4966, %v4965
        %v5003 = vpack.c.b16 %v4969, %v4968
        %v5004 = vpack.c.b16 %v4972, %v4971
        %v5005 = vpack.c.b16 %v4975, %v4974
        %v5007 = vshrl.u32 %v4996, 16
        %v5009 = vrot.slane %v5007, 4
        %v5010 = vshll.u32 %v4996, 16
        %v5012 = vrot.slane %v5010, 5
        %v5013 = vor.u32 %v5009, %v5012
        %v5015 = vshrl.u32 %v4997, 16
        %v5017 = vrot.slane %v5015, 4
        %v5018 = vshll.u32 %v4997, 16
        %v5020 = vrot.slane %v5018, 5
        %v5021 = vor.u32 %v5017, %v5020
        %v5023 = vshrl.u32 %v4998, 16
        %v5025 = vrot.slane %v5023, 4
        %v5026 = vshll.u32 %v4998, 16
        %v5028 = vrot.slane %v5026, 5
        %v5029 = vor.u32 %v5025, %v5028
        %v5031 = vshrl.u32 %v4999, 16
        %v5033 = vrot.slane %v5031, 4
        %v5034 = vshll.u32 %v4999, 16
        %v5036 = vrot.slane %v5034, 5
        %v5037 = vor.u32 %v5033, %v5036
        %v5039 = vshrl.u32 %v5000, 16
        %v5041 = vrot.slane %v5039, 4
        %v5042 = vshll.u32 %v5000, 16
        %v5044 = vrot.slane %v5042, 5
        %v5045 = vor.u32 %v5041, %v5044
        %v5047 = vshrl.u32 %v5001, 16
        %v5049 = vrot.slane %v5047, 4
        %v5050 = vshll.u32 %v5001, 16
        %v5052 = vrot.slane %v5050, 5
        %v5053 = vor.u32 %v5049, %v5052
        %v5055 = vshrl.u32 %v5002, 16
        %v5057 = vrot.slane %v5055, 4
        %v5058 = vshll.u32 %v5002, 16
        %v5060 = vrot.slane %v5058, 5
        %v5061 = vor.u32 %v5057, %v5060
        %v5063 = vshrl.u32 %v5003, 16
        %v5065 = vrot.slane %v5063, 4
        %v5066 = vshll.u32 %v5003, 16
        %v5068 = vrot.slane %v5066, 5
        %v5069 = vor.u32 %v5065, %v5068
        %v5071 = vshrl.u32 %v5004, 16
        %v5073 = vrot.slane %v5071, 4
        %v5074 = vshll.u32 %v5004, 16
        %v5076 = vrot.slane %v5074, 5
        %v5077 = vor.u32 %v5073, %v5076
        %v5079 = vshrl.u32 %v5005, 16
        %v5081 = vrot.slane %v5079, 4
        %v5082 = vshll.u32 %v5005, 16
        %v5084 = vrot.slane %v5082, 5
        %v5085 = vor.u32 %v5081, %v5084
        %5086 = vrot.lane.b32.xlu0 %v5013, 32
        %v5087 = vpop.permute.xlu0 %5086
        %5088 = vrot.lane.b32.xlu0 %v5021, 32
        %v5089 = vpop.permute.xlu0 %5088
        %5090 = vrot.lane.b32.xlu0 %v5029, 32
        %v5091 = vpop.permute.xlu0 %5090
        %5092 = vrot.lane.b32.xlu0 %v5037, 32
        %v5093 = vpop.permute.xlu0 %5092
        %5094 = vrot.lane.b32.xlu0 %v5045, 32
        %v5095 = vpop.permute.xlu0 %5094
        %5096 = vrot.lane.b32.xlu0 %v5053, 32
        %v5097 = vpop.permute.xlu0 %5096
        %5098 = vrot.lane.b32.xlu0 %v5061, 32
        %v5099 = vpop.permute.xlu0 %5098
        %5100 = vrot.lane.b32.xlu0 %v5069, 32
        %v5101 = vpop.permute.xlu0 %5100
        %5102 = vrot.lane.b32.xlu0 %v5077, 32
        %v5103 = vpop.permute.xlu0 %5102
        %5104 = vrot.lane.b32.xlu0 %v5085, 32
        %v5105 = vpop.permute.xlu0 %5104
        %v5116 = vunpack.c.l.b16 %v4906
        %v5117 = vunpack.c.l.b16 %v4907
        %v5118 = vunpack.c.l.b16 %v4908
        %v5119 = vunpack.c.l.b16 %v4909
        %v5120 = vunpack.c.l.b16 %v4910
        %v5121 = vunpack.c.l.b16 %v4911
        %v5122 = vunpack.c.l.b16 %v4912
        %v5123 = vunpack.c.l.b16 %v4913
        %v5124 = vunpack.c.l.b16 %v4914
        %v5125 = vunpack.c.l.b16 %v4915
        %v5126 = vpack.c.b16 %v5116, %v5116
        %v5127 = vpack.c.b16 %v5117, %v5117
        %v5128 = vpack.c.b16 %v5118, %v5118
        %v5129 = vpack.c.b16 %v5119, %v5119
        %v5130 = vpack.c.b16 %v5120, %v5120
        %v5131 = vpack.c.b16 %v5121, %v5121
        %v5132 = vpack.c.b16 %v5122, %v5122
        %v5133 = vpack.c.b16 %v5123, %v5123
        %v5134 = vpack.c.b16 %v5124, %v5124
        %v5135 = vpack.c.b16 %v5125, %v5125
        %v5136 = vrot.slane %v4996, 5
        %v5137 = vrot.slane %v5126, 5
        %v5138 = vsel %vm1114, %v5136, %v5137
        %v5139 = vrot.slane %v4997, 5
        %v5140 = vrot.slane %v5127, 5
        %v5141 = vsel %vm1114, %v5139, %v5140
        %v5142 = vrot.slane %v4998, 5
        %v5143 = vrot.slane %v5128, 5
        %v5144 = vsel %vm1114, %v5142, %v5143
        %v5145 = vrot.slane %v4999, 5
        %v5146 = vrot.slane %v5129, 5
        %v5147 = vsel %vm1114, %v5145, %v5146
        %v5148 = vrot.slane %v5000, 5
        %v5149 = vrot.slane %v5130, 5
        %v5150 = vsel %vm1114, %v5148, %v5149
        %v5151 = vrot.slane %v5001, 5
        %v5152 = vrot.slane %v5131, 5
        %v5153 = vsel %vm1114, %v5151, %v5152
        %v5154 = vrot.slane %v5002, 5
        %v5155 = vrot.slane %v5132, 5
        %v5156 = vsel %vm1114, %v5154, %v5155
        %v5157 = vrot.slane %v5003, 5
        %v5158 = vrot.slane %v5133, 5
        %v5159 = vsel %vm1114, %v5157, %v5158
        %v5160 = vrot.slane %v5004, 5
        %v5161 = vrot.slane %v5134, 5
        %v5162 = vsel %vm1114, %v5160, %v5161
        %v5163 = vrot.slane %v5005, 5
        %v5164 = vrot.slane %v5135, 5
        %v5165 = vsel %vm1114, %v5163, %v5164
        %5166 = vrot.lane.b32.xlu0 %v5136, 64
        %v5167 = vpop.permute.xlu0 %5166
        %5168 = vrot.lane.b32.xlu0 %v5138, 64
        %v5169 = vpop.permute.xlu0 %5168
        %5170 = vrot.lane.b32.xlu0 %v5139, 64
        %v5171 = vpop.permute.xlu0 %5170
        %5172 = vrot.lane.b32.xlu0 %v5141, 64
        %v5173 = vpop.permute.xlu0 %5172
        %5174 = vrot.lane.b32.xlu0 %v5142, 64
        %v5175 = vpop.permute.xlu0 %5174
        %5176 = vrot.lane.b32.xlu0 %v5144, 64
        %v5177 = vpop.permute.xlu0 %5176
        %5178 = vrot.lane.b32.xlu0 %v5145, 64
        %v5179 = vpop.permute.xlu0 %5178
        %5180 = vrot.lane.b32.xlu0 %v5147, 64
        %v5181 = vpop.permute.xlu0 %5180
        %5182 = vrot.lane.b32.xlu0 %v5148, 64
        %v5183 = vpop.permute.xlu0 %5182
        %5184 = vrot.lane.b32.xlu0 %v5150, 64
        %v5185 = vpop.permute.xlu0 %5184
        %5186 = vrot.lane.b32.xlu0 %v5151, 64
        %v5187 = vpop.permute.xlu0 %5186
        %5188 = vrot.lane.b32.xlu0 %v5153, 64
        %v5189 = vpop.permute.xlu0 %5188
        %5190 = vrot.lane.b32.xlu0 %v5154, 64
        %v5191 = vpop.permute.xlu0 %5190
        %5192 = vrot.lane.b32.xlu0 %v5156, 64
        %v5193 = vpop.permute.xlu0 %5192
        %5194 = vrot.lane.b32.xlu0 %v5157, 64
        %v5195 = vpop.permute.xlu0 %5194
        %5196 = vrot.lane.b32.xlu0 %v5159, 64
        %v5197 = vpop.permute.xlu0 %5196
        %5198 = vrot.lane.b32.xlu0 %v5160, 64
        %v5199 = vpop.permute.xlu0 %5198
        %5200 = vrot.lane.b32.xlu0 %v5162, 64
        %v5201 = vpop.permute.xlu0 %5200
        %5202 = vrot.lane.b32.xlu0 %v5163, 64
        %v5203 = vpop.permute.xlu0 %5202
        %5204 = vrot.lane.b32.xlu0 %v5165, 64
        %v5205 = vpop.permute.xlu0 %5204
        %v5208 = vsel %vm1199, %v4976, %v5087
        %v5210 = vsel %vm1199, %v4977, %v5087
        %v5213 = vsel %vm1199, %v4978, %v5089
        %v5215 = vsel %vm1199, %v4979, %v5089
        %v5218 = vsel %vm1199, %v4980, %v5091
        %v5220 = vsel %vm1199, %v4981, %v5091
        %v5223 = vsel %vm1199, %v4982, %v5093
        %v5225 = vsel %vm1199, %v4983, %v5093
        %v5228 = vsel %vm1199, %v4984, %v5095
        %v5230 = vsel %vm1199, %v4985, %v5095
        %v5233 = vsel %vm1199, %v4986, %v5097
        %v5235 = vsel %vm1199, %v4987, %v5097
        %v5238 = vsel %vm1199, %v4988, %v5099
        %v5240 = vsel %vm1199, %v4989, %v5099
        %v5243 = vsel %vm1199, %v4990, %v5101
        %v5245 = vsel %vm1199, %v4991, %v5101
        %v5248 = vsel %vm1199, %v4992, %v5103
        %v5250 = vsel %vm1199, %v4993, %v5103
        %v5253 = vsel %vm1199, %v4994, %v5105
        %v5255 = vsel %vm1199, %v4995, %v5105
        %v5257 = vsel %vm1260, %v5208, %v5167
        %v5259 = vsel %vm1260, %v5210, %v5169
        %v5261 = vsel %vm1260, %v5213, %v5171
        %v5263 = vsel %vm1260, %v5215, %v5173
        %v5265 = vsel %vm1260, %v5218, %v5175
        %v5267 = vsel %vm1260, %v5220, %v5177
        %v5269 = vsel %vm1260, %v5223, %v5179
        %v5271 = vsel %vm1260, %v5225, %v5181
        %v5273 = vsel %vm1260, %v5228, %v5183
        %v5275 = vsel %vm1260, %v5230, %v5185
        %v5277 = vsel %vm1260, %v5233, %v5187
        %v5279 = vsel %vm1260, %v5235, %v5189
        %v5281 = vsel %vm1260, %v5238, %v5191
        %v5283 = vsel %vm1260, %v5240, %v5193
        %v5285 = vsel %vm1260, %v5243, %v5195
        %v5287 = vsel %vm1260, %v5245, %v5197
        %v5289 = vsel %vm1260, %v5248, %v5199
        %v5291 = vsel %vm1260, %v5250, %v5201
        %v5293 = vsel %vm1260, %v5253, %v5203
        %v5295 = vsel %vm1260, %v5255, %v5205
        %v5296 = vshrl.u32 %v5257, 16
        %v5298 = vrot.slane %v5296, 3
        %v5299 = vshll.u32 %v5257, 16
        %v5301 = vrot.slane %v5299, 4
        %v5302 = vor.u32 %v5298, %v5301
        %v5303 = vshrl.u32 %v5259, 16
        %v5305 = vrot.slane %v5303, 3
        %v5306 = vshll.u32 %v5259, 16
        %v5308 = vrot.slane %v5306, 4
        %v5309 = vor.u32 %v5305, %v5308
        %v5310 = vsel %vm1309, %v5302, %v5309
        %v5311 = vshrl.u32 %v5261, 16
        %v5313 = vrot.slane %v5311, 3
        %v5314 = vshll.u32 %v5261, 16
        %v5316 = vrot.slane %v5314, 4
        %v5317 = vor.u32 %v5313, %v5316
        %v5318 = vshrl.u32 %v5263, 16
        %v5320 = vrot.slane %v5318, 3
        %v5321 = vshll.u32 %v5263, 16
        %v5323 = vrot.slane %v5321, 4
        %v5324 = vor.u32 %v5320, %v5323
        %v5325 = vsel %vm1309, %v5317, %v5324
        %v5326 = vshrl.u32 %v5265, 16
        %v5328 = vrot.slane %v5326, 3
        %v5329 = vshll.u32 %v5265, 16
        %v5331 = vrot.slane %v5329, 4
        %v5332 = vor.u32 %v5328, %v5331
        %v5333 = vshrl.u32 %v5267, 16
        %v5335 = vrot.slane %v5333, 3
        %v5336 = vshll.u32 %v5267, 16
        %v5338 = vrot.slane %v5336, 4
        %v5339 = vor.u32 %v5335, %v5338
        %v5340 = vsel %vm1309, %v5332, %v5339
        %v5341 = vshrl.u32 %v5269, 16
        %v5343 = vrot.slane %v5341, 3
        %v5344 = vshll.u32 %v5269, 16
        %v5346 = vrot.slane %v5344, 4
        %v5347 = vor.u32 %v5343, %v5346
        %v5348 = vshrl.u32 %v5271, 16
        %v5350 = vrot.slane %v5348, 3
        %v5351 = vshll.u32 %v5271, 16
        %v5353 = vrot.slane %v5351, 4
        %v5354 = vor.u32 %v5350, %v5353
        %v5355 = vsel %vm1309, %v5347, %v5354
        %v5356 = vshrl.u32 %v5273, 16
        %v5358 = vrot.slane %v5356, 3
        %v5359 = vshll.u32 %v5273, 16
        %v5361 = vrot.slane %v5359, 4
        %v5362 = vor.u32 %v5358, %v5361
        %v5363 = vshrl.u32 %v5275, 16
        %v5365 = vrot.slane %v5363, 3
        %v5366 = vshll.u32 %v5275, 16
        %v5368 = vrot.slane %v5366, 4
        %v5369 = vor.u32 %v5365, %v5368
        %v5370 = vsel %vm1309, %v5362, %v5369
        %v5371 = vshrl.u32 %v5277, 16
        %v5373 = vrot.slane %v5371, 3
        %v5374 = vshll.u32 %v5277, 16
        %v5376 = vrot.slane %v5374, 4
        %v5377 = vor.u32 %v5373, %v5376
        %v5378 = vshrl.u32 %v5279, 16
        %v5380 = vrot.slane %v5378, 3
        %v5381 = vshll.u32 %v5279, 16
        %v5383 = vrot.slane %v5381, 4
        %v5384 = vor.u32 %v5380, %v5383
        %v5385 = vsel %vm1309, %v5377, %v5384
        %v5386 = vshrl.u32 %v5281, 16
        %v5388 = vrot.slane %v5386, 3
        %v5389 = vshll.u32 %v5281, 16
        %v5391 = vrot.slane %v5389, 4
        %v5392 = vor.u32 %v5388, %v5391
        %v5393 = vshrl.u32 %v5283, 16
        %v5395 = vrot.slane %v5393, 3
        %v5396 = vshll.u32 %v5283, 16
        %v5398 = vrot.slane %v5396, 4
        %v5399 = vor.u32 %v5395, %v5398
        %v5400 = vsel %vm1309, %v5392, %v5399
        %v5401 = vshrl.u32 %v5285, 16
        %v5403 = vrot.slane %v5401, 3
        %v5404 = vshll.u32 %v5285, 16
        %v5406 = vrot.slane %v5404, 4
        %v5407 = vor.u32 %v5403, %v5406
        %v5408 = vshrl.u32 %v5287, 16
        %v5410 = vrot.slane %v5408, 3
        %v5411 = vshll.u32 %v5287, 16
        %v5413 = vrot.slane %v5411, 4
        %v5414 = vor.u32 %v5410, %v5413
        %v5415 = vsel %vm1309, %v5407, %v5414
        %v5416 = vshrl.u32 %v5289, 16
        %v5418 = vrot.slane %v5416, 3
        %v5419 = vshll.u32 %v5289, 16
        %v5421 = vrot.slane %v5419, 4
        %v5422 = vor.u32 %v5418, %v5421
        %v5423 = vshrl.u32 %v5291, 16
        %v5425 = vrot.slane %v5423, 3
        %v5426 = vshll.u32 %v5291, 16
        %v5428 = vrot.slane %v5426, 4
        %v5429 = vor.u32 %v5425, %v5428
        %v5430 = vsel %vm1309, %v5422, %v5429
        %v5431 = vshrl.u32 %v5293, 16
        %v5433 = vrot.slane %v5431, 3
        %v5434 = vshll.u32 %v5293, 16
        %v5436 = vrot.slane %v5434, 4
        %v5437 = vor.u32 %v5433, %v5436
        %v5438 = vshrl.u32 %v5295, 16
        %v5440 = vrot.slane %v5438, 3
        %v5441 = vshll.u32 %v5295, 16
        %v5443 = vrot.slane %v5441, 4
        %v5444 = vor.u32 %v5440, %v5443
        %v5445 = vsel %vm1309, %v5437, %v5444
        %s5446 = scalar_lea.vmem %s6, 96
        %v5447 = vld [vmem:[%s5446] sm:$0xf]
        %v5448 = vld [vmem:[%s5446 + $0x4] sm:$0xf]
        %v5449 = vld [vmem:[%s5446 + $0x8] sm:$0xf]
        %v5450 = vld [vmem:[%s5446 + $0xc] sm:$0xf]
        %v5451 = vld [vmem:[%s5446 + $0x10] sm:$0xf]
        %v5452 = vld [vmem:[%s5446 + $0x14] sm:$0xf]
        %v5453 = vld [vmem:[%s5446 + $0x18] sm:$0xf]
        %v5454 = vld [vmem:[%s5446 + $0x1c] sm:$0xf]
        %v5455 = vld [vmem:[%s5446 + $0x20] sm:$0xf]
        %v5456 = vld [vmem:[%s5446 + $0x24] sm:$0xf]
        %v5457 = vld [vmem:[%s5446 + $0x28] sm:$0xf]
        %v5458 = vld [vmem:[%s5446 + $0x2c] sm:$0xf]
        %v5471 = vunpack.c.l.b16 %v5447
        %v5472 = vunpack.c.l.b16 %v5448
        %v5473 = vunpack.c.l.b16 %v5449
        %v5474 = vunpack.c.l.b16 %v5450
        %v5475 = vunpack.c.l.b16 %v5451
        %v5476 = vunpack.c.l.b16 %v5452
        %v5477 = vunpack.c.l.b16 %v5453
        %v5478 = vunpack.c.l.b16 %v5454
        %v5479 = vunpack.c.l.b16 %v5455
        %v5480 = vunpack.c.l.b16 %v5456
        %v5481 = vunpack.c.l.b16 %v5457
        %v5482 = vunpack.c.l.b16 %v5458
        %v5483 = vpack.c.b16 %v5472, %v5471
        %v5484 = vpack.c.b16 %v5474, %v5473
        %v5485 = vpack.c.b16 %v5476, %v5475
        %v5486 = vpack.c.b16 %v5478, %v5477
        %v5487 = vpack.c.b16 %v5480, %v5479
        %v5488 = vpack.c.b16 %v5482, %v5481
        %v5496 = vsel %vm2236, %v5310, 0
        %v5499 = vsel %vm2236, %v5325, 0
        %v5502 = vsel %vm2236, %v5340, 0
        %v5505 = vsel %vm2236, %v5355, 0
        %v5508 = vsel %vm2236, %v5370, 0
        %v5511 = vsel %vm2236, %v5385, 0
        %v5514 = vsel %vm2236, %v5400, 0
        %v5517 = vsel %vm2236, %v5415, 0
        %v5520 = vsel %vm2236, %v5430, 0
        %v5523 = vsel %vm2236, %v5445, 0
        %5525 = vmatpush.bf16.msra.mxu0 0
        %5526 = vmatpush.bf16.msra.mxu0 0
        %5527 = vmatpush.bf16.msra.mxu0 %v5488
        %5528 = vmatpush.bf16.msra.mxu0 %v5487
        %5529 = vmatpush.bf16.msra.mxu0 %v5486
        %5530 = vmatpush.bf16.msra.mxu0 %v5485
        %5531 = vmatpush.bf16.msra.mxu0 %v5484
        %5532 = vmatpush.bf16.msra.mxu0 %v5483
        %5533 = vmatmul.bf16.gmra.mxu0 %v5496
        %v5534 = vpop.f32.mrf.mxu0
        %v5535 = vadd.f32 0.0, %v5534
        %v5536 = vpop.f32.mrf.mxu0
        %v5537 = vadd.f32 0.0, %v5536
        %5538 = vmatmul.bf16.gmra.mxu0 %v5499
        %v5539 = vpop.f32.mrf.mxu0
        %v5540 = vadd.f32 0.0, %v5539
        %v5541 = vpop.f32.mrf.mxu0
        %v5542 = vadd.f32 0.0, %v5541
        %5543 = vmatmul.bf16.gmra.mxu0 %v5502
        %v5544 = vpop.f32.mrf.mxu0
        %v5545 = vadd.f32 0.0, %v5544
        %v5546 = vpop.f32.mrf.mxu0
        %v5547 = vadd.f32 0.0, %v5546
        %5548 = vmatmul.bf16.gmra.mxu0 %v5505
        %v5549 = vpop.f32.mrf.mxu0
        %v5550 = vadd.f32 0.0, %v5549
        %v5551 = vpop.f32.mrf.mxu0
        %v5552 = vadd.f32 0.0, %v5551
        %5553 = vmatmul.bf16.gmra.mxu0 %v5508
        %v5554 = vpop.f32.mrf.mxu0
        %v5555 = vadd.f32 0.0, %v5554
        %v5556 = vpop.f32.mrf.mxu0
        %v5557 = vadd.f32 0.0, %v5556
        %5558 = vmatmul.bf16.gmra.mxu0 %v5511
        %v5559 = vpop.f32.mrf.mxu0
        %v5560 = vadd.f32 0.0, %v5559
        %v5561 = vpop.f32.mrf.mxu0
        %v5562 = vadd.f32 0.0, %v5561
        %5563 = vmatmul.bf16.gmra.mxu0 %v5514
        %v5564 = vpop.f32.mrf.mxu0
        %v5565 = vadd.f32 0.0, %v5564
        %v5566 = vpop.f32.mrf.mxu0
        %v5567 = vadd.f32 0.0, %v5566
        %5568 = vmatmul.bf16.gmra.mxu0 %v5517
        %v5569 = vpop.f32.mrf.mxu0
        %v5570 = vadd.f32 0.0, %v5569
        %v5571 = vpop.f32.mrf.mxu0
        %v5572 = vadd.f32 0.0, %v5571
        %5573 = vmatmul.bf16.gmra.mxu0 %v5520
        %v5574 = vpop.f32.mrf.mxu0
        %v5575 = vadd.f32 0.0, %v5574
        %v5576 = vpop.f32.mrf.mxu0
        %v5577 = vadd.f32 0.0, %v5576
        %5578 = vmatmul.bf16.gmra.mxu0 %v5523
        %v5579 = vpop.f32.mrf.mxu0
        %v5580 = vadd.f32 0.0, %v5579
        %v5581 = vpop.f32.mrf.mxu0
        %v5582 = vadd.f32 0.0, %v5581
        %5583 = vdwg.mxu0
        %v5584 = vadd.f32 %v4827, %v5535
        %v5585 = vadd.f32 %v4829, %v5537
        %v5586 = vadd.f32 %v4832, %v5540
        %v5587 = vadd.f32 %v4834, %v5542
        %v5588 = vadd.f32 %v4837, %v5545
        %v5589 = vadd.f32 %v4839, %v5547
        %v5590 = vadd.f32 %v4842, %v5550
        %v5591 = vadd.f32 %v4844, %v5552
        %v5592 = vadd.f32 %v4847, %v5555
        %v5593 = vadd.f32 %v4849, %v5557
        %v5594 = vadd.f32 %v4852, %v5560
        %v5595 = vadd.f32 %v4854, %v5562
        %v5596 = vadd.f32 %v4857, %v5565
        %v5597 = vadd.f32 %v4859, %v5567
        %v5598 = vadd.f32 %v4862, %v5570
        %v5599 = vadd.f32 %v4864, %v5572
        %v5600 = vadd.f32 %v4867, %v5575
        %v5601 = vadd.f32 %v4869, %v5577
        %v5602 = vadd.f32 %v4872, %v5580
        %v5603 = vadd.f32 %v4874, %v5582
        %v5604 = vld [vmem:[%s7] sm:$0x1]
        %v5606 = vperm.slane %v5604, 0
        %v5608 = vadd.f32 %v5584, %v5606
        %v5609 = vadd.f32 %v5585, %v5606
        %v5610 = vadd.f32 %v5586, %v5606
        %v5611 = vadd.f32 %v5587, %v5606
        %v5612 = vadd.f32 %v5588, %v5606
        %v5613 = vadd.f32 %v5589, %v5606
        %v5614 = vadd.f32 %v5590, %v5606
        %v5615 = vadd.f32 %v5591, %v5606
        %v5616 = vadd.f32 %v5592, %v5606
        %v5617 = vadd.f32 %v5593, %v5606
        %v5618 = vadd.f32 %v5594, %v5606
        %v5619 = vadd.f32 %v5595, %v5606
        %v5620 = vadd.f32 %v5596, %v5606
        %v5621 = vadd.f32 %v5597, %v5606
        %v5622 = vadd.f32 %v5598, %v5606
        %v5623 = vadd.f32 %v5599, %v5606
        %v5624 = vadd.f32 %v5600, %v5606
        %v5625 = vadd.f32 %v5601, %v5606
        %v5626 = vadd.f32 %v5602, %v5606
        %v5627 = vadd.f32 %v5603, %v5606
        %v5628 = vmax.f32 %v5608, 0.0
        %v5629 = vmax.f32 %v5609, 0.0
        %v5630 = vmax.f32 %v5610, 0.0
        %v5631 = vmax.f32 %v5611, 0.0
        %v5632 = vmax.f32 %v5612, 0.0
        %v5633 = vmax.f32 %v5613, 0.0
        %v5634 = vmax.f32 %v5614, 0.0
        %v5635 = vmax.f32 %v5615, 0.0
        %v5636 = vmax.f32 %v5616, 0.0
        %v5637 = vmax.f32 %v5617, 0.0
        %v5638 = vmax.f32 %v5618, 0.0
        %v5639 = vmax.f32 %v5619, 0.0
        %v5640 = vmax.f32 %v5620, 0.0
        %v5641 = vmax.f32 %v5621, 0.0
        %v5642 = vmax.f32 %v5622, 0.0
        %v5643 = vmax.f32 %v5623, 0.0
        %v5644 = vmax.f32 %v5624, 0.0
        %v5645 = vmax.f32 %v5625, 0.0
        %v5646 = vmax.f32 %v5626, 0.0
        %v5647 = vmax.f32 %v5627, 0.0
        %v5648 = vpack.c.bf16 %v5628, %v5628
        %v5649 = vpack.c.bf16 %v5629, %v5629
        %v5650 = vpack.c.bf16 %v5630, %v5630
        %v5651 = vpack.c.bf16 %v5631, %v5631
        %v5652 = vpack.c.bf16 %v5632, %v5632
        %v5653 = vpack.c.bf16 %v5633, %v5633
        %v5654 = vpack.c.bf16 %v5634, %v5634
        %v5655 = vpack.c.bf16 %v5635, %v5635
        %v5656 = vpack.c.bf16 %v5636, %v5636
        %v5657 = vpack.c.bf16 %v5637, %v5637
        %v5658 = vpack.c.bf16 %v5638, %v5638
        %v5659 = vpack.c.bf16 %v5639, %v5639
        %v5660 = vpack.c.bf16 %v5640, %v5640
        %v5661 = vpack.c.bf16 %v5641, %v5641
        %v5662 = vpack.c.bf16 %v5642, %v5642
        %v5663 = vpack.c.bf16 %v5643, %v5643
        %v5664 = vpack.c.bf16 %v5644, %v5644
        %v5665 = vpack.c.bf16 %v5645, %v5645
        %v5666 = vpack.c.bf16 %v5646, %v5646
        %v5667 = vpack.c.bf16 %v5647, %v5647
        %5668 = vst.msk [vmem:[#allocation2 + $0x4] sm:$0xf] %vm420, %v5648
        %5669 = vst.msk [vmem:[#allocation2 + $0x8] sm:$0xf] %vm420, %v5649
        %5670 = vst.msk [vmem:[#allocation2 + $0x14] sm:$0xf] %vm420, %v5650
        %5671 = vst.msk [vmem:[#allocation2 + $0x18] sm:$0xf] %vm420, %v5651
        %5672 = vst.msk [vmem:[#allocation2 + $0x24] sm:$0xf] %vm420, %v5652
        %5673 = vst.msk [vmem:[#allocation2 + $0x28] sm:$0xf] %vm420, %v5653
        %5674 = vst.msk [vmem:[#allocation2 + $0x34] sm:$0xf] %vm420, %v5654
        %5675 = vst.msk [vmem:[#allocation2 + $0x38] sm:$0xf] %vm420, %v5655
        %5676 = vst.msk [vmem:[#allocation2 + $0x44] sm:$0xf] %vm420, %v5656
        %5677 = vst.msk [vmem:[#allocation2 + $0x48] sm:$0xf] %vm420, %v5657
        %5678 = vst.msk [vmem:[#allocation2 + $0x54] sm:$0xf] %vm420, %v5658
        %5679 = vst.msk [vmem:[#allocation2 + $0x58] sm:$0xf] %vm420, %v5659
        %5680 = vst.msk [vmem:[#allocation2 + $0x64] sm:$0xf] %vm420, %v5660
        %5681 = vst.msk [vmem:[#allocation2 + $0x68] sm:$0xf] %vm420, %v5661
        %5682 = vst.msk [vmem:[#allocation2 + $0x74] sm:$0xf] %vm420, %v5662
        %5683 = vst.msk [vmem:[#allocation2 + $0x78] sm:$0xf] %vm420, %v5663
        %5684 = vst.msk [vmem:[#allocation2 + $0x84] sm:$0xf] %vm420, %v5664
        %5685 = vst.msk [vmem:[#allocation2 + $0x88] sm:$0xf] %vm420, %v5665
        %5686 = vst.msk [vmem:[#allocation2 + $0x94] sm:$0xf] %vm420, %v5666
        %5687 = vst.msk [vmem:[#allocation2 + $0x98] sm:$0xf] %vm420, %v5667
        // Predicated region
        $region77: #{plain_refiner_pallas.1} parent=59 // pred_check
          %p5688 = pneg %p781
        $region78: #{plain_refiner_pallas.1} parent=59 // pred_check_branch
          %5690 = sbr.rel (%p5688) target = $region80
        $region79: #{plain_refiner_pallas.1} parent=59 // pred_region
          %5691 = vst.msk [vmem:[#allocation2 + $0x4] sm:$0xf] %vm420, 0
          %5692 = vst.msk [vmem:[#allocation2 + $0x8] sm:$0xf] %vm420, 0
        $region80: #{plain_refiner_pallas.1} parent=59 // pred_fallthru
          _
        // Predicated region
        $region81: #{plain_refiner_pallas.1} parent=59 // pred_check
          %p5693 = pneg %p791
        $region82: #{plain_refiner_pallas.1} parent=59 // pred_check_branch
          %5695 = sbr.rel (%p5693) target = $region84
        $region83: #{plain_refiner_pallas.1} parent=59 // pred_region
          %s5696 = scalar_lea.vmem [#allocation2], 144
          %5697 = vst.msk [vmem:[%s5696 + $0x4] sm:$0xf] %vm420, 0
          %5698 = vst.msk [vmem:[%s5696 + $0x8] sm:$0xf] %vm420, 0
        $region84: #{plain_refiner_pallas.1} parent=59 // pred_fallthru
          _
        %v5699 = vld [vmem:[#allocation2] sm:$0x8]
        %v5700 = vld [vmem:[#allocation2 + $0x4] sm:$0xf]
        %v5701 = vld [vmem:[#allocation2 + $0x8] sm:$0xf]
        %v5702 = vld [vmem:[#allocation2 + $0x10] sm:$0x8]
        %v5703 = vld [vmem:[#allocation2 + $0x14] sm:$0xf]
        %v5704 = vld [vmem:[#allocation2 + $0x18] sm:$0xf]
        %v5705 = vld [vmem:[#allocation2 + $0x20] sm:$0x8]
        %v5706 = vld [vmem:[#allocation2 + $0x24] sm:$0xf]
        %v5707 = vld [vmem:[#allocation2 + $0x28] sm:$0xf]
        %v5708 = vld [vmem:[#allocation2 + $0x30] sm:$0x8]
        %v5709 = vld [vmem:[#allocation2 + $0x34] sm:$0xf]
        %v5710 = vld [vmem:[#allocation2 + $0x38] sm:$0xf]
        %v5711 = vld [vmem:[#allocation2 + $0x40] sm:$0x8]
        %v5712 = vld [vmem:[#allocation2 + $0x44] sm:$0xf]
        %v5713 = vld [vmem:[#allocation2 + $0x48] sm:$0xf]
        %v5714 = vld [vmem:[#allocation2 + $0x50] sm:$0x8]
        %v5715 = vld [vmem:[#allocation2 + $0x54] sm:$0xf]
        %v5716 = vld [vmem:[#allocation2 + $0x58] sm:$0xf]
        %v5717 = vld [vmem:[#allocation2 + $0x60] sm:$0x8]
        %v5718 = vld [vmem:[#allocation2 + $0x64] sm:$0xf]
        %v5719 = vld [vmem:[#allocation2 + $0x68] sm:$0xf]
        %v5720 = vld [vmem:[#allocation2 + $0x70] sm:$0x8]
        %v5721 = vld [vmem:[#allocation2 + $0x74] sm:$0xf]
        %v5722 = vld [vmem:[#allocation2 + $0x78] sm:$0xf]
        %v5723 = vunpack.c.l.bf16 %v5699
        %v5724 = vunpack.c.l.bf16 %v5700
        %v5725 = vunpack.c.l.bf16 %v5701
        %v5726 = vunpack.c.l.bf16 %v5702
        %v5727 = vunpack.c.l.bf16 %v5703
        %v5728 = vunpack.c.l.bf16 %v5704
        %v5729 = vunpack.c.l.bf16 %v5705
        %v5730 = vunpack.c.l.bf16 %v5706
        %v5731 = vunpack.c.l.bf16 %v5707
        %v5732 = vunpack.c.l.bf16 %v5708
        %v5733 = vunpack.c.l.bf16 %v5709
        %v5734 = vunpack.c.l.bf16 %v5710
        %v5735 = vunpack.c.l.bf16 %v5711
        %v5736 = vunpack.c.l.bf16 %v5712
        %v5737 = vunpack.c.l.bf16 %v5713
        %v5738 = vunpack.c.l.bf16 %v5714
        %v5739 = vunpack.c.l.bf16 %v5715
        %v5740 = vunpack.c.l.bf16 %v5716
        %v5741 = vunpack.c.l.bf16 %v5717
        %v5742 = vunpack.c.l.bf16 %v5718
        %v5743 = vunpack.c.l.bf16 %v5719
        %v5744 = vunpack.c.l.bf16 %v5720
        %v5745 = vunpack.c.l.bf16 %v5721
        %v5746 = vunpack.c.l.bf16 %v5722
        %v5747 = vld [vmem:[%s8] sm:$0x1]
        %v5749 = vperm.slane %v5747, 0
        %v5751 = vmul.f32 %v5723, %v5749
        %v5752 = vmul.f32 %v5724, %v5749
        %v5753 = vmul.f32 %v5725, %v5749
        %v5754 = vmul.f32 %v5726, %v5749
        %v5755 = vmul.f32 %v5727, %v5749
        %v5756 = vmul.f32 %v5728, %v5749
        %v5757 = vmul.f32 %v5729, %v5749
        %v5758 = vmul.f32 %v5730, %v5749
        %v5759 = vmul.f32 %v5731, %v5749
        %v5760 = vmul.f32 %v5732, %v5749
        %v5761 = vmul.f32 %v5733, %v5749
        %v5762 = vmul.f32 %v5734, %v5749
        %v5763 = vmul.f32 %v5735, %v5749
        %v5764 = vmul.f32 %v5736, %v5749
        %v5765 = vmul.f32 %v5737, %v5749
        %v5766 = vmul.f32 %v5738, %v5749
        %v5767 = vmul.f32 %v5739, %v5749
        %v5768 = vmul.f32 %v5740, %v5749
        %v5769 = vmul.f32 %v5741, %v5749
        %v5770 = vmul.f32 %v5742, %v5749
        %v5771 = vmul.f32 %v5743, %v5749
        %v5772 = vmul.f32 %v5744, %v5749
        %v5773 = vmul.f32 %v5745, %v5749
        %v5774 = vmul.f32 %v5746, %v5749
        %s5775 = scalar_lea.vmem %s8, 1
        %v5776 = vld [vmem:[%s5775] sm:$0x1]
        %v5778 = vperm.slane %v5776, 0
        %v5780 = vmul.f32 %v5724, %v5778
        %v5781 = vmul.f32 %v5725, %v5778
        %v5782 = vmul.f32 %v5727, %v5778
        %v5783 = vmul.f32 %v5728, %v5778
        %v5784 = vmul.f32 %v5730, %v5778
        %v5785 = vmul.f32 %v5731, %v5778
        %v5786 = vmul.f32 %v5733, %v5778
        %v5787 = vmul.f32 %v5734, %v5778
        %v5788 = vmul.f32 %v5736, %v5778
        %v5789 = vmul.f32 %v5737, %v5778
        %v5790 = vmul.f32 %v5739, %v5778
        %v5791 = vmul.f32 %v5740, %v5778
        %v5792 = vmul.f32 %v5742, %v5778
        %v5793 = vmul.f32 %v5743, %v5778
        %v5794 = vmul.f32 %v5745, %v5778
        %v5795 = vmul.f32 %v5746, %v5778
        %vm5812 = vcmask 1046528
        %v5813 = vrot.slane %v5780, 1
        %v5814 = vrot.slane %v5781, 1
        %v5815 = vsel %vm5812, %v5813, %v5814
        %v5816 = vrot.slane %v5782, 1
        %v5817 = vrot.slane %v5783, 1
        %v5818 = vsel %vm5812, %v5816, %v5817
        %v5819 = vrot.slane %v5784, 1
        %v5820 = vrot.slane %v5785, 1
        %v5821 = vsel %vm5812, %v5819, %v5820
        %v5822 = vrot.slane %v5786, 1
        %v5823 = vrot.slane %v5787, 1
        %v5824 = vsel %vm5812, %v5822, %v5823
        %v5825 = vrot.slane %v5788, 1
        %v5826 = vrot.slane %v5789, 1
        %v5827 = vsel %vm5812, %v5825, %v5826
        %v5828 = vrot.slane %v5790, 1
        %v5829 = vrot.slane %v5791, 1
        %v5830 = vsel %vm5812, %v5828, %v5829
        %v5831 = vrot.slane %v5792, 1
        %v5832 = vrot.slane %v5793, 1
        %v5833 = vsel %vm5812, %v5831, %v5832
        %v5834 = vrot.slane %v5794, 1
        %v5835 = vrot.slane %v5795, 1
        %v5836 = vsel %vm5812, %v5834, %v5835
        %v5861 = vadd.f32 %v5751, %v5813
        %v5862 = vadd.f32 %v5752, %v5815
        %v5863 = vadd.f32 %v5753, %v5814
        %v5864 = vadd.f32 %v5754, %v5816
        %v5865 = vadd.f32 %v5755, %v5818
        %v5866 = vadd.f32 %v5756, %v5817
        %v5867 = vadd.f32 %v5757, %v5819
        %v5868 = vadd.f32 %v5758, %v5821
        %v5869 = vadd.f32 %v5759, %v5820
        %v5870 = vadd.f32 %v5760, %v5822
        %v5871 = vadd.f32 %v5761, %v5824
        %v5872 = vadd.f32 %v5762, %v5823
        %v5873 = vadd.f32 %v5763, %v5825
        %v5874 = vadd.f32 %v5764, %v5827
        %v5875 = vadd.f32 %v5765, %v5826
        %v5876 = vadd.f32 %v5766, %v5828
        %v5877 = vadd.f32 %v5767, %v5830
        %v5878 = vadd.f32 %v5768, %v5829
        %v5879 = vadd.f32 %v5769, %v5831
        %v5880 = vadd.f32 %v5770, %v5833
        %v5881 = vadd.f32 %v5771, %v5832
        %v5882 = vadd.f32 %v5772, %v5834
        %v5883 = vadd.f32 %v5773, %v5836
        %v5884 = vadd.f32 %v5774, %v5835
        %v5885 = vld [vmem:[#allocation2 + $0xc] sm:$0x1]
        %v5886 = vld [vmem:[#allocation2 + $0x1c] sm:$0x1]
        %v5887 = vld [vmem:[#allocation2 + $0x2c] sm:$0x1]
        %v5888 = vld [vmem:[#allocation2 + $0x3c] sm:$0x1]
        %v5889 = vld [vmem:[#allocation2 + $0x4c] sm:$0x1]
        %v5890 = vld [vmem:[#allocation2 + $0x5c] sm:$0x1]
        %v5891 = vld [vmem:[#allocation2 + $0x6c] sm:$0x1]
        %v5892 = vld [vmem:[#allocation2 + $0x7c] sm:$0x1]
        %v5893 = vunpack.c.l.bf16 %v5885
        %v5894 = vunpack.c.l.bf16 %v5886
        %v5895 = vunpack.c.l.bf16 %v5887
        %v5896 = vunpack.c.l.bf16 %v5888
        %v5897 = vunpack.c.l.bf16 %v5889
        %v5898 = vunpack.c.l.bf16 %v5890
        %v5899 = vunpack.c.l.bf16 %v5891
        %v5900 = vunpack.c.l.bf16 %v5892
        %s5901 = scalar_lea.vmem %s8, 2
        %v5902 = vld [vmem:[%s5901] sm:$0x1]
        %v5904 = vperm.slane %v5902, 0
        %v5906 = vmul.f32 %v5724, %v5904
        %v5907 = vmul.f32 %v5725, %v5904
        %v5908 = vmul.f32 %v5893, %v5904
        %v5909 = vmul.f32 %v5727, %v5904
        %v5910 = vmul.f32 %v5728, %v5904
        %v5911 = vmul.f32 %v5894, %v5904
        %v5912 = vmul.f32 %v5730, %v5904
        %v5913 = vmul.f32 %v5731, %v5904
        %v5914 = vmul.f32 %v5895, %v5904
        %v5915 = vmul.f32 %v5733, %v5904
        %v5916 = vmul.f32 %v5734, %v5904
        %v5917 = vmul.f32 %v5896, %v5904
        %v5918 = vmul.f32 %v5736, %v5904
        %v5919 = vmul.f32 %v5737, %v5904
        %v5920 = vmul.f32 %v5897, %v5904
        %v5921 = vmul.f32 %v5739, %v5904
        %v5922 = vmul.f32 %v5740, %v5904
        %v5923 = vmul.f32 %v5898, %v5904
        %v5924 = vmul.f32 %v5742, %v5904
        %v5925 = vmul.f32 %v5743, %v5904
        %v5926 = vmul.f32 %v5899, %v5904
        %v5927 = vmul.f32 %v5745, %v5904
        %v5928 = vmul.f32 %v5746, %v5904
        %v5929 = vmul.f32 %v5900, %v5904
        %vm5954 = vcmask 1045504
        %v5955 = vrot.slane %v5906, 2
        %v5956 = vrot.slane %v5907, 2
        %v5957 = vsel %vm5954, %v5955, %v5956
        %v5958 = vrot.slane %v5908, 2
        %v5959 = vsel %vm5954, %v5956, %v5958
        %v5960 = vrot.slane %v5909, 2
        %v5961 = vrot.slane %v5910, 2
        %v5962 = vsel %vm5954, %v5960, %v5961
        %v5963 = vrot.slane %v5911, 2
        %v5964 = vsel %vm5954, %v5961, %v5963
        %v5965 = vrot.slane %v5912, 2
        %v5966 = vrot.slane %v5913, 2
        %v5967 = vsel %vm5954, %v5965, %v5966
        %v5968 = vrot.slane %v5914, 2
        %v5969 = vsel %vm5954, %v5966, %v5968
        %v5970 = vrot.slane %v5915, 2
        %v5971 = vrot.slane %v5916, 2
        %v5972 = vsel %vm5954, %v5970, %v5971
        %v5973 = vrot.slane %v5917, 2
        %v5974 = vsel %vm5954, %v5971, %v5973
        %v5975 = vrot.slane %v5918, 2
        %v5976 = vrot.slane %v5919, 2
        %v5977 = vsel %vm5954, %v5975, %v5976
        %v5978 = vrot.slane %v5920, 2
        %v5979 = vsel %vm5954, %v5976, %v5978
        %v5980 = vrot.slane %v5921, 2
        %v5981 = vrot.slane %v5922, 2
        %v5982 = vsel %vm5954, %v5980, %v5981
        %v5983 = vrot.slane %v5923, 2
        %v5984 = vsel %vm5954, %v5981, %v5983
        %v5985 = vrot.slane %v5924, 2
        %v5986 = vrot.slane %v5925, 2
        %v5987 = vsel %vm5954, %v5985, %v5986
        %v5988 = vrot.slane %v5926, 2
        %v5989 = vsel %vm5954, %v5986, %v5988
        %v5990 = vrot.slane %v5927, 2
        %v5991 = vrot.slane %v5928, 2
        %v5992 = vsel %vm5954, %v5990, %v5991
        %v5993 = vrot.slane %v5929, 2
        %v5994 = vsel %vm5954, %v5991, %v5993
        %v6019 = vadd.f32 %v5861, %v5955
        %v6020 = vadd.f32 %v5862, %v5957
        %v6021 = vadd.f32 %v5863, %v5959
        %v6022 = vadd.f32 %v5864, %v5960
        %v6023 = vadd.f32 %v5865, %v5962
        %v6024 = vadd.f32 %v5866, %v5964
        %v6025 = vadd.f32 %v5867, %v5965
        %v6026 = vadd.f32 %v5868, %v5967
        %v6027 = vadd.f32 %v5869, %v5969
        %v6028 = vadd.f32 %v5870, %v5970
        %v6029 = vadd.f32 %v5871, %v5972
        %v6030 = vadd.f32 %v5872, %v5974
        %v6031 = vadd.f32 %v5873, %v5975
        %v6032 = vadd.f32 %v5874, %v5977
        %v6033 = vadd.f32 %v5875, %v5979
        %v6034 = vadd.f32 %v5876, %v5980
        %v6035 = vadd.f32 %v5877, %v5982
        %v6036 = vadd.f32 %v5878, %v5984
        %v6037 = vadd.f32 %v5879, %v5985
        %v6038 = vadd.f32 %v5880, %v5987
        %v6039 = vadd.f32 %v5881, %v5989
        %v6040 = vadd.f32 %v5882, %v5990
        %v6041 = vadd.f32 %v5883, %v5992
        %v6042 = vadd.f32 %v5884, %v5994
        %v6043 = vld [vmem:[%s1502] sm:$0x8]
        %v6044 = vld [vmem:[%s1502 + $0x4] sm:$0xf]
        %v6045 = vld [vmem:[%s1502 + $0x8] sm:$0xf]
        %v6046 = vld [vmem:[%s1502 + $0x10] sm:$0x8]
        %v6047 = vld [vmem:[%s1502 + $0x14] sm:$0xf]
        %v6048 = vld [vmem:[%s1502 + $0x18] sm:$0xf]
        %v6049 = vld [vmem:[%s1502 + $0x20] sm:$0x8]
        %v6050 = vld [vmem:[%s1502 + $0x24] sm:$0xf]
        %v6051 = vld [vmem:[%s1502 + $0x28] sm:$0xf]
        %v6052 = vld [vmem:[%s1502 + $0x30] sm:$0x8]
        %v6053 = vld [vmem:[%s1502 + $0x34] sm:$0xf]
        %v6054 = vld [vmem:[%s1502 + $0x38] sm:$0xf]
        %v6055 = vld [vmem:[%s1502 + $0x40] sm:$0x8]
        %v6056 = vld [vmem:[%s1502 + $0x44] sm:$0xf]
        %v6057 = vld [vmem:[%s1502 + $0x48] sm:$0xf]
        %v6058 = vld [vmem:[%s1502 + $0x50] sm:$0x8]
        %v6059 = vld [vmem:[%s1502 + $0x54] sm:$0xf]
        %v6060 = vld [vmem:[%s1502 + $0x58] sm:$0xf]
        %v6061 = vld [vmem:[%s1502 + $0x60] sm:$0x8]
        %v6062 = vld [vmem:[%s1502 + $0x64] sm:$0xf]
        %v6063 = vld [vmem:[%s1502 + $0x68] sm:$0xf]
        %v6064 = vld [vmem:[%s1502 + $0x70] sm:$0x8]
        %v6065 = vld [vmem:[%s1502 + $0x74] sm:$0xf]
        %v6066 = vld [vmem:[%s1502 + $0x78] sm:$0xf]
        %v6067 = vunpack.c.l.bf16 %v6043
        %v6068 = vunpack.c.l.bf16 %v6044
        %v6069 = vunpack.c.l.bf16 %v6045
        %v6070 = vunpack.c.l.bf16 %v6046
        %v6071 = vunpack.c.l.bf16 %v6047
        %v6072 = vunpack.c.l.bf16 %v6048
        %v6073 = vunpack.c.l.bf16 %v6049
        %v6074 = vunpack.c.l.bf16 %v6050
        %v6075 = vunpack.c.l.bf16 %v6051
        %v6076 = vunpack.c.l.bf16 %v6052
        %v6077 = vunpack.c.l.bf16 %v6053
        %v6078 = vunpack.c.l.bf16 %v6054
        %v6079 = vunpack.c.l.bf16 %v6055
        %v6080 = vunpack.c.l.bf16 %v6056
        %v6081 = vunpack.c.l.bf16 %v6057
        %v6082 = vunpack.c.l.bf16 %v6058
        %v6083 = vunpack.c.l.bf16 %v6059
        %v6084 = vunpack.c.l.bf16 %v6060
        %v6085 = vunpack.c.l.bf16 %v6061
        %v6086 = vunpack.c.l.bf16 %v6062
        %v6087 = vunpack.c.l.bf16 %v6063
        %v6088 = vunpack.c.l.bf16 %v6064
        %v6089 = vunpack.c.l.bf16 %v6065
        %v6090 = vunpack.c.l.bf16 %v6066
        %s6091 = scalar_lea.vmem %s8, 3
        %v6092 = vld [vmem:[%s6091] sm:$0x1]
        %v6094 = vperm.slane %v6092, 0
        %v6096 = vmul.f32 %v6067, %v6094
        %v6097 = vmul.f32 %v6068, %v6094
        %v6098 = vmul.f32 %v6069, %v6094
        %v6099 = vmul.f32 %v6070, %v6094
        %v6100 = vmul.f32 %v6071, %v6094
        %v6101 = vmul.f32 %v6072, %v6094
        %v6102 = vmul.f32 %v6073, %v6094
        %v6103 = vmul.f32 %v6074, %v6094
        %v6104 = vmul.f32 %v6075, %v6094
        %v6105 = vmul.f32 %v6076, %v6094
        %v6106 = vmul.f32 %v6077, %v6094
        %v6107 = vmul.f32 %v6078, %v6094
        %v6108 = vmul.f32 %v6079, %v6094
        %v6109 = vmul.f32 %v6080, %v6094
        %v6110 = vmul.f32 %v6081, %v6094
        %v6111 = vmul.f32 %v6082, %v6094
        %v6112 = vmul.f32 %v6083, %v6094
        %v6113 = vmul.f32 %v6084, %v6094
        %v6114 = vmul.f32 %v6085, %v6094
        %v6115 = vmul.f32 %v6086, %v6094
        %v6116 = vmul.f32 %v6087, %v6094
        %v6117 = vmul.f32 %v6088, %v6094
        %v6118 = vmul.f32 %v6089, %v6094
        %v6119 = vmul.f32 %v6090, %v6094
        %v6120 = vadd.f32 %v6019, %v6096
        %v6121 = vadd.f32 %v6020, %v6097
        %v6122 = vadd.f32 %v6021, %v6098
        %v6123 = vadd.f32 %v6022, %v6099
        %v6124 = vadd.f32 %v6023, %v6100
        %v6125 = vadd.f32 %v6024, %v6101
        %v6126 = vadd.f32 %v6025, %v6102
        %v6127 = vadd.f32 %v6026, %v6103
        %v6128 = vadd.f32 %v6027, %v6104
        %v6129 = vadd.f32 %v6028, %v6105
        %v6130 = vadd.f32 %v6029, %v6106
        %v6131 = vadd.f32 %v6030, %v6107
        %v6132 = vadd.f32 %v6031, %v6108
        %v6133 = vadd.f32 %v6032, %v6109
        %v6134 = vadd.f32 %v6033, %v6110
        %v6135 = vadd.f32 %v6034, %v6111
        %v6136 = vadd.f32 %v6035, %v6112
        %v6137 = vadd.f32 %v6036, %v6113
        %v6138 = vadd.f32 %v6037, %v6114
        %v6139 = vadd.f32 %v6038, %v6115
        %v6140 = vadd.f32 %v6039, %v6116
        %v6141 = vadd.f32 %v6040, %v6117
        %v6142 = vadd.f32 %v6041, %v6118
        %v6143 = vadd.f32 %v6042, %v6119
        %s6144 = scalar_lea.vmem %s8, 4
        %v6145 = vld [vmem:[%s6144] sm:$0x1]
        %v6147 = vperm.slane %v6145, 0
        %v6149 = vmul.f32 %v6068, %v6147
        %v6150 = vmul.f32 %v6069, %v6147
        %v6151 = vmul.f32 %v6071, %v6147
        %v6152 = vmul.f32 %v6072, %v6147
        %v6153 = vmul.f32 %v6074, %v6147
        %v6154 = vmul.f32 %v6075, %v6147
        %v6155 = vmul.f32 %v6077, %v6147
        %v6156 = vmul.f32 %v6078, %v6147
        %v6157 = vmul.f32 %v6080, %v6147
        %v6158 = vmul.f32 %v6081, %v6147
        %v6159 = vmul.f32 %v6083, %v6147
        %v6160 = vmul.f32 %v6084, %v6147
        %v6161 = vmul.f32 %v6086, %v6147
        %v6162 = vmul.f32 %v6087, %v6147
        %v6163 = vmul.f32 %v6089, %v6147
        %v6164 = vmul.f32 %v6090, %v6147
        %v6181 = vrot.slane %v6149, 1
        %v6182 = vrot.slane %v6150, 1
        %v6183 = vsel %vm5812, %v6181, %v6182
        %v6184 = vrot.slane %v6151, 1
        %v6185 = vrot.slane %v6152, 1
        %v6186 = vsel %vm5812, %v6184, %v6185
        %v6187 = vrot.slane %v6153, 1
        %v6188 = vrot.slane %v6154, 1
        %v6189 = vsel %vm5812, %v6187, %v6188
        %v6190 = vrot.slane %v6155, 1
        %v6191 = vrot.slane %v6156, 1
        %v6192 = vsel %vm5812, %v6190, %v6191
        %v6193 = vrot.slane %v6157, 1
        %v6194 = vrot.slane %v6158, 1
        %v6195 = vsel %vm5812, %v6193, %v6194
        %v6196 = vrot.slane %v6159, 1
        %v6197 = vrot.slane %v6160, 1
        %v6198 = vsel %vm5812, %v6196, %v6197
        %v6199 = vrot.slane %v6161, 1
        %v6200 = vrot.slane %v6162, 1
        %v6201 = vsel %vm5812, %v6199, %v6200
        %v6202 = vrot.slane %v6163, 1
        %v6203 = vrot.slane %v6164, 1
        %v6204 = vsel %vm5812, %v6202, %v6203
        %v6229 = vadd.f32 %v6120, %v6181
        %v6230 = vadd.f32 %v6121, %v6183
        %v6231 = vadd.f32 %v6122, %v6182
        %v6232 = vadd.f32 %v6123, %v6184
        %v6233 = vadd.f32 %v6124, %v6186
        %v6234 = vadd.f32 %v6125, %v6185
        %v6235 = vadd.f32 %v6126, %v6187
        %v6236 = vadd.f32 %v6127, %v6189
        %v6237 = vadd.f32 %v6128, %v6188
        %v6238 = vadd.f32 %v6129, %v6190
        %v6239 = vadd.f32 %v6130, %v6192
        %v6240 = vadd.f32 %v6131, %v6191
        %v6241 = vadd.f32 %v6132, %v6193
        %v6242 = vadd.f32 %v6133, %v6195
        %v6243 = vadd.f32 %v6134, %v6194
        %v6244 = vadd.f32 %v6135, %v6196
        %v6245 = vadd.f32 %v6136, %v6198
        %v6246 = vadd.f32 %v6137, %v6197
        %v6247 = vadd.f32 %v6138, %v6199
        %v6248 = vadd.f32 %v6139, %v6201
        %v6249 = vadd.f32 %v6140, %v6200
        %v6250 = vadd.f32 %v6141, %v6202
        %v6251 = vadd.f32 %v6142, %v6204
        %v6252 = vadd.f32 %v6143, %v6203
        %v6253 = vld [vmem:[%s1502 + $0xc] sm:$0x1]
        %v6254 = vld [vmem:[%s1502 + $0x1c] sm:$0x1]
        %v6255 = vld [vmem:[%s1502 + $0x2c] sm:$0x1]
        %v6256 = vld [vmem:[%s1502 + $0x3c] sm:$0x1]
        %v6257 = vld [vmem:[%s1502 + $0x4c] sm:$0x1]
        %v6258 = vld [vmem:[%s1502 + $0x5c] sm:$0x1]
        %v6259 = vld [vmem:[%s1502 + $0x6c] sm:$0x1]
        %v6260 = vld [vmem:[%s1502 + $0x7c] sm:$0x1]
        %v6261 = vunpack.c.l.bf16 %v6253
        %v6262 = vunpack.c.l.bf16 %v6254
        %v6263 = vunpack.c.l.bf16 %v6255
        %v6264 = vunpack.c.l.bf16 %v6256
        %v6265 = vunpack.c.l.bf16 %v6257
        %v6266 = vunpack.c.l.bf16 %v6258
        %v6267 = vunpack.c.l.bf16 %v6259
        %v6268 = vunpack.c.l.bf16 %v6260
        %s6269 = scalar_lea.vmem %s8, 5
        %v6270 = vld [vmem:[%s6269] sm:$0x1]
        %v6272 = vperm.slane %v6270, 0
        %v6274 = vmul.f32 %v6068, %v6272
        %v6275 = vmul.f32 %v6069, %v6272
        %v6276 = vmul.f32 %v6261, %v6272
        %v6277 = vmul.f32 %v6071, %v6272
        %v6278 = vmul.f32 %v6072, %v6272
        %v6279 = vmul.f32 %v6262, %v6272
        %v6280 = vmul.f32 %v6074, %v6272
        %v6281 = vmul.f32 %v6075, %v6272
        %v6282 = vmul.f32 %v6263, %v6272
        %v6283 = vmul.f32 %v6077, %v6272
        %v6284 = vmul.f32 %v6078, %v6272
        %v6285 = vmul.f32 %v6264, %v6272
        %v6286 = vmul.f32 %v6080, %v6272
        %v6287 = vmul.f32 %v6081, %v6272
        %v6288 = vmul.f32 %v6265, %v6272
        %v6289 = vmul.f32 %v6083, %v6272
        %v6290 = vmul.f32 %v6084, %v6272
        %v6291 = vmul.f32 %v6266, %v6272
        %v6292 = vmul.f32 %v6086, %v6272
        %v6293 = vmul.f32 %v6087, %v6272
        %v6294 = vmul.f32 %v6267, %v6272
        %v6295 = vmul.f32 %v6089, %v6272
        %v6296 = vmul.f32 %v6090, %v6272
        %v6297 = vmul.f32 %v6268, %v6272
        %v6322 = vrot.slane %v6274, 2
        %v6323 = vrot.slane %v6275, 2
        %v6324 = vsel %vm5954, %v6322, %v6323
        %v6325 = vrot.slane %v6276, 2
        %v6326 = vsel %vm5954, %v6323, %v6325
        %v6327 = vrot.slane %v6277, 2
        %v6328 = vrot.slane %v6278, 2
        %v6329 = vsel %vm5954, %v6327, %v6328
        %v6330 = vrot.slane %v6279, 2
        %v6331 = vsel %vm5954, %v6328, %v6330
        %v6332 = vrot.slane %v6280, 2
        %v6333 = vrot.slane %v6281, 2
        %v6334 = vsel %vm5954, %v6332, %v6333
        %v6335 = vrot.slane %v6282, 2
        %v6336 = vsel %vm5954, %v6333, %v6335
        %v6337 = vrot.slane %v6283, 2
        %v6338 = vrot.slane %v6284, 2
        %v6339 = vsel %vm5954, %v6337, %v6338
        %v6340 = vrot.slane %v6285, 2
        %v6341 = vsel %vm5954, %v6338, %v6340
        %v6342 = vrot.slane %v6286, 2
        %v6343 = vrot.slane %v6287, 2
        %v6344 = vsel %vm5954, %v6342, %v6343
        %v6345 = vrot.slane %v6288, 2
        %v6346 = vsel %vm5954, %v6343, %v6345
        %v6347 = vrot.slane %v6289, 2
        %v6348 = vrot.slane %v6290, 2
        %v6349 = vsel %vm5954, %v6347, %v6348
        %v6350 = vrot.slane %v6291, 2
        %v6351 = vsel %vm5954, %v6348, %v6350
        %v6352 = vrot.slane %v6292, 2
        %v6353 = vrot.slane %v6293, 2
        %v6354 = vsel %vm5954, %v6352, %v6353
        %v6355 = vrot.slane %v6294, 2
        %v6356 = vsel %vm5954, %v6353, %v6355
        %v6357 = vrot.slane %v6295, 2
        %v6358 = vrot.slane %v6296, 2
        %v6359 = vsel %vm5954, %v6357, %v6358
        %v6360 = vrot.slane %v6297, 2
        %v6361 = vsel %vm5954, %v6358, %v6360
        %v6386 = vadd.f32 %v6229, %v6322
        %v6387 = vadd.f32 %v6230, %v6324
        %v6388 = vadd.f32 %v6231, %v6326
        %v6389 = vadd.f32 %v6232, %v6327
        %v6390 = vadd.f32 %v6233, %v6329
        %v6391 = vadd.f32 %v6234, %v6331
        %v6392 = vadd.f32 %v6235, %v6332
        %v6393 = vadd.f32 %v6236, %v6334
        %v6394 = vadd.f32 %v6237, %v6336
        %v6395 = vadd.f32 %v6238, %v6337
        %v6396 = vadd.f32 %v6239, %v6339
        %v6397 = vadd.f32 %v6240, %v6341
        %v6398 = vadd.f32 %v6241, %v6342
        %v6399 = vadd.f32 %v6242, %v6344
        %v6400 = vadd.f32 %v6243, %v6346
        %v6401 = vadd.f32 %v6244, %v6347
        %v6402 = vadd.f32 %v6245, %v6349
        %v6403 = vadd.f32 %v6246, %v6351
        %v6404 = vadd.f32 %v6247, %v6352
        %v6405 = vadd.f32 %v6248, %v6354
        %v6406 = vadd.f32 %v6249, %v6356
        %v6407 = vadd.f32 %v6250, %v6357
        %v6408 = vadd.f32 %v6251, %v6359
        %v6409 = vadd.f32 %v6252, %v6361
        %v6410 = vld [vmem:[%s2483] sm:$0x8]
        %v6411 = vld [vmem:[%s2483 + $0x4] sm:$0xf]
        %v6412 = vld [vmem:[%s2483 + $0x8] sm:$0xf]
        %v6413 = vld [vmem:[%s2483 + $0x10] sm:$0x8]
        %v6414 = vld [vmem:[%s2483 + $0x14] sm:$0xf]
        %v6415 = vld [vmem:[%s2483 + $0x18] sm:$0xf]
        %v6416 = vld [vmem:[%s2483 + $0x20] sm:$0x8]
        %v6417 = vld [vmem:[%s2483 + $0x24] sm:$0xf]
        %v6418 = vld [vmem:[%s2483 + $0x28] sm:$0xf]
        %v6419 = vld [vmem:[%s2483 + $0x30] sm:$0x8]
        %v6420 = vld [vmem:[%s2483 + $0x34] sm:$0xf]
        %v6421 = vld [vmem:[%s2483 + $0x38] sm:$0xf]
        %v6422 = vld [vmem:[%s2483 + $0x40] sm:$0x8]
        %v6423 = vld [vmem:[%s2483 + $0x44] sm:$0xf]
        %v6424 = vld [vmem:[%s2483 + $0x48] sm:$0xf]
        %v6425 = vld [vmem:[%s2483 + $0x50] sm:$0x8]
        %v6426 = vld [vmem:[%s2483 + $0x54] sm:$0xf]
        %v6427 = vld [vmem:[%s2483 + $0x58] sm:$0xf]
        %v6428 = vld [vmem:[%s2483 + $0x60] sm:$0x8]
        %v6429 = vld [vmem:[%s2483 + $0x64] sm:$0xf]
        %v6430 = vld [vmem:[%s2483 + $0x68] sm:$0xf]
        %v6431 = vld [vmem:[%s2483 + $0x70] sm:$0x8]
        %v6432 = vld [vmem:[%s2483 + $0x74] sm:$0xf]
        %v6433 = vld [vmem:[%s2483 + $0x78] sm:$0xf]
        %v6434 = vunpack.c.l.bf16 %v6410
        %v6435 = vunpack.c.l.bf16 %v6411
        %v6436 = vunpack.c.l.bf16 %v6412
        %v6437 = vunpack.c.l.bf16 %v6413
        %v6438 = vunpack.c.l.bf16 %v6414
        %v6439 = vunpack.c.l.bf16 %v6415
        %v6440 = vunpack.c.l.bf16 %v6416
        %v6441 = vunpack.c.l.bf16 %v6417
        %v6442 = vunpack.c.l.bf16 %v6418
        %v6443 = vunpack.c.l.bf16 %v6419
        %v6444 = vunpack.c.l.bf16 %v6420
        %v6445 = vunpack.c.l.bf16 %v6421
        %v6446 = vunpack.c.l.bf16 %v6422
        %v6447 = vunpack.c.l.bf16 %v6423
        %v6448 = vunpack.c.l.bf16 %v6424
        %v6449 = vunpack.c.l.bf16 %v6425
        %v6450 = vunpack.c.l.bf16 %v6426
        %v6451 = vunpack.c.l.bf16 %v6427
        %v6452 = vunpack.c.l.bf16 %v6428
        %v6453 = vunpack.c.l.bf16 %v6429
        %v6454 = vunpack.c.l.bf16 %v6430
        %v6455 = vunpack.c.l.bf16 %v6431
        %v6456 = vunpack.c.l.bf16 %v6432
        %v6457 = vunpack.c.l.bf16 %v6433
        %s6458 = scalar_lea.vmem %s8, 6
        %v6459 = vld [vmem:[%s6458] sm:$0x1]
        %v6461 = vperm.slane %v6459, 0
        %v6463 = vmul.f32 %v6434, %v6461
        %v6464 = vmul.f32 %v6435, %v6461
        %v6465 = vmul.f32 %v6436, %v6461
        %v6466 = vmul.f32 %v6437, %v6461
        %v6467 = vmul.f32 %v6438, %v6461
        %v6468 = vmul.f32 %v6439, %v6461
        %v6469 = vmul.f32 %v6440, %v6461
        %v6470 = vmul.f32 %v6441, %v6461
        %v6471 = vmul.f32 %v6442, %v6461
        %v6472 = vmul.f32 %v6443, %v6461
        %v6473 = vmul.f32 %v6444, %v6461
        %v6474 = vmul.f32 %v6445, %v6461
        %v6475 = vmul.f32 %v6446, %v6461
        %v6476 = vmul.f32 %v6447, %v6461
        %v6477 = vmul.f32 %v6448, %v6461
        %v6478 = vmul.f32 %v6449, %v6461
        %v6479 = vmul.f32 %v6450, %v6461
        %v6480 = vmul.f32 %v6451, %v6461
        %v6481 = vmul.f32 %v6452, %v6461
        %v6482 = vmul.f32 %v6453, %v6461
        %v6483 = vmul.f32 %v6454, %v6461
        %v6484 = vmul.f32 %v6455, %v6461
        %v6485 = vmul.f32 %v6456, %v6461
        %v6486 = vmul.f32 %v6457, %v6461
        %v6487 = vadd.f32 %v6386, %v6463
        %v6488 = vadd.f32 %v6387, %v6464
        %v6489 = vadd.f32 %v6388, %v6465
        %v6490 = vadd.f32 %v6389, %v6466
        %v6491 = vadd.f32 %v6390, %v6467
        %v6492 = vadd.f32 %v6391, %v6468
        %v6493 = vadd.f32 %v6392, %v6469
        %v6494 = vadd.f32 %v6393, %v6470
        %v6495 = vadd.f32 %v6394, %v6471
        %v6496 = vadd.f32 %v6395, %v6472
        %v6497 = vadd.f32 %v6396, %v6473
        %v6498 = vadd.f32 %v6397, %v6474
        %v6499 = vadd.f32 %v6398, %v6475
        %v6500 = vadd.f32 %v6399, %v6476
        %v6501 = vadd.f32 %v6400, %v6477
        %v6502 = vadd.f32 %v6401, %v6478
        %v6503 = vadd.f32 %v6402, %v6479
        %v6504 = vadd.f32 %v6403, %v6480
        %v6505 = vadd.f32 %v6404, %v6481
        %v6506 = vadd.f32 %v6405, %v6482
        %v6507 = vadd.f32 %v6406, %v6483
        %v6508 = vadd.f32 %v6407, %v6484
        %v6509 = vadd.f32 %v6408, %v6485
        %v6510 = vadd.f32 %v6409, %v6486
        %s6511 = scalar_lea.vmem %s8, 7
        %v6512 = vld [vmem:[%s6511] sm:$0x1]
        %v6514 = vperm.slane %v6512, 0
        %v6516 = vmul.f32 %v6435, %v6514
        %v6517 = vmul.f32 %v6436, %v6514
        %v6518 = vmul.f32 %v6438, %v6514
        %v6519 = vmul.f32 %v6439, %v6514
        %v6520 = vmul.f32 %v6441, %v6514
        %v6521 = vmul.f32 %v6442, %v6514
        %v6522 = vmul.f32 %v6444, %v6514
        %v6523 = vmul.f32 %v6445, %v6514
        %v6524 = vmul.f32 %v6447, %v6514
        %v6525 = vmul.f32 %v6448, %v6514
        %v6526 = vmul.f32 %v6450, %v6514
        %v6527 = vmul.f32 %v6451, %v6514
        %v6528 = vmul.f32 %v6453, %v6514
        %v6529 = vmul.f32 %v6454, %v6514
        %v6530 = vmul.f32 %v6456, %v6514
        %v6531 = vmul.f32 %v6457, %v6514
        %v6548 = vrot.slane %v6516, 1
        %v6549 = vrot.slane %v6517, 1
        %v6550 = vsel %vm5812, %v6548, %v6549
        %v6551 = vrot.slane %v6518, 1
        %v6552 = vrot.slane %v6519, 1
        %v6553 = vsel %vm5812, %v6551, %v6552
        %v6554 = vrot.slane %v6520, 1
        %v6555 = vrot.slane %v6521, 1
        %v6556 = vsel %vm5812, %v6554, %v6555
        %v6557 = vrot.slane %v6522, 1
        %v6558 = vrot.slane %v6523, 1
        %v6559 = vsel %vm5812, %v6557, %v6558
        %v6560 = vrot.slane %v6524, 1
        %v6561 = vrot.slane %v6525, 1
        %v6562 = vsel %vm5812, %v6560, %v6561
        %v6563 = vrot.slane %v6526, 1
        %v6564 = vrot.slane %v6527, 1
        %v6565 = vsel %vm5812, %v6563, %v6564
        %v6566 = vrot.slane %v6528, 1
        %v6567 = vrot.slane %v6529, 1
        %v6568 = vsel %vm5812, %v6566, %v6567
        %v6569 = vrot.slane %v6530, 1
        %v6570 = vrot.slane %v6531, 1
        %v6571 = vsel %vm5812, %v6569, %v6570
        %v6596 = vadd.f32 %v6487, %v6548
        %v6597 = vadd.f32 %v6488, %v6550
        %v6598 = vadd.f32 %v6489, %v6549
        %v6599 = vadd.f32 %v6490, %v6551
        %v6600 = vadd.f32 %v6491, %v6553
        %v6601 = vadd.f32 %v6492, %v6552
        %v6602 = vadd.f32 %v6493, %v6554
        %v6603 = vadd.f32 %v6494, %v6556
        %v6604 = vadd.f32 %v6495, %v6555
        %v6605 = vadd.f32 %v6496, %v6557
        %v6606 = vadd.f32 %v6497, %v6559
        %v6607 = vadd.f32 %v6498, %v6558
        %v6608 = vadd.f32 %v6499, %v6560
        %v6609 = vadd.f32 %v6500, %v6562
        %v6610 = vadd.f32 %v6501, %v6561
        %v6611 = vadd.f32 %v6502, %v6563
        %v6612 = vadd.f32 %v6503, %v6565
        %v6613 = vadd.f32 %v6504, %v6564
        %v6614 = vadd.f32 %v6505, %v6566
        %v6615 = vadd.f32 %v6506, %v6568
        %v6616 = vadd.f32 %v6507, %v6567
        %v6617 = vadd.f32 %v6508, %v6569
        %v6618 = vadd.f32 %v6509, %v6571
        %v6619 = vadd.f32 %v6510, %v6570
        %v6620 = vld [vmem:[%s2483 + $0xc] sm:$0x1]
        %v6621 = vld [vmem:[%s2483 + $0x1c] sm:$0x1]
        %v6622 = vld [vmem:[%s2483 + $0x2c] sm:$0x1]
        %v6623 = vld [vmem:[%s2483 + $0x3c] sm:$0x1]
        %v6624 = vld [vmem:[%s2483 + $0x4c] sm:$0x1]
        %v6625 = vld [vmem:[%s2483 + $0x5c] sm:$0x1]
        %v6626 = vld [vmem:[%s2483 + $0x6c] sm:$0x1]
        %v6627 = vld [vmem:[%s2483 + $0x7c] sm:$0x1]
        %v6628 = vunpack.c.l.bf16 %v6620
        %v6629 = vunpack.c.l.bf16 %v6621
        %v6630 = vunpack.c.l.bf16 %v6622
        %v6631 = vunpack.c.l.bf16 %v6623
        %v6632 = vunpack.c.l.bf16 %v6624
        %v6633 = vunpack.c.l.bf16 %v6625
        %v6634 = vunpack.c.l.bf16 %v6626
        %v6635 = vunpack.c.l.bf16 %v6627
        %s6636 = scalar_lea.vmem %s8, 8
        %v6637 = vld [vmem:[%s6636] sm:$0x1]
        %v6639 = vperm.slane %v6637, 0
        %v6641 = vmul.f32 %v6435, %v6639
        %v6642 = vmul.f32 %v6436, %v6639
        %v6643 = vmul.f32 %v6628, %v6639
        %v6644 = vmul.f32 %v6438, %v6639
        %v6645 = vmul.f32 %v6439, %v6639
        %v6646 = vmul.f32 %v6629, %v6639
        %v6647 = vmul.f32 %v6441, %v6639
        %v6648 = vmul.f32 %v6442, %v6639
        %v6649 = vmul.f32 %v6630, %v6639
        %v6650 = vmul.f32 %v6444, %v6639
        %v6651 = vmul.f32 %v6445, %v6639
        %v6652 = vmul.f32 %v6631, %v6639
        %v6653 = vmul.f32 %v6447, %v6639
        %v6654 = vmul.f32 %v6448, %v6639
        %v6655 = vmul.f32 %v6632, %v6639
        %v6656 = vmul.f32 %v6450, %v6639
        %v6657 = vmul.f32 %v6451, %v6639
        %v6658 = vmul.f32 %v6633, %v6639
        %v6659 = vmul.f32 %v6453, %v6639
        %v6660 = vmul.f32 %v6454, %v6639
        %v6661 = vmul.f32 %v6634, %v6639
        %v6662 = vmul.f32 %v6456, %v6639
        %v6663 = vmul.f32 %v6457, %v6639
        %v6664 = vmul.f32 %v6635, %v6639
        %v6689 = vrot.slane %v6641, 2
        %v6690 = vrot.slane %v6642, 2
        %v6691 = vsel %vm5954, %v6689, %v6690
        %v6692 = vrot.slane %v6643, 2
        %v6693 = vsel %vm5954, %v6690, %v6692
        %v6694 = vrot.slane %v6644, 2
        %v6695 = vrot.slane %v6645, 2
        %v6696 = vsel %vm5954, %v6694, %v6695
        %v6697 = vrot.slane %v6646, 2
        %v6698 = vsel %vm5954, %v6695, %v6697
        %v6699 = vrot.slane %v6647, 2
        %v6700 = vrot.slane %v6648, 2
        %v6701 = vsel %vm5954, %v6699, %v6700
        %v6702 = vrot.slane %v6649, 2
        %v6703 = vsel %vm5954, %v6700, %v6702
        %v6704 = vrot.slane %v6650, 2
        %v6705 = vrot.slane %v6651, 2
        %v6706 = vsel %vm5954, %v6704, %v6705
        %v6707 = vrot.slane %v6652, 2
        %v6708 = vsel %vm5954, %v6705, %v6707
        %v6709 = vrot.slane %v6653, 2
        %v6710 = vrot.slane %v6654, 2
        %v6711 = vsel %vm5954, %v6709, %v6710
        %v6712 = vrot.slane %v6655, 2
        %v6713 = vsel %vm5954, %v6710, %v6712
        %v6714 = vrot.slane %v6656, 2
        %v6715 = vrot.slane %v6657, 2
        %v6716 = vsel %vm5954, %v6714, %v6715
        %v6717 = vrot.slane %v6658, 2
        %v6718 = vsel %vm5954, %v6715, %v6717
        %v6719 = vrot.slane %v6659, 2
        %v6720 = vrot.slane %v6660, 2
        %v6721 = vsel %vm5954, %v6719, %v6720
        %v6722 = vrot.slane %v6661, 2
        %v6723 = vsel %vm5954, %v6720, %v6722
        %v6724 = vrot.slane %v6662, 2
        %v6725 = vrot.slane %v6663, 2
        %v6726 = vsel %vm5954, %v6724, %v6725
        %v6727 = vrot.slane %v6664, 2
        %v6728 = vsel %vm5954, %v6725, %v6727
        %v6753 = vadd.f32 %v6596, %v6689
        %v6754 = vadd.f32 %v6597, %v6691
        %v6755 = vadd.f32 %v6598, %v6693
        %v6756 = vadd.f32 %v6599, %v6694
        %v6757 = vadd.f32 %v6600, %v6696
        %v6758 = vadd.f32 %v6601, %v6698
        %v6759 = vadd.f32 %v6602, %v6699
        %v6760 = vadd.f32 %v6603, %v6701
        %v6761 = vadd.f32 %v6604, %v6703
        %v6762 = vadd.f32 %v6605, %v6704
        %v6763 = vadd.f32 %v6606, %v6706
        %v6764 = vadd.f32 %v6607, %v6708
        %v6765 = vadd.f32 %v6608, %v6709
        %v6766 = vadd.f32 %v6609, %v6711
        %v6767 = vadd.f32 %v6610, %v6713
        %v6768 = vadd.f32 %v6611, %v6714
        %v6769 = vadd.f32 %v6612, %v6716
        %v6770 = vadd.f32 %v6613, %v6718
        %v6771 = vadd.f32 %v6614, %v6719
        %v6772 = vadd.f32 %v6615, %v6721
        %v6773 = vadd.f32 %v6616, %v6723
        %v6774 = vadd.f32 %v6617, %v6724
        %v6775 = vadd.f32 %v6618, %v6726
        %v6776 = vadd.f32 %v6619, %v6728
        %vm6777 = vcmask 261127
        %v6778 = vsel %vm6777, %v6753, 0.0
        %6779 = vadd.xlane.f32.xlu0 %v6778
        %v6780 = vpop.xlane.xlu0 %6779
        %v6781 = vsel %vm1199, %v6754, 0.0
        %6782 = vadd.xlane.f32.xlu0 %v6781
        %v6783 = vpop.xlane.xlu0 %6782
        %vm6784 = vcmask 260096
        %v6785 = vsel %vm6784, %v6755, 0.0
        %6786 = vadd.xlane.f32.xlu0 %v6785
        %v6787 = vpop.xlane.xlu0 %6786
        %v6788 = vsel %vm6777, %v6756, 0.0
        %6789 = vadd.xlane.f32.xlu0 %v6788
        %v6790 = vpop.xlane.xlu0 %6789
        %v6791 = vsel %vm1199, %v6757, 0.0
        %6792 = vadd.xlane.f32.xlu0 %v6791
        %v6793 = vpop.xlane.xlu0 %6792
        %v6794 = vsel %vm6784, %v6758, 0.0
        %6795 = vadd.xlane.f32.xlu0 %v6794
        %v6796 = vpop.xlane.xlu0 %6795
        %v6797 = vsel %vm6777, %v6759, 0.0
        %6798 = vadd.xlane.f32.xlu0 %v6797
        %v6799 = vpop.xlane.xlu0 %6798
        %v6800 = vsel %vm1199, %v6760, 0.0
        %6801 = vadd.xlane.f32.xlu0 %v6800
        %v6802 = vpop.xlane.xlu0 %6801
        %v6803 = vsel %vm6784, %v6761, 0.0
        %6804 = vadd.xlane.f32.xlu0 %v6803
        %v6805 = vpop.xlane.xlu0 %6804
        %v6806 = vsel %vm6777, %v6762, 0.0
        %6807 = vadd.xlane.f32.xlu0 %v6806
        %v6808 = vpop.xlane.xlu0 %6807
        %v6809 = vsel %vm1199, %v6763, 0.0
        %6810 = vadd.xlane.f32.xlu0 %v6809
        %v6811 = vpop.xlane.xlu0 %6810
        %v6812 = vsel %vm6784, %v6764, 0.0
        %6813 = vadd.xlane.f32.xlu0 %v6812
        %v6814 = vpop.xlane.xlu0 %6813
        %v6815 = vsel %vm6777, %v6765, 0.0
        %6816 = vadd.xlane.f32.xlu0 %v6815
        %v6817 = vpop.xlane.xlu0 %6816
        %v6818 = vsel %vm1199, %v6766, 0.0
        %6819 = vadd.xlane.f32.xlu0 %v6818
        %v6820 = vpop.xlane.xlu0 %6819
        %v6821 = vsel %vm6784, %v6767, 0.0
        %6822 = vadd.xlane.f32.xlu0 %v6821
        %v6823 = vpop.xlane.xlu0 %6822
        %v6824 = vsel %vm6777, %v6768, 0.0
        %6825 = vadd.xlane.f32.xlu0 %v6824
        %v6826 = vpop.xlane.xlu0 %6825
        %v6827 = vsel %vm1199, %v6769, 0.0
        %6828 = vadd.xlane.f32.xlu0 %v6827
        %v6829 = vpop.xlane.xlu0 %6828
        %v6830 = vsel %vm6784, %v6770, 0.0
        %6831 = vadd.xlane.f32.xlu0 %v6830
        %v6832 = vpop.xlane.xlu0 %6831
        %v6833 = vsel %vm6777, %v6771, 0.0
        %6834 = vadd.xlane.f32.xlu0 %v6833
        %v6835 = vpop.xlane.xlu0 %6834
        %v6836 = vsel %vm1199, %v6772, 0.0
        %6837 = vadd.xlane.f32.xlu0 %v6836
        %v6838 = vpop.xlane.xlu0 %6837
        %v6839 = vsel %vm6784, %v6773, 0.0
        %6840 = vadd.xlane.f32.xlu0 %v6839
        %v6841 = vpop.xlane.xlu0 %6840
        %v6842 = vsel %vm6777, %v6774, 0.0
        %6843 = vadd.xlane.f32.xlu0 %v6842
        %v6844 = vpop.xlane.xlu0 %6843
        %v6845 = vsel %vm1199, %v6775, 0.0
        %6846 = vadd.xlane.f32.xlu0 %v6845
        %v6847 = vpop.xlane.xlu0 %6846
        %v6848 = vsel %vm6784, %v6776, 0.0
        %6849 = vadd.xlane.f32.xlu0 %v6848
        %v6850 = vpop.xlane.xlu0 %6849
        %v6851 = vld [vmem:[#allocation3] sm:$0x1]
        %v6853 = vperm.slane %v6851, 0
        %6854 = vset.pattern.permute.xlu0 0
        %6855 = vperm.xlu0 %6854, %v6853
        %v6856 = vpop.permute.xlu0 %6855
        %v6858 = vadd.f32 %v6780, %v6856
        %v6859 = vadd.f32 %v6783, %v6856
        %v6860 = vadd.f32 %v6787, %v6856
        %v6861 = vadd.f32 %v6790, %v6856
        %v6862 = vadd.f32 %v6793, %v6856
        %v6863 = vadd.f32 %v6796, %v6856
        %v6864 = vadd.f32 %v6799, %v6856
        %v6865 = vadd.f32 %v6802, %v6856
        %v6866 = vadd.f32 %v6805, %v6856
        %v6867 = vadd.f32 %v6808, %v6856
        %v6868 = vadd.f32 %v6811, %v6856
        %v6869 = vadd.f32 %v6814, %v6856
        %v6870 = vadd.f32 %v6817, %v6856
        %v6871 = vadd.f32 %v6820, %v6856
        %v6872 = vadd.f32 %v6823, %v6856
        %v6873 = vadd.f32 %v6826, %v6856
        %v6874 = vadd.f32 %v6829, %v6856
        %v6875 = vadd.f32 %v6832, %v6856
        %v6876 = vadd.f32 %v6835, %v6856
        %v6877 = vadd.f32 %v6838, %v6856
        %v6878 = vadd.f32 %v6841, %v6856
        %v6879 = vadd.f32 %v6844, %v6856
        %v6880 = vadd.f32 %v6847, %v6856
        %v6881 = vadd.f32 %v6850, %v6856
        %v6882 = vld [vmem:[%s418] sm:$0xff]
        %v6907 = vlaneseq
        %v6908 = vand.u32 %v6907, 127
        %v6909 = vadd.s32 %v6908, 7
        %v6910 = vperm.slane %v6858, %v6909
        %v6911 = vadd.s32 %v6908, 4294967295
        %v6912 = vperm.slane %v6859, %v6911
        %vm6913 = vcmask 72712
        %v6914 = vsel %vm6913, %v6912, %v6910
        %v6915 = vadd.s32 %v6908, 4294967287
        %v6916 = vperm.slane %v6860, %v6915
        %vm6917 = vcmask 138312
        %v6918 = vsel %vm6917, %v6916, %v6914
        %v6919 = vperm.slane %v6861, %v6909
        %v6920 = vperm.slane %v6862, %v6911
        %v6921 = vsel %vm6913, %v6920, %v6919
        %v6922 = vperm.slane %v6863, %v6915
        %v6923 = vsel %vm6917, %v6922, %v6921
        %v6924 = vperm.slane %v6864, %v6909
        %v6925 = vperm.slane %v6865, %v6911
        %v6926 = vsel %vm6913, %v6925, %v6924
        %v6927 = vperm.slane %v6866, %v6915
        %v6928 = vsel %vm6917, %v6927, %v6926
        %v6929 = vperm.slane %v6867, %v6909
        %v6930 = vperm.slane %v6868, %v6911
        %v6931 = vsel %vm6913, %v6930, %v6929
        %v6932 = vperm.slane %v6869, %v6915
        %v6933 = vsel %vm6917, %v6932, %v6931
        %v6934 = vperm.slane %v6870, %v6909
        %v6935 = vperm.slane %v6871, %v6911
        %v6936 = vsel %vm6913, %v6935, %v6934
        %v6937 = vperm.slane %v6872, %v6915
        %v6938 = vsel %vm6917, %v6937, %v6936
        %v6939 = vperm.slane %v6873, %v6909
        %v6940 = vperm.slane %v6874, %v6911
        %v6941 = vsel %vm6913, %v6940, %v6939
        %v6942 = vperm.slane %v6875, %v6915
        %v6943 = vsel %vm6917, %v6942, %v6941
        %v6944 = vperm.slane %v6876, %v6909
        %v6945 = vperm.slane %v6877, %v6911
        %v6946 = vsel %vm6913, %v6945, %v6944
        %v6947 = vperm.slane %v6878, %v6915
        %v6948 = vsel %vm6917, %v6947, %v6946
        %v6949 = vperm.slane %v6879, %v6909
        %v6950 = vperm.slane %v6880, %v6911
        %v6951 = vsel %vm6913, %v6950, %v6949
        %v6952 = vperm.slane %v6881, %v6915
        %v6953 = vsel %vm6917, %v6952, %v6951
        %vm6954 = vcmask 1041409
        %v6955 = vsel %vm6954, %v6923, %v6918
        %vm6956 = vcmask 1042434
        %v6957 = vsel %vm6956, %v6928, %v6955
        %vm6958 = vcmask 1043459
        %v6959 = vsel %vm6958, %v6933, %v6957
        %vm6960 = vcmask 1044484
        %v6961 = vsel %vm6960, %v6938, %v6959
        %vm6962 = vcmask 1045509
        %v6963 = vsel %vm6962, %v6943, %v6961
        %vm6964 = vcmask 1046534
        %v6965 = vsel %vm6964, %v6948, %v6963
        %vm6966 = vcmask 1047559
        %v6967 = vsel %vm6966, %v6953, %v6965
        %v6969 = vadd.f32 %v6882, %v6967
        %v6970 = vsub.f32 0.0, %v6969
        %v6971 = vmul.f32 %v6970, 1.442695
        %v6972 = vpow.pop %v6971
        %v6973 = vadd.f32 %v6972, 1.0
        %v6974 = vrcp.pop %v6973
        %vm6975 = vcmask 130048
        %6976 = vst.msk [vmem:[%s401] sm:$0xff] %vm6975, %v6974
        %s6977 = sand.u32 %s272, 1
        %s6978 = scalar_lea.sflag [#allocation5], %s6977
        %s6979 = sand.u32 %s272, 1
        %s6980 = smul.addr %s6979, 8
        %s6981 = scalar_lea.vmem [#allocation4], %s6980
        // Predicated region
        $region85: #{plain_refiner_pallas.1} parent=59 // pred_check
          %p6982 = pneg %p282
        $region86: #{plain_refiner_pallas.1} parent=59 // pred_check_branch
          %6984 = sbr.rel (%p6982) target = $region88
        $region87: #{plain_refiner_pallas.1} parent=59 // pred_region
          %6986 = vsyncadd %s6978, 0
          %s6987 = smul.addr %s30, 2
          %s6988 = sadd.s32 %s31, %s6987
          %s6989 = smul.addr %s6988, 8
          %s6990 = scalar_lea.hbm %s10, %s6989
          %s6992 = sshll.u32 %s6981, 4
          %s6993 = int_to_ptr.vmem [resolvable:$true] %s6992
          %s6994 = sshll.u32 %s6990, 4
          %s6995 = int_to_ptr.hbm [resolvable:$true] %s6994
          %6997 = dma.vmem_to_hbm [thread:$0]  %s6993, 128, %s6995, %s6978
        $region88: #{plain_refiner_pallas.1} parent=59 // pred_fallthru
          _
      $region60: #{plain_refiner_pallas.1} parent=5 // pred_fallthru
        _
      %p6998 = scmp.le.s32.totalorder 2, %s21
      // Predicated region
      $region89: #{plain_refiner_pallas.1} parent=5 // pred_check
        %p6999 = pneg %p6998
      $region90: #{plain_refiner_pallas.1} parent=5 // pred_check_branch
        %7001 = sbr.rel (%p6999) target = $region92
      $region91: #{plain_refiner_pallas.1} parent=5 // pred_region
        %s7002 = ssub.s32 %s21, 2
        // Predicated region
        $region93: #{plain_refiner_pallas.1} parent=91 // pred_check
          %p7003 = pneg %p288
        $region94: #{plain_refiner_pallas.1} parent=91 // pred_check_branch
          %7005 = sbr.rel (%p7003) target = $region96
        $region95: #{plain_refiner_pallas.1} parent=91 // pred_region
          %s7006 = sand.u32 %s273, 1
          %s7007 = scalar_lea.sflag [#allocation5], %s7006
          %s7008 = sand.u32 %s273, 1
          %s7009 = smul.addr %s7008, 8
          %s7010 = scalar_lea.vmem [#allocation4], %s7009
          %7012 = dma.done %s7007, 128
        $region96: #{plain_refiner_pallas.1} parent=91 // pred_fallthru
          _
      $region92: #{plain_refiner_pallas.1} parent=5 // pred_fallthru
        _
    $region6: #{plain_refiner_pallas.1} parent=1 // loop_footer
      %s25 = sadd.s32 1, %s21
    $region7: #{plain_refiner_pallas.1} parent=1 // loop_footer_branch
      %20 = sbr.rel target = $region3
    $region8: #{plain_refiner_pallas.1} parent=1 // loop_exit
      _
    %7013 = vsyncpa [#allocation5], 1
    %s7014 = scalar_lea.sflag [#allocation5], 1
    %7015 = vsyncpa %s7014, 1

</llo_original>
